<compile_context>
chip_gen: v7x
topology: tpu7x:2x2x1
jax: 0.10.0
libtpu: 0.0.40
codegen_flags: <defaults>
</compile_context>

<pallas_src>
import functools
import math

import jax
import jax.numpy as jnp
from jax.experimental import pallas as pl
from jax.experimental.pallas import tpu as pltpu

LN_EPS = 1e-12
_GELU_C = 0.7978845608028654  # sqrt(2/pi)


def _gelu(x):
    # tanh-approximation GELU ("gelu_new"), f32 math.
    return 0.5 * x * (1.0 + jnp.tanh(_GELU_C * (x + 0.044715 * x * x * x)))


def _layer_norm(x, gamma, beta):
    mean = jnp.mean(x, axis=-1, keepdims=True)
    var = jnp.mean(jnp.square(x - mean), axis=-1, keepdims=True)
    return (x - mean) * jax.lax.rsqrt(var + LN_EPS) * gamma + beta


def _bert_layer_kernel(num_heads,
                       x_ref, mask_ref,
                       wqkv_ref, bqkv_ref,
                       wao_ref, bao_ref, g1_ref, be1_ref,
                       wi_ref, bi_ref, wo_ref, bo_ref, g2_ref, be2_ref,
                       o_ref,
                       qkv_scr, ctx_scr):
    _, S, H = x_ref.shape
    D = H // num_heads
    bf16 = jnp.bfloat16

    xb = x_ref[0].astype(bf16)                       # [S, H] bf16 MXU operand

    # ---- fused QKV projection (1/sqrt(D) already folded into the Q slice of
    #      the pre-concatenated weight/bias in the wrapper) ----
    qkv = jnp.dot(xb, wqkv_ref[...],
                  preferred_element_type=jnp.float32) + bqkv_ref[...]
    qkv_scr[...] = qkv.astype(bf16)                  # park in VMEM, re-slice

    # Hoisted, head-invariant additive key mask broadcast [1,S] -> [S,S].
    mask_b = jnp.broadcast_to(mask_ref[0], (S, S))

    # ---- BertSelfAttention: per-head scores / softmax / context ----
    # Static unroll (NH small); each iteration only touches [S,D] slices of the
    # VMEM scratches, so no large values are carried across heads.
    for h in range(num_heads):
        q_h = qkv_scr[:, h * D:(h + 1) * D]                       # [S,D] bf16
        k_h = qkv_scr[:, H + h * D:H + (h + 1) * D]
        v_h = qkv_scr[:, 2 * H + h * D:2 * H + (h + 1) * D]

        s_h = jax.lax.dot_general(                                 # q @ k^T
            q_h, k_h, (((1,), (1,)), ((), ())),
            preferred_element_type=jnp.float32)
        s_h = s_h + mask_b

        # softmax with deferred normalization (f32, exp on EUP)
        m = jnp.max(s_h, axis=-1, keepdims=True)
        p = jnp.exp(s_h - m)
        l = jnp.sum(p, axis=-1, keepdims=True)

        ctx_h = jnp.dot(p.astype(bf16), v_h,
                        preferred_element_type=jnp.float32)        # [S,D]
        ctx_h = ctx_h * pl.reciprocal(l, approx=True)              # EUP recip
        ctx_scr[:, h * D:(h + 1) * D] = ctx_h.astype(bf16)

    # ---- BertSelfOutput: one K=128 dense + bias + residual + LayerNorm ----
    attn = jnp.dot(ctx_scr[...], wao_ref[...],
                   preferred_element_type=jnp.float32) + bao_ref[...]
    attn = _layer_norm(attn + x_ref[0].astype(jnp.float32),
                       g1_ref[...], be1_ref[...])

    # ---- BertIntermediate: dense + GELU ----
    inter = jnp.dot(attn.astype(bf16), wi_ref[...],
                    preferred_element_type=jnp.float32) + bi_ref[...]
    inter = _gelu(inter)

    # ---- BertOutput: dense + residual + LayerNorm ----
    out = jnp.dot(inter.astype(bf16), wo_ref[...],
                  preferred_element_type=jnp.float32) + bo_ref[...]
    out = _layer_norm(out + attn, g2_ref[...], be2_ref[...])

    o_ref[0] = out.astype(o_ref.dtype)


def bert_layer(hidden_states, attention_mask, params, num_heads):
    """hidden_states: [B,S,H] f32, attention_mask: [B,1,S] additive f32."""
    B, S, H = hidden_states.shape
    I = params["w_i"].shape[1]
    D = H // num_heads
    scale = 1.0 / math.sqrt(D)
    bf16 = jnp.bfloat16

    # Fused lane-dense QKV weight [H, 3H] (bf16) with the attention scale
    # folded into the Q columns; matching fused bias [1, 3H] (f32).
    w_qkv = jnp.concatenate(
        [params["w_q"] * scale, params["w_k"], params["w_v"]],
        axis=1).astype(bf16)
    b_qkv = jnp.concatenate(
        [params["b_q"] * scale, params["b_k"], params["b_v"]], axis=1)

    w_ao = params["w_ao"].astype(bf16)
    w_i = params["w_i"].astype(bf16)
    w_o = params["w_o"].astype(bf16)

    kernel = functools.partial(_bert_layer_kernel, num_heads)

    row_spec = pl.BlockSpec((1, S, H), lambda b: (b, 0, 0))
    mask_spec = pl.BlockSpec((1, 1, S), lambda b: (b, 0, 0))
    w2 = lambda shp: pl.BlockSpec(shp, lambda b: (0, 0))

    return pl.pallas_call(
        kernel,
        out_shape=jax.ShapeDtypeStruct((B, S, H), hidden_states.dtype),
        grid=(B,),
        in_specs=[
            row_spec,                     # hidden_states
            mask_spec,                    # attention mask (additive, key axis)
            w2((H, 3 * H)), w2((1, 3 * H)),   # fused QKV dense
            w2((H, H)), w2((1, H)),           # attention output dense
            w2((1, H)), w2((1, H)),           # LN1 gamma/beta
            w2((H, I)), w2((1, I)),           # intermediate dense
            w2((I, H)), w2((1, H)),           # output dense
            w2((1, H)), w2((1, H)),           # LN2 gamma/beta
        ],
        out_specs=row_spec,
        scratch_shapes=[
            pltpu.VMEM((S, 3 * H), bf16),     # parked QKV activations
            pltpu.VMEM((S, H), bf16),         # gathered per-head contexts
        ],
        compiler_params=pltpu.CompilerParams(
            dimension_semantics=("parallel",),
            vmem_limit_bytes=48 * 1024 * 1024),
    )(hidden_states, attention_mask,
      w_qkv, b_qkv,
      w_ao, params["b_ao"], params["g1"], params["be1"],
      w_i, params["b_i"], w_o, params["b_o"], params["g2"], params["be2"])


def _reference(hidden_states, attention_mask, params, num_heads):
    """Pure-JAX mirror of the layer math (same bf16 MXU operands)."""
    B, S, H = hidden_states.shape
    D = H // num_heads
    bf16 = jnp.bfloat16

    def dense(x, w, b):
        return jnp.dot(x.astype(bf16), w.astype(bf16),
                       preferred_element_type=jnp.float32) + b

    x = hidden_states.astype(jnp.float32)
    q = dense(x, params["w_q"], params["b_q"])
    k = dense(x, params["w_k"], params["b_k"])
    v = dense(x, params["w_v"], params["b_v"])

    qh = q.reshape(B, S, num_heads, D).transpose(0, 2, 1, 3)
    kh = k.reshape(B, S, num_heads, D).transpose(0, 2, 1, 3)
    vh = v.reshape(B, S, num_heads, D).transpose(0, 2, 1, 3)

    scores = jnp.einsum("bhqd,bhkd->bhqk", qh.astype(bf16), kh.astype(bf16),
                        preferred_element_type=jnp.float32) / math.sqrt(D)
    scores = scores + attention_mask[:, :, None, :]
    m = jnp.max(scores, axis=-1, keepdims=True)
    p = jnp.exp(scores - m)
    probs = p / jnp.sum(p, axis=-1, keepdims=True)
    ctx = jnp.einsum("bhqk,bhkd->bhqd", probs.astype(bf16), vh.astype(bf16),
                     preferred_element_type=jnp.float32)
    ctx = ctx.transpose(0, 2, 1, 3).reshape(B, S, H)

    attn = dense(ctx, params["w_ao"], params["b_ao"])
    attn = _layer_norm(attn + x, params["g1"], params["be1"])
    inter = _gelu(dense(attn, params["w_i"], params["b_i"]))
    out = dense(inter, params["w_o"], params["b_o"])
    out = _layer_norm(out + attn, params["g2"], params["be2"])
    return out


def make_params(key, hidden_size, intermediate_size):
    H, I = hidden_size, intermediate_size
    ks = jax.random.split(key, 12)
    s = 0.02
    w = lambda k, shp: s * jax.random.normal(k, shp, jnp.float32)
    return {
        "w_q": w(ks[0], (H, H)), "b_q": w(ks[1], (1, H)),
        "w_k": w(ks[2], (H, H)), "b_k": w(ks[3], (1, H)),
        "w_v": w(ks[4], (H, H)), "b_v": w(ks[5], (1, H)),
        "w_ao": w(ks[6], (H, H)), "b_ao": w(ks[7], (1, H)),
        "g1": jnp.ones((1, H), jnp.float32), "be1": jnp.zeros((1, H), jnp.float32),
        "w_i": w(ks[8], (H, I)), "b_i": w(ks[9], (1, I)),
        "w_o": w(ks[10], (I, H)), "b_o": w(ks[11], (1, H)),
        "g2": jnp.ones((1, H), jnp.float32), "be2": jnp.zeros((1, H), jnp.float32),
    }


if __name__ == "__main__":
    # Small-but-lane-dense BERT config: hidden=128 (4 heads x 32), ffn=512.
    B, S, H, NH, I = 2, 128, 128, 4, 512
    key = jax.random.PRNGKey(0)
    k_x, k_p = jax.random.split(key)

    hidden_states = jax.random.normal(k_x, (B, S, H), jnp.float32)
    # Additive attention mask (HF "extended" mask): last 16 keys of batch 1
    # are masked out.
    attention_mask = jnp.zeros((B, 1, S), jnp.float32)
    attention_mask = attention_mask.at[1, 0, S - 16:].set(-1e9)
    params = make_params(k_p, H, I)

    layer_output = bert_layer(hidden_states, attention_mask, params, NH)
    layer_output = jax.block_until_ready(layer_output)

    ref = _reference(hidden_states, attention_mask, params, NH)
    assert layer_output.shape == (B, S, H)
    assert bool(jnp.allclose(layer_output, ref, atol=2e-2, rtol=2e-2))

    print("KERNEL_OK")
</pallas_src>

<mosaic_0001>
module attributes {stable_mosaic.version = 11 : i64} {
  func.func @_bert_layer_kernel(%arg0: i32, %arg1: memref<1x128x128xf32, #tpu.memory_space<vmem>>, %arg2: memref<1x1x128xf32, #tpu.memory_space<vmem>>, %arg3: memref<128x384xbf16, #tpu.memory_space<vmem>>, %arg4: memref<1x384xf32, #tpu.memory_space<vmem>>, %arg5: memref<128x128xbf16, #tpu.memory_space<vmem>>, %arg6: memref<1x128xf32, #tpu.memory_space<vmem>>, %arg7: memref<1x128xf32, #tpu.memory_space<vmem>>, %arg8: memref<1x128xf32, #tpu.memory_space<vmem>>, %arg9: memref<128x512xbf16, #tpu.memory_space<vmem>>, %arg10: memref<1x512xf32, #tpu.memory_space<vmem>>, %arg11: memref<512x128xbf16, #tpu.memory_space<vmem>>, %arg12: memref<1x128xf32, #tpu.memory_space<vmem>>, %arg13: memref<1x128xf32, #tpu.memory_space<vmem>>, %arg14: memref<1x128xf32, #tpu.memory_space<vmem>>, %arg15: memref<1x128x128xf32, #tpu.memory_space<vmem>>, %arg16: memref<128x384xbf16, #tpu.memory_space<vmem>>, %arg17: memref<128x128xbf16, #tpu.memory_space<vmem>>) attributes {dimension_semantics = [#tpu.dimension_semantics<parallel>], iteration_bounds = array<i64: 2>, scalar_prefetch = 0 : i64, scratch_operands = 2 : i64, tpu.core_type = #tpu.core_type<tc>, window_params = [{transform_indices = @transform_0, window_bounds = array<i64: 1, 128, 128>}, {transform_indices = @transform_1, window_bounds = array<i64: 1, 1, 128>}, {pipeline_mode = #tpu.pipeline_mode<synchronous>, transform_indices = @transform_2, window_bounds = array<i64: 128, 384>}, {pipeline_mode = #tpu.pipeline_mode<synchronous>, transform_indices = @transform_3, window_bounds = array<i64: 1, 384>}, {pipeline_mode = #tpu.pipeline_mode<synchronous>, transform_indices = @transform_4, window_bounds = array<i64: 128, 128>}, {pipeline_mode = #tpu.pipeline_mode<synchronous>, transform_indices = @transform_5, window_bounds = array<i64: 1, 128>}, {pipeline_mode = #tpu.pipeline_mode<synchronous>, transform_indices = @transform_6, window_bounds = array<i64: 1, 128>}, {pipeline_mode = #tpu.pipeline_mode<synchronous>, transform_indices = @transform_7, window_bounds = array<i64: 1, 128>}, {pipeline_mode = #tpu.pipeline_mode<synchronous>, transform_indices = @transform_8, window_bounds = array<i64: 128, 512>}, {pipeline_mode = #tpu.pipeline_mode<synchronous>, transform_indices = @transform_9, window_bounds = array<i64: 1, 512>}, {pipeline_mode = #tpu.pipeline_mode<synchronous>, transform_indices = @transform_10, window_bounds = array<i64: 512, 128>}, {pipeline_mode = #tpu.pipeline_mode<synchronous>, transform_indices = @transform_11, window_bounds = array<i64: 1, 128>}, {pipeline_mode = #tpu.pipeline_mode<synchronous>, transform_indices = @transform_12, window_bounds = array<i64: 1, 128>}, {pipeline_mode = #tpu.pipeline_mode<synchronous>, transform_indices = @transform_13, window_bounds = array<i64: 1, 128>}, {transform_indices = @transform_14, window_bounds = array<i64: 1, 128, 128>}]} {
    %c0 = arith.constant 0 : index
    %c0_0 = arith.constant 0 : index
    %c0_1 = arith.constant 0 : index
    %0 = vector.load %arg1[%c0, %c0_0, %c0_1] : memref<1x128x128xf32, #tpu.memory_space<vmem>>, vector<1x128x128xf32>
    %1 = vector.shape_cast %0 : vector<1x128x128xf32> to vector<128x128xf32>
    %2 = arith.truncf %1 : vector<128x128xf32> to vector<128x128xbf16>
    %c0_2 = arith.constant 0 : index
    %c0_3 = arith.constant 0 : index
    %3 = vector.load %arg3[%c0_2, %c0_3] : memref<128x384xbf16, #tpu.memory_space<vmem>>, vector<128x384xbf16>
    %cst = arith.constant dense<0.000000e+00> : vector<128x384xf32>
    %4 = tpu.matmul %2, %3, %cst {dimension_numbers = #tpu.dot_dimension_numbers<[1], [0], [0], [1], [0, 0, 1, 1], [], []>} : vector<128x128xbf16>, vector<128x384xbf16>, vector<128x384xf32> -> vector<128x384xf32>
    %c0_4 = arith.constant 0 : index
    %c0_5 = arith.constant 0 : index
    %5 = vector.load %arg4[%c0_4, %c0_5] : memref<1x384xf32, #tpu.memory_space<vmem>>, vector<1x384xf32>
    %6 = vector.broadcast %5 : vector<1x384xf32> to vector<128x384xf32>
    %7 = arith.addf %4, %6 : vector<128x384xf32>
    %8 = arith.truncf %7 : vector<128x384xf32> to vector<128x384xbf16>
    %c0_6 = arith.constant 0 : index
    %c0_7 = arith.constant 0 : index
    %9 = vector.load %arg16[%c0_6, %c0_7] : memref<128x384xbf16, #tpu.memory_space<vmem>>, vector<128x384xbf16>
    tpu.vector_store %arg16[%c0_6, %c0_7], %8 {strides = array<i32>} : memref<128x384xbf16, #tpu.memory_space<vmem>>, vector<128x384xbf16>,
    %c0_8 = arith.constant 0 : index
    %c0_9 = arith.constant 0 : index
    %c0_10 = arith.constant 0 : index
    %10 = vector.load %arg2[%c0_8, %c0_9, %c0_10] : memref<1x1x128xf32, #tpu.memory_space<vmem>>, vector<1x1x128xf32>
    %11 = vector.shape_cast %10 : vector<1x1x128xf32> to vector<1x128xf32>
    %12 = vector.shape_cast %11 : vector<1x128xf32> to vector<1x128xf32>
    %13 = vector.broadcast %12 : vector<1x128xf32> to vector<128x128xf32>
    %c0_11 = arith.constant 0 : index
    %c0_12 = arith.constant 0 : index
    %14 = vector.load %arg16[%c0_11, %c0_12] : memref<128x384xbf16, #tpu.memory_space<vmem>>, vector<128x32xbf16>
    %c0_13 = arith.constant 0 : index
    %c128 = arith.constant 128 : index
    %15 = vector.load %arg16[%c0_13, %c128] : memref<128x384xbf16, #tpu.memory_space<vmem>>, vector<128x32xbf16>
    %c0_14 = arith.constant 0 : index
    %c256 = arith.constant 256 : index
    %16 = vector.load %arg16[%c0_14, %c256] : memref<128x384xbf16, #tpu.memory_space<vmem>>, vector<128x32xbf16>
    %cst_15 = arith.constant dense<0.000000e+00> : vector<128x128xf32>
    %17 = tpu.matmul %14, %15, %cst_15 {dimension_numbers = #tpu.dot_dimension_numbers<[1], [1], [0], [0], [0, 0, 1, 0], [], []>} : vector<128x32xbf16>, vector<128x32xbf16>, vector<128x128xf32> -> vector<128x128xf32>
    %18 = arith.addf %17, %13 : vector<128x128xf32>
    %cst_16 = arith.constant dense<0xFF800000> : vector<128xf32>
    %19 = vector.multi_reduction <maximumf>, %18, %cst_16 [1] : vector<128x128xf32> to vector<128xf32>
    %20 = vector.shape_cast %19 : vector<128xf32> to vector<128x1xf32>
    %21 = vector.broadcast %20 : vector<128x1xf32> to vector<128x128xf32>
    %22 = arith.subf %18, %21 : vector<128x128xf32>
    %23 = math.exp %22 : vector<128x128xf32>
    %cst_17 = arith.constant dense<0.000000e+00> : vector<128xf32>
    %24 = vector.multi_reduction <add>, %23, %cst_17 [1] : vector<128x128xf32> to vector<128xf32>
    %25 = vector.shape_cast %24 : vector<128xf32> to vector<128x1xf32>
    %26 = arith.truncf %23 : vector<128x128xf32> to vector<128x128xbf16>
    %cst_18 = arith.constant dense<0.000000e+00> : vector<128x32xf32>
    %27 = tpu.matmul %26, %16, %cst_18 {dimension_numbers = #tpu.dot_dimension_numbers<[1], [0], [0], [1], [0, 0, 1, 1], [], []>} : vector<128x128xbf16>, vector<128x32xbf16>, vector<128x32xf32> -> vector<128x32xf32>
    %28 = tpu.reciprocal %25 {approx = true} : vector<128x1xf32> -> vector<128x1xf32>
    %29 = vector.broadcast %28 : vector<128x1xf32> to vector<128x32xf32>
    %30 = arith.mulf %27, %29 : vector<128x32xf32>
    %31 = arith.truncf %30 : vector<128x32xf32> to vector<128x32xbf16>
    %c0_19 = arith.constant 0 : index
    %c0_20 = arith.constant 0 : index
    %32 = vector.load %arg17[%c0_19, %c0_20] : memref<128x128xbf16, #tpu.memory_space<vmem>>, vector<128x32xbf16>
    tpu.vector_store %arg17[%c0_19, %c0_20], %31 {strides = array<i32>} : memref<128x128xbf16, #tpu.memory_space<vmem>>, vector<128x32xbf16>,
    %c0_21 = arith.constant 0 : index
    %c32 = arith.constant 32 : index
    %33 = vector.load %arg16[%c0_21, %c32] : memref<128x384xbf16, #tpu.memory_space<vmem>>, vector<128x32xbf16>
    %c0_22 = arith.constant 0 : index
    %c160 = arith.constant 160 : index
    %34 = vector.load %arg16[%c0_22, %c160] : memref<128x384xbf16, #tpu.memory_space<vmem>>, vector<128x32xbf16>
    %c0_23 = arith.constant 0 : index
    %c288 = arith.constant 288 : index
    %35 = vector.load %arg16[%c0_23, %c288] : memref<128x384xbf16, #tpu.memory_space<vmem>>, vector<128x32xbf16>
    %cst_24 = arith.constant dense<0.000000e+00> : vector<128x128xf32>
    %36 = tpu.matmul %33, %34, %cst_24 {dimension_numbers = #tpu.dot_dimension_numbers<[1], [1], [0], [0], [0, 0, 1, 0], [], []>} : vector<128x32xbf16>, vector<128x32xbf16>, vector<128x128xf32> -> vector<128x128xf32>
    %37 = arith.addf %36, %13 : vector<128x128xf32>
    %cst_25 = arith.constant dense<0xFF800000> : vector<128xf32>
    %38 = vector.multi_reduction <maximumf>, %37, %cst_25 [1] : vector<128x128xf32> to vector<128xf32>
    %39 = vector.shape_cast %38 : vector<128xf32> to vector<128x1xf32>
    %40 = vector.broadcast %39 : vector<128x1xf32> to vector<128x128xf32>
    %41 = arith.subf %37, %40 : vector<128x128xf32>
    %42 = math.exp %41 : vector<128x128xf32>
    %cst_26 = arith.constant dense<0.000000e+00> : vector<128xf32>
    %43 = vector.multi_reduction <add>, %42, %cst_26 [1] : vector<128x128xf32> to vector<128xf32>
    %44 = vector.shape_cast %43 : vector<128xf32> to vector<128x1xf32>
    %45 = arith.truncf %42 : vector<128x128xf32> to vector<128x128xbf16>
    %cst_27 = arith.constant dense<0.000000e+00> : vector<128x32xf32>
    %46 = tpu.matmul %45, %35, %cst_27 {dimension_numbers = #tpu.dot_dimension_numbers<[1], [0], [0], [1], [0, 0, 1, 1], [], []>} : vector<128x128xbf16>, vector<128x32xbf16>, vector<128x32xf32> -> vector<128x32xf32>
    %47 = tpu.reciprocal %44 {approx = true} : vector<128x1xf32> -> vector<128x1xf32>
    %48 = vector.broadcast %47 : vector<128x1xf32> to vector<128x32xf32>
    %49 = arith.mulf %46, %48 : vector<128x32xf32>
    %50 = arith.truncf %49 : vector<128x32xf32> to vector<128x32xbf16>
    %c0_28 = arith.constant 0 : index
    %c32_29 = arith.constant 32 : index
    %51 = vector.load %arg17[%c0_28, %c32_29] : memref<128x128xbf16, #tpu.memory_space<vmem>>, vector<128x32xbf16>
    tpu.vector_store %arg17[%c0_28, %c32_29], %50 {strides = array<i32>} : memref<128x128xbf16, #tpu.memory_space<vmem>>, vector<128x32xbf16>,
    %c0_30 = arith.constant 0 : index
    %c64 = arith.constant 64 : index
    %52 = vector.load %arg16[%c0_30, %c64] : memref<128x384xbf16, #tpu.memory_space<vmem>>, vector<128x32xbf16>
    %c0_31 = arith.constant 0 : index
    %c192 = arith.constant 192 : index
    %53 = vector.load %arg16[%c0_31, %c192] : memref<128x384xbf16, #tpu.memory_space<vmem>>, vector<128x32xbf16>
    %c0_32 = arith.constant 0 : index
    %c320 = arith.constant 320 : index
    %54 = vector.load %arg16[%c0_32, %c320] : memref<128x384xbf16, #tpu.memory_space<vmem>>, vector<128x32xbf16>
    %cst_33 = arith.constant dense<0.000000e+00> : vector<128x128xf32>
    %55 = tpu.matmul %52, %53, %cst_33 {dimension_numbers = #tpu.dot_dimension_numbers<[1], [1], [0], [0], [0, 0, 1, 0], [], []>} : vector<128x32xbf16>, vector<128x32xbf16>, vector<128x128xf32> -> vector<128x128xf32>
    %56 = arith.addf %55, %13 : vector<128x128xf32>
    %cst_34 = arith.constant dense<0xFF800000> : vector<128xf32>
    %57 = vector.multi_reduction <maximumf>, %56, %cst_34 [1] : vector<128x128xf32> to vector<128xf32>
    %58 = vector.shape_cast %57 : vector<128xf32> to vector<128x1xf32>
    %59 = vector.broadcast %58 : vector<128x1xf32> to vector<128x128xf32>
    %60 = arith.subf %56, %59 : vector<128x128xf32>
    %61 = math.exp %60 : vector<128x128xf32>
    %cst_35 = arith.constant dense<0.000000e+00> : vector<128xf32>
    %62 = vector.multi_reduction <add>, %61, %cst_35 [1] : vector<128x128xf32> to vector<128xf32>
    %63 = vector.shape_cast %62 : vector<128xf32> to vector<128x1xf32>
    %64 = arith.truncf %61 : vector<128x128xf32> to vector<128x128xbf16>
    %cst_36 = arith.constant dense<0.000000e+00> : vector<128x32xf32>
    %65 = tpu.matmul %64, %54, %cst_36 {dimension_numbers = #tpu.dot_dimension_numbers<[1], [0], [0], [1], [0, 0, 1, 1], [], []>} : vector<128x128xbf16>, vector<128x32xbf16>, vector<128x32xf32> -> vector<128x32xf32>
    %66 = tpu.reciprocal %63 {approx = true} : vector<128x1xf32> -> vector<128x1xf32>
    %67 = vector.broadcast %66 : vector<128x1xf32> to vector<128x32xf32>
    %68 = arith.mulf %65, %67 : vector<128x32xf32>
    %69 = arith.truncf %68 : vector<128x32xf32> to vector<128x32xbf16>
    %c0_37 = arith.constant 0 : index
    %c64_38 = arith.constant 64 : index
    %70 = vector.load %arg17[%c0_37, %c64_38] : memref<128x128xbf16, #tpu.memory_space<vmem>>, vector<128x32xbf16>
    tpu.vector_store %arg17[%c0_37, %c64_38], %69 {strides = array<i32>} : memref<128x128xbf16, #tpu.memory_space<vmem>>, vector<128x32xbf16>,
    %c0_39 = arith.constant 0 : index
    %c96 = arith.constant 96 : index
    %71 = vector.load %arg16[%c0_39, %c96] : memref<128x384xbf16, #tpu.memory_space<vmem>>, vector<128x32xbf16>
    %c0_40 = arith.constant 0 : index
    %c224 = arith.constant 224 : index
    %72 = vector.load %arg16[%c0_40, %c224] : memref<128x384xbf16, #tpu.memory_space<vmem>>, vector<128x32xbf16>
    %c0_41 = arith.constant 0 : index
    %c352 = arith.constant 352 : index
    %73 = vector.load %arg16[%c0_41, %c352] : memref<128x384xbf16, #tpu.memory_space<vmem>>, vector<128x32xbf16>
    %cst_42 = arith.constant dense<0.000000e+00> : vector<128x128xf32>
    %74 = tpu.matmul %71, %72, %cst_42 {dimension_numbers = #tpu.dot_dimension_numbers<[1], [1], [0], [0], [0, 0, 1, 0], [], []>} : vector<128x32xbf16>, vector<128x32xbf16>, vector<128x128xf32> -> vector<128x128xf32>
    %75 = arith.addf %74, %13 : vector<128x128xf32>
    %cst_43 = arith.constant dense<0xFF800000> : vector<128xf32>
    %76 = vector.multi_reduction <maximumf>, %75, %cst_43 [1] : vector<128x128xf32> to vector<128xf32>
    %77 = vector.shape_cast %76 : vector<128xf32> to vector<128x1xf32>
    %78 = vector.broadcast %77 : vector<128x1xf32> to vector<128x128xf32>
    %79 = arith.subf %75, %78 : vector<128x128xf32>
    %80 = math.exp %79 : vector<128x128xf32>
    %cst_44 = arith.constant dense<0.000000e+00> : vector<128xf32>
    %81 = vector.multi_reduction <add>, %80, %cst_44 [1] : vector<128x128xf32> to vector<128xf32>
    %82 = vector.shape_cast %81 : vector<128xf32> to vector<128x1xf32>
    %83 = arith.truncf %80 : vector<128x128xf32> to vector<128x128xbf16>
    %cst_45 = arith.constant dense<0.000000e+00> : vector<128x32xf32>
    %84 = tpu.matmul %83, %73, %cst_45 {dimension_numbers = #tpu.dot_dimension_numbers<[1], [0], [0], [1], [0, 0, 1, 1], [], []>} : vector<128x128xbf16>, vector<128x32xbf16>, vector<128x32xf32> -> vector<128x32xf32>
    %85 = tpu.reciprocal %82 {approx = true} : vector<128x1xf32> -> vector<128x1xf32>
    %86 = vector.broadcast %85 : vector<128x1xf32> to vector<128x32xf32>
    %87 = arith.mulf %84, %86 : vector<128x32xf32>
    %88 = arith.truncf %87 : vector<128x32xf32> to vector<128x32xbf16>
    %c0_46 = arith.constant 0 : index
    %c96_47 = arith.constant 96 : index
    %89 = vector.load %arg17[%c0_46, %c96_47] : memref<128x128xbf16, #tpu.memory_space<vmem>>, vector<128x32xbf16>
    tpu.vector_store %arg17[%c0_46, %c96_47], %88 {strides = array<i32>} : memref<128x128xbf16, #tpu.memory_space<vmem>>, vector<128x32xbf16>,
    %c0_48 = arith.constant 0 : index
    %c0_49 = arith.constant 0 : index
    %90 = vector.load %arg17[%c0_48, %c0_49] : memref<128x128xbf16, #tpu.memory_space<vmem>>, vector<128x128xbf16>
    %c0_50 = arith.constant 0 : index
    %c0_51 = arith.constant 0 : index
    %91 = vector.load %arg5[%c0_50, %c0_51] : memref<128x128xbf16, #tpu.memory_space<vmem>>, vector<128x128xbf16>
    %cst_52 = arith.constant dense<0.000000e+00> : vector<128x128xf32>
    %92 = tpu.matmul %90, %91, %cst_52 {dimension_numbers = #tpu.dot_dimension_numbers<[1], [0], [0], [1], [0, 0, 1, 1], [], []>} : vector<128x128xbf16>, vector<128x128xbf16>, vector<128x128xf32> -> vector<128x128xf32>
    %c0_53 = arith.constant 0 : index
    %c0_54 = arith.constant 0 : index
    %93 = vector.load %arg6[%c0_53, %c0_54] : memref<1x128xf32, #tpu.memory_space<vmem>>, vector<1x128xf32>
    %94 = vector.broadcast %93 : vector<1x128xf32> to vector<128x128xf32>
    %95 = arith.addf %92, %94 : vector<128x128xf32>
    %c0_55 = arith.constant 0 : index
    %c0_56 = arith.constant 0 : index
    %c0_57 = arith.constant 0 : index
    %96 = vector.load %arg1[%c0_55, %c0_56, %c0_57] : memref<1x128x128xf32, #tpu.memory_space<vmem>>, vector<1x128x128xf32>
    %97 = vector.shape_cast %96 : vector<1x128x128xf32> to vector<128x128xf32>
    %98 = arith.addf %95, %97 : vector<128x128xf32>
    %c0_58 = arith.constant 0 : index
    %c0_59 = arith.constant 0 : index
    %99 = vector.load %arg7[%c0_58, %c0_59] : memref<1x128xf32, #tpu.memory_space<vmem>>, vector<1x128xf32>
    %c0_60 = arith.constant 0 : index
    %c0_61 = arith.constant 0 : index
    %100 = vector.load %arg8[%c0_60, %c0_61] : memref<1x128xf32, #tpu.memory_space<vmem>>, vector<1x128xf32>
    %cst_62 = arith.constant dense<0.000000e+00> : vector<128xf32>
    %101 = vector.multi_reduction <add>, %98, %cst_62 [1] : vector<128x128xf32> to vector<128xf32>
    %102 = vector.shape_cast %101 : vector<128xf32> to vector<128x1xf32>
    %cst_63 = arith.constant 1.280000e+02 : f32
    %103 = vector.broadcast %cst_63 : f32 to vector<128x1xf32>
    %104 = arith.divf %102, %103 : vector<128x1xf32>
    %105 = vector.broadcast %104 : vector<128x1xf32> to vector<128x128xf32>
    %106 = arith.subf %98, %105 : vector<128x128xf32>
    %107 = arith.mulf %106, %106 : vector<128x128xf32>
    %cst_64 = arith.constant dense<0.000000e+00> : vector<128xf32>
    %108 = vector.multi_reduction <add>, %107, %cst_64 [1] : vector<128x128xf32> to vector<128xf32>
    %109 = vector.shape_cast %108 : vector<128xf32> to vector<128x1xf32>
    %cst_65 = arith.constant 1.280000e+02 : f32
    %110 = vector.broadcast %cst_65 : f32 to vector<128x1xf32>
    %111 = arith.divf %109, %110 : vector<128x1xf32>
    %112 = vector.broadcast %104 : vector<128x1xf32> to vector<128x128xf32>
    %113 = arith.subf %98, %112 : vector<128x128xf32>
    %cst_66 = arith.constant 9.99999996E-13 : f32
    %114 = vector.broadcast %cst_66 : f32 to vector<128x1xf32>
    %115 = arith.addf %111, %114 : vector<128x1xf32>
    %116 = math.rsqrt %115 : vector<128x1xf32>
    %117 = vector.broadcast %116 : vector<128x1xf32> to vector<128x128xf32>
    %118 = arith.mulf %113, %117 : vector<128x128xf32>
    %119 = vector.broadcast %99 : vector<1x128xf32> to vector<128x128xf32>
    %120 = arith.mulf %118, %119 : vector<128x128xf32>
    %121 = vector.broadcast %100 : vector<1x128xf32> to vector<128x128xf32>
    %122 = arith.addf %120, %121 : vector<128x128xf32>
    %123 = arith.truncf %122 : vector<128x128xf32> to vector<128x128xbf16>
    %c0_67 = arith.constant 0 : index
    %c0_68 = arith.constant 0 : index
    %124 = vector.load %arg9[%c0_67, %c0_68] : memref<128x512xbf16, #tpu.memory_space<vmem>>, vector<128x512xbf16>
    %cst_69 = arith.constant dense<0.000000e+00> : vector<128x512xf32>
    %125 = tpu.matmul %123, %124, %cst_69 {dimension_numbers = #tpu.dot_dimension_numbers<[1], [0], [0], [1], [0, 0, 1, 1], [], []>} : vector<128x128xbf16>, vector<128x512xbf16>, vector<128x512xf32> -> vector<128x512xf32>
    %c0_70 = arith.constant 0 : index
    %c0_71 = arith.constant 0 : index
    %126 = vector.load %arg10[%c0_70, %c0_71] : memref<1x512xf32, #tpu.memory_space<vmem>>, vector<1x512xf32>
    %127 = vector.broadcast %126 : vector<1x512xf32> to vector<128x512xf32>
    %128 = arith.addf %125, %127 : vector<128x512xf32>
    %cst_72 = arith.constant 5.000000e-01 : f32
    %129 = vector.broadcast %cst_72 : f32 to vector<128x512xf32>
    %130 = arith.mulf %129, %128 : vector<128x512xf32>
    %cst_73 = arith.constant 4.471500e-02 : f32
    %131 = vector.broadcast %cst_73 : f32 to vector<128x512xf32>
    %132 = arith.mulf %131, %128 : vector<128x512xf32>
    %133 = arith.mulf %132, %128 : vector<128x512xf32>
    %134 = arith.mulf %133, %128 : vector<128x512xf32>
    %135 = arith.addf %128, %134 : vector<128x512xf32>
    %cst_74 = arith.constant 0.797884583 : f32
    %136 = vector.broadcast %cst_74 : f32 to vector<128x512xf32>
    %137 = arith.mulf %136, %135 : vector<128x512xf32>
    %138 = math.tanh %137 : vector<128x512xf32>
    %cst_75 = arith.constant 1.000000e+00 : f32
    %139 = vector.broadcast %cst_75 : f32 to vector<128x512xf32>
    %140 = arith.addf %139, %138 : vector<128x512xf32>
    %141 = arith.mulf %130, %140 : vector<128x512xf32>
    %142 = arith.truncf %141 : vector<128x512xf32> to vector<128x512xbf16>
    %c0_76 = arith.constant 0 : index
    %c0_77 = arith.constant 0 : index
    %143 = vector.load %arg11[%c0_76, %c0_77] : memref<512x128xbf16, #tpu.memory_space<vmem>>, vector<512x128xbf16>
    %cst_78 = arith.constant dense<0.000000e+00> : vector<128x128xf32>
    %144 = tpu.matmul %142, %143, %cst_78 {dimension_numbers = #tpu.dot_dimension_numbers<[1], [0], [0], [1], [0, 0, 1, 1], [], []>} : vector<128x512xbf16>, vector<512x128xbf16>, vector<128x128xf32> -> vector<128x128xf32>
    %c0_79 = arith.constant 0 : index
    %c0_80 = arith.constant 0 : index
    %145 = vector.load %arg12[%c0_79, %c0_80] : memref<1x128xf32, #tpu.memory_space<vmem>>, vector<1x128xf32>
    %146 = vector.broadcast %145 : vector<1x128xf32> to vector<128x128xf32>
    %147 = arith.addf %144, %146 : vector<128x128xf32>
    %148 = arith.addf %147, %122 : vector<128x128xf32>
    %c0_81 = arith.constant 0 : index
    %c0_82 = arith.constant 0 : index
    %149 = vector.load %arg13[%c0_81, %c0_82] : memref<1x128xf32, #tpu.memory_space<vmem>>, vector<1x128xf32>
    %c0_83 = arith.constant 0 : index
    %c0_84 = arith.constant 0 : index
    %150 = vector.load %arg14[%c0_83, %c0_84] : memref<1x128xf32, #tpu.memory_space<vmem>>, vector<1x128xf32>
    %cst_85 = arith.constant dense<0.000000e+00> : vector<128xf32>
    %151 = vector.multi_reduction <add>, %148, %cst_85 [1] : vector<128x128xf32> to vector<128xf32>
    %152 = vector.shape_cast %151 : vector<128xf32> to vector<128x1xf32>
    %cst_86 = arith.constant 1.280000e+02 : f32
    %153 = vector.broadcast %cst_86 : f32 to vector<128x1xf32>
    %154 = arith.divf %152, %153 : vector<128x1xf32>
    %155 = vector.broadcast %154 : vector<128x1xf32> to vector<128x128xf32>
    %156 = arith.subf %148, %155 : vector<128x128xf32>
    %157 = arith.mulf %156, %156 : vector<128x128xf32>
    %cst_87 = arith.constant dense<0.000000e+00> : vector<128xf32>
    %158 = vector.multi_reduction <add>, %157, %cst_87 [1] : vector<128x128xf32> to vector<128xf32>
    %159 = vector.shape_cast %158 : vector<128xf32> to vector<128x1xf32>
    %cst_88 = arith.constant 1.280000e+02 : f32
    %160 = vector.broadcast %cst_88 : f32 to vector<128x1xf32>
    %161 = arith.divf %159, %160 : vector<128x1xf32>
    %162 = vector.broadcast %154 : vector<128x1xf32> to vector<128x128xf32>
    %163 = arith.subf %148, %162 : vector<128x128xf32>
    %cst_89 = arith.constant 9.99999996E-13 : f32
    %164 = vector.broadcast %cst_89 : f32 to vector<128x1xf32>
    %165 = arith.addf %161, %164 : vector<128x1xf32>
    %166 = math.rsqrt %165 : vector<128x1xf32>
    %167 = vector.broadcast %166 : vector<128x1xf32> to vector<128x128xf32>
    %168 = arith.mulf %163, %167 : vector<128x128xf32>
    %169 = vector.broadcast %149 : vector<1x128xf32> to vector<128x128xf32>
    %170 = arith.mulf %168, %169 : vector<128x128xf32>
    %171 = vector.broadcast %150 : vector<1x128xf32> to vector<128x128xf32>
    %172 = arith.addf %170, %171 : vector<128x128xf32>
    %c0_90 = arith.constant 0 : index
    %c0_91 = arith.constant 0 : index
    %c0_92 = arith.constant 0 : index
    %173 = vector.load %arg15[%c0_90, %c0_91, %c0_92] : memref<1x128x128xf32, #tpu.memory_space<vmem>>, vector<1x128x128xf32>
    %174 = vector.shape_cast %173 : vector<1x128x128xf32> to vector<128x128xf32>
    %175 = vector.shape_cast %172 : vector<128x128xf32> to vector<1x128x128xf32>
    tpu.vector_store %arg15[%c0_90, %c0_91, %c0_92], %175 {strides = array<i32>} : memref<1x128x128xf32, #tpu.memory_space<vmem>>, vector<1x128x128xf32>,
    return
  }
  func.func @transform_0(%arg0: i32) -> (i32, i32, i32) {
    %c0_i32 = arith.constant 0 : i32
    %c0_i32_0 = arith.constant 0 : i32
    %c0_i32_1 = arith.constant 0 : i32
    return %arg0, %c0_i32, %c0_i32_0 : i32, i32, i32
  }
  func.func @transform_1(%arg0: i32) -> (i32, i32, i32) {
    %c0_i32 = arith.constant 0 : i32
    %c0_i32_0 = arith.constant 0 : i32
    %c0_i32_1 = arith.constant 0 : i32
    return %arg0, %c0_i32, %c0_i32_0 : i32, i32, i32
  }
  func.func @transform_2(%arg0: i32) -> (i32, i32) {
    %c0_i32 = arith.constant 0 : i32
    %c0_i32_0 = arith.constant 0 : i32
    %c0_i32_1 = arith.constant 0 : i32
    return %c0_i32, %c0_i32_0 : i32, i32
  }
  func.func @transform_3(%arg0: i32) -> (i32, i32) {
    %c0_i32 = arith.constant 0 : i32
    %c0_i32_0 = arith.constant 0 : i32
    %c0_i32_1 = arith.constant 0 : i32
    return %c0_i32, %c0_i32_0 : i32, i32
  }
  func.func @transform_4(%arg0: i32) -> (i32, i32) {
    %c0_i32 = arith.constant 0 : i32
    %c0_i32_0 = arith.constant 0 : i32
    %c0_i32_1 = arith.constant 0 : i32
    return %c0_i32, %c0_i32_0 : i32, i32
  }
  func.func @transform_5(%arg0: i32) -> (i32, i32) {
    %c0_i32 = arith.constant 0 : i32
    %c0_i32_0 = arith.constant 0 : i32
    %c0_i32_1 = arith.constant 0 : i32
    return %c0_i32, %c0_i32_0 : i32, i32
  }
  func.func @transform_6(%arg0: i32) -> (i32, i32) {
    %c0_i32 = arith.constant 0 : i32
    %c0_i32_0 = arith.constant 0 : i32
    %c0_i32_1 = arith.constant 0 : i32
    return %c0_i32, %c0_i32_0 : i32, i32
  }
  func.func @transform_7(%arg0: i32) -> (i32, i32) {
    %c0_i32 = arith.constant 0 : i32
    %c0_i32_0 = arith.constant 0 : i32
    %c0_i32_1 = arith.constant 0 : i32
    return %c0_i32, %c0_i32_0 : i32, i32
  }
  func.func @transform_8(%arg0: i32) -> (i32, i32) {
    %c0_i32 = arith.constant 0 : i32
    %c0_i32_0 = arith.constant 0 : i32
    %c0_i32_1 = arith.constant 0 : i32
    return %c0_i32, %c0_i32_0 : i32, i32
  }
  func.func @transform_9(%arg0: i32) -> (i32, i32) {
    %c0_i32 = arith.constant 0 : i32
    %c0_i32_0 = arith.constant 0 : i32
    %c0_i32_1 = arith.constant 0 : i32
    return %c0_i32, %c0_i32_0 : i32, i32
  }
  func.func @transform_10(%arg0: i32) -> (i32, i32) {
    %c0_i32 = arith.constant 0 : i32
    %c0_i32_0 = arith.constant 0 : i32
    %c0_i32_1 = arith.constant 0 : i32
    return %c0_i32, %c0_i32_0 : i32, i32
  }
  func.func @transform_11(%arg0: i32) -> (i32, i32) {
    %c0_i32 = arith.constant 0 : i32
    %c0_i32_0 = arith.constant 0 : i32
    %c0_i32_1 = arith.constant 0 : i32
    return %c0_i32, %c0_i32_0 : i32, i32
  }
  func.func @transform_12(%arg0: i32) -> (i32, i32) {
    %c0_i32 = arith.constant 0 : i32
    %c0_i32_0 = arith.constant 0 : i32
    %c0_i32_1 = arith.constant 0 : i32
    return %c0_i32, %c0_i32_0 : i32, i32
  }
  func.func @transform_13(%arg0: i32) -> (i32, i32) {
    %c0_i32 = arith.constant 0 : i32
    %c0_i32_0 = arith.constant 0 : i32
    %c0_i32_1 = arith.constant 0 : i32
    return %c0_i32, %c0_i32_0 : i32, i32
  }
  func.func @transform_14(%arg0: i32) -> (i32, i32, i32) {
    %c0_i32 = arith.constant 0 : i32
    %c0_i32_0 = arith.constant 0 : i32
    %c0_i32_1 = arith.constant 0 : i32
    return %arg0, %c0_i32, %c0_i32_0 : i32, i32, i32
  }
}

</mosaic_0001>

<llo_original>
// kernel: tpu_custom_call.1
$region0: #{tpu_custom_call.1}
  #allocation0 [shape = 'u32[]', space=smem, size = 0x4, offset = 0x4, fixed_abs, tag = 'smem constant byte address 0x4 - core index']
  #allocation1 [shape = 'u32[144,128]{1,0:T(1,128)}', space=vmem, size = 0x12000, scoped, tag = 'internal scratch']
  #allocation2 [shape = 'bf16[128,384]{1,0:T(16,128)(2,1)}', space=vmem, size = 0x18000, scoped, tag = 'scratch operand']
  #allocation3 [shape = 'bf16[128,128]{1,0:T(16,128)(2,1)}', space=vmem, size = 0x8000, scoped, tag = 'scratch operand']
  %s0 = inlined_call_operand.hbm [shape: f32[2,128,128], index: 0, kind: input, shape index: {}]
  %s1 = inlined_call_operand.hbm [shape: f32[2,1,128], index: 1, kind: input, shape index: {}]
  %s2 = inlined_call_operand.hbm [shape: bf16[128,384], index: 2, kind: input, shape index: {}]
  %s3 = inlined_call_operand.vmem [shape: f32[1,384], index: 3, kind: input, shape index: {}]
  %s4 = inlined_call_operand.hbm [shape: bf16[128,128], index: 4, kind: input, shape index: {}]
  %s5 = inlined_call_operand.vmem [shape: f32[1,128], index: 5, kind: input, shape index: {}]
  %s6 = inlined_call_operand.vmem [shape: f32[1,128], index: 6, kind: input, shape index: {}]
  %s7 = inlined_call_operand.vmem [shape: f32[1,128], index: 7, kind: input, shape index: {}]
  %s8 = inlined_call_operand.hbm [shape: bf16[128,512], index: 8, kind: input, shape index: {}]
  %s9 = inlined_call_operand.vmem [shape: f32[1,512], index: 9, kind: input, shape index: {}]
  %s10 = inlined_call_operand.hbm [shape: bf16[512,128], index: 10, kind: input, shape index: {}]
  %s11 = inlined_call_operand.vmem [shape: f32[1,128], index: 11, kind: input, shape index: {}]
  %s12 = inlined_call_operand.vmem [shape: f32[1,128], index: 12, kind: input, shape index: {}]
  %s13 = inlined_call_operand.vmem [shape: f32[1,128], index: 13, kind: input, shape index: {}]
  %s14 = inlined_call_operand.hbm [shape: f32[2,128,128], index: 14, kind: output, shape index: {}]
  %s15 = sld [smem:[#allocation0]]
  $region113: #{tpu_custom_call.1} parent=0
    _
  %s17 = ssub.s32 1, %s15
  %s18 = scalar_select 0, %s17, %s15
  $region1: #{tpu_custom_call.1} parent=0
    #allocation4 [shape = 'u8[131072]{0}', space=vmem, size = 0x20000, scoped, tag = 'input window, operand 0']
    #allocation5 [shape = 's32[2]{0}', space=sflag, size = 0x8, scoped, tag = 'scoped memory for tpu_custom_call.1']
    #allocation6 [shape = 's32[2]{0}', space=sflag, size = 0x8, scoped, tag = 'scoped memory for tpu_custom_call.1']
    #allocation7 [shape = 'u8[1024]{0}', space=vmem, size = 0x400, scoped, tag = 'input window, operand 1']
    #allocation8 [shape = 's32[2]{0}', space=sflag, size = 0x8, scoped, tag = 'scoped memory for tpu_custom_call.1']
    #allocation9 [shape = 'u8[98304]{0}', space=vmem, size = 0x18000, scoped, tag = 'input window, operand 2, single buffered']
    #allocation10 [shape = 'u8[32768]{0}', space=vmem, size = 0x8000, scoped, tag = 'input window, operand 4, single buffered']
    #allocation11 [shape = 's32[1]{0}', space=sflag, size = 0x4, scoped, tag = 'scoped memory for tpu_custom_call.1']
    #allocation12 [shape = 'u8[131072]{0}', space=vmem, size = 0x20000, scoped, tag = 'input window, operand 8, single buffered']
    #allocation13 [shape = 'u8[131072]{0}', space=vmem, size = 0x20000, scoped, tag = 'input window, operand 10, single buffered']
    #allocation14 [shape = 's32[1]{0}', space=sflag, size = 0x4, scoped, tag = 'scoped memory for tpu_custom_call.1']
    #allocation15 [shape = 'u8[131072]{0}', space=vmem, size = 0x20000, scoped, tag = 'output window, operand 0']
    %19 = vsyncpa [#allocation5], 0
    %s20 = scalar_lea.sflag [#allocation5], 1
    %21 = vsyncpa %s20, 0
    %22 = vsyncpa [#allocation8], 0
    %s23 = scalar_lea.sflag [#allocation8], 1
    %24 = vsyncpa %s23, 0
    %25 = vsyncpa [#allocation11], 0
    %26 = vsyncpa [#allocation14], 0
    %27 = vsyncpa [#allocation6], 0
    %s28 = scalar_lea.sflag [#allocation6], 1
    %29 = vsyncpa %s28, 0
    loop: start=0, step=1, limit=4
    $region2: #{tpu_custom_call.1} parent=1 // loop_pre_header
      _
    $region3: #{tpu_custom_call.1} parent=1 // loop_header
      %s31 = sphi 0, %s35
      %p32 = scmp.ge.s32.totalorder %s31, 4
      %s41 = sphi 0, %s43
      %s44 = sphi 0, %s41
      %s45 = sphi 0, %s44
      %s61 = sphi 0, %s45
      %s67 = sphi 0, %s69
      %s70 = sphi 0, %s67
      %s71 = sphi 0, %s70
      %s87 = sphi 0, %s71
      %s91 = sphi 0, %s91
      %s93 = sphi 0, %s91
      %s94 = sphi 0, %s93
      %s108 = sphi 0, %s94
      %s112 = sphi 0, %s112
      %s114 = sphi 0, %s112
      %s115 = sphi 0, %s114
      %s129 = sphi 0, %s115
      %s133 = sphi 0, %s133
      %s135 = sphi 0, %s133
      %s136 = sphi 0, %s135
      %s150 = sphi 0, %s136
      %s154 = sphi 0, %s154
      %s156 = sphi 0, %s154
      %s157 = sphi 0, %s156
      %s171 = sphi 0, %s157
      %s175 = sphi 0, %s175
      %s177 = sphi 0, %s175
      %s178 = sphi 0, %s177
      %s192 = sphi 0, %s178
      %s196 = sphi 0, %s196
      %s198 = sphi 0, %s196
      %s199 = sphi 0, %s198
      %s213 = sphi 0, %s199
      %s217 = sphi 0, %s217
      %s219 = sphi 0, %s217
      %s220 = sphi 0, %s219
      %s234 = sphi 0, %s220
      %s238 = sphi 0, %s238
      %s240 = sphi 0, %s238
      %s241 = sphi 0, %s240
      %s255 = sphi 0, %s241
      %s259 = sphi 0, %s259
      %s261 = sphi 0, %s259
      %s262 = sphi 0, %s261
      %s276 = sphi 0, %s262
      %s280 = sphi 0, %s280
      %s282 = sphi 0, %s280
      %s283 = sphi 0, %s282
      %s297 = sphi 0, %s283
      %s301 = sphi 0, %s301
      %s303 = sphi 0, %s301
      %s304 = sphi 0, %s303
      %s318 = sphi 0, %s304
      %s322 = sphi 0, %s322
      %s324 = sphi 0, %s322
      %s325 = sphi 0, %s324
      %s339 = sphi 0, %s325
      %s345 = sphi 0, %s347
      %s348 = sphi 0, %s345
      %s349 = sphi 0, %s348
      %s365 = sphi 0, %s349
    $region4: #{tpu_custom_call.1} parent=1 // loop_header_branch
      %34 = sbr.rel (%p32) target = $region8
    $region5: #{tpu_custom_call.1} parent=1 // loop_body
      %s36 = ssub.s32 %s31, 1
      %s37 = ssub.s32 %s31, 2
      %s38 = sadd.s32 %s31, 1
      %s39 = ssub.s32 %s31, %s38
      %p40 = scmp.eq.s32.totalorder %s39, 0
      %s42 = sadd.s32 %s41, 1
      %s43 = scalar_select %p40, %s41, %s42
      %p46 = pneg %p40
      %p47 = scmp.eq.s32.totalorder %s31, 1
      %p48 = por %p46, %p47
      %p49 = scmp.ne.s32.totalorder %s41, %s44
      %p50 = scmp.eq.s32.totalorder %s31, 0
      %p51 = por %p49, %p50
      %p52 = scmp.ne.s32.totalorder %s41, %s44
      %p53 = scmp.eq.s32.totalorder %s36, 1
      %p54 = por %p52, %p53
      %p55 = scmp.ne.s32.totalorder %s44, %s45
      %p56 = scmp.eq.s32.totalorder %s36, 0
      %p57 = por %p55, %p56
      %p58 = scmp.ne.s32.totalorder %s44, %s45
      %p59 = scmp.eq.s32.totalorder %s37, 1
      %p60 = por %p58, %p59
      %p62 = scmp.ne.s32.totalorder %s45, %s61
      %p63 = scmp.eq.s32.totalorder %s37, 0
      %p64 = por %p62, %p63
      %s65 = ssub.s32 %s31, %s38
      %p66 = scmp.eq.s32.totalorder %s65, 0
      %s68 = sadd.s32 %s67, 1
      %s69 = scalar_select %p66, %s67, %s68
      %p72 = pneg %p66
      %p73 = scmp.eq.s32.totalorder %s31, 1
      %p74 = por %p72, %p73
      %p75 = scmp.ne.s32.totalorder %s67, %s70
      %p76 = scmp.eq.s32.totalorder %s31, 0
      %p77 = por %p75, %p76
      %p78 = scmp.ne.s32.totalorder %s67, %s70
      %p79 = scmp.eq.s32.totalorder %s36, 1
      %p80 = por %p78, %p79
      %p81 = scmp.ne.s32.totalorder %s70, %s71
      %p82 = scmp.eq.s32.totalorder %s36, 0
      %p83 = por %p81, %p82
      %p84 = scmp.ne.s32.totalorder %s70, %s71
      %p85 = scmp.eq.s32.totalorder %s37, 1
      %p86 = por %p84, %p85
      %p88 = scmp.ne.s32.totalorder %s71, %s87
      %p89 = scmp.eq.s32.totalorder %s37, 0
      %p90 = por %p88, %p89
      %s92 = sadd.s32 %s91, 1
      %p95 = scmp.eq.s32.totalorder %s31, 1
      %p96 = scmp.ne.s32.totalorder %s91, %s93
      %p97 = scmp.eq.s32.totalorder %s31, 0
      %p98 = por %p96, %p97
      %p99 = scmp.ne.s32.totalorder %s91, %s93
      %p100 = scmp.eq.s32.totalorder %s36, 1
      %p101 = por %p99, %p100
      %p102 = scmp.ne.s32.totalorder %s93, %s94
      %p103 = scmp.eq.s32.totalorder %s36, 0
      %p104 = por %p102, %p103
      %p105 = scmp.ne.s32.totalorder %s93, %s94
      %p106 = scmp.eq.s32.totalorder %s37, 1
      %p107 = por %p105, %p106
      %p109 = scmp.ne.s32.totalorder %s94, %s108
      %p110 = scmp.eq.s32.totalorder %s37, 0
      %p111 = por %p109, %p110
      %s113 = sadd.s32 %s112, 1
      %p116 = scmp.eq.s32.totalorder %s31, 1
      %p117 = scmp.ne.s32.totalorder %s112, %s114
      %p118 = scmp.eq.s32.totalorder %s31, 0
      %p119 = por %p117, %p118
      %p120 = scmp.ne.s32.totalorder %s112, %s114
      %p121 = scmp.eq.s32.totalorder %s36, 1
      %p122 = por %p120, %p121
      %p123 = scmp.ne.s32.totalorder %s114, %s115
      %p124 = scmp.eq.s32.totalorder %s36, 0
      %p125 = por %p123, %p124
      %p126 = scmp.ne.s32.totalorder %s114, %s115
      %p127 = scmp.eq.s32.totalorder %s37, 1
      %p128 = por %p126, %p127
      %p130 = scmp.ne.s32.totalorder %s115, %s129
      %p131 = scmp.eq.s32.totalorder %s37, 0
      %p132 = por %p130, %p131
      %s134 = sadd.s32 %s133, 1
      %p137 = scmp.eq.s32.totalorder %s31, 1
      %p138 = scmp.ne.s32.totalorder %s133, %s135
      %p139 = scmp.eq.s32.totalorder %s31, 0
      %p140 = por %p138, %p139
      %p141 = scmp.ne.s32.totalorder %s133, %s135
      %p142 = scmp.eq.s32.totalorder %s36, 1
      %p143 = por %p141, %p142
      %p144 = scmp.ne.s32.totalorder %s135, %s136
      %p145 = scmp.eq.s32.totalorder %s36, 0
      %p146 = por %p144, %p145
      %p147 = scmp.ne.s32.totalorder %s135, %s136
      %p148 = scmp.eq.s32.totalorder %s37, 1
      %p149 = por %p147, %p148
      %p151 = scmp.ne.s32.totalorder %s136, %s150
      %p152 = scmp.eq.s32.totalorder %s37, 0
      %p153 = por %p151, %p152
      %s155 = sadd.s32 %s154, 1
      %p158 = scmp.eq.s32.totalorder %s31, 1
      %p159 = scmp.ne.s32.totalorder %s154, %s156
      %p160 = scmp.eq.s32.totalorder %s31, 0
      %p161 = por %p159, %p160
      %p162 = scmp.ne.s32.totalorder %s154, %s156
      %p163 = scmp.eq.s32.totalorder %s36, 1
      %p164 = por %p162, %p163
      %p165 = scmp.ne.s32.totalorder %s156, %s157
      %p166 = scmp.eq.s32.totalorder %s36, 0
      %p167 = por %p165, %p166
      %p168 = scmp.ne.s32.totalorder %s156, %s157
      %p169 = scmp.eq.s32.totalorder %s37, 1
      %p170 = por %p168, %p169
      %p172 = scmp.ne.s32.totalorder %s157, %s171
      %p173 = scmp.eq.s32.totalorder %s37, 0
      %p174 = por %p172, %p173
      %s176 = sadd.s32 %s175, 1
      %p179 = scmp.eq.s32.totalorder %s31, 1
      %p180 = scmp.ne.s32.totalorder %s175, %s177
      %p181 = scmp.eq.s32.totalorder %s31, 0
      %p182 = por %p180, %p181
      %p183 = scmp.ne.s32.totalorder %s175, %s177
      %p184 = scmp.eq.s32.totalorder %s36, 1
      %p185 = por %p183, %p184
      %p186 = scmp.ne.s32.totalorder %s177, %s178
      %p187 = scmp.eq.s32.totalorder %s36, 0
      %p188 = por %p186, %p187
      %p189 = scmp.ne.s32.totalorder %s177, %s178
      %p190 = scmp.eq.s32.totalorder %s37, 1
      %p191 = por %p189, %p190
      %p193 = scmp.ne.s32.totalorder %s178, %s192
      %p194 = scmp.eq.s32.totalorder %s37, 0
      %p195 = por %p193, %p194
      %s197 = sadd.s32 %s196, 1
      %p200 = scmp.eq.s32.totalorder %s31, 1
      %p201 = scmp.ne.s32.totalorder %s196, %s198
      %p202 = scmp.eq.s32.totalorder %s31, 0
      %p203 = por %p201, %p202
      %p204 = scmp.ne.s32.totalorder %s196, %s198
      %p205 = scmp.eq.s32.totalorder %s36, 1
      %p206 = por %p204, %p205
      %p207 = scmp.ne.s32.totalorder %s198, %s199
      %p208 = scmp.eq.s32.totalorder %s36, 0
      %p209 = por %p207, %p208
      %p210 = scmp.ne.s32.totalorder %s198, %s199
      %p211 = scmp.eq.s32.totalorder %s37, 1
      %p212 = por %p210, %p211
      %p214 = scmp.ne.s32.totalorder %s199, %s213
      %p215 = scmp.eq.s32.totalorder %s37, 0
      %p216 = por %p214, %p215
      %s218 = sadd.s32 %s217, 1
      %p221 = scmp.eq.s32.totalorder %s31, 1
      %p222 = scmp.ne.s32.totalorder %s217, %s219
      %p223 = scmp.eq.s32.totalorder %s31, 0
      %p224 = por %p222, %p223
      %p225 = scmp.ne.s32.totalorder %s217, %s219
      %p226 = scmp.eq.s32.totalorder %s36, 1
      %p227 = por %p225, %p226
      %p228 = scmp.ne.s32.totalorder %s219, %s220
      %p229 = scmp.eq.s32.totalorder %s36, 0
      %p230 = por %p228, %p229
      %p231 = scmp.ne.s32.totalorder %s219, %s220
      %p232 = scmp.eq.s32.totalorder %s37, 1
      %p233 = por %p231, %p232
      %p235 = scmp.ne.s32.totalorder %s220, %s234
      %p236 = scmp.eq.s32.totalorder %s37, 0
      %p237 = por %p235, %p236
      %s239 = sadd.s32 %s238, 1
      %p242 = scmp.eq.s32.totalorder %s31, 1
      %p243 = scmp.ne.s32.totalorder %s238, %s240
      %p244 = scmp.eq.s32.totalorder %s31, 0
      %p245 = por %p243, %p244
      %p246 = scmp.ne.s32.totalorder %s238, %s240
      %p247 = scmp.eq.s32.totalorder %s36, 1
      %p248 = por %p246, %p247
      %p249 = scmp.ne.s32.totalorder %s240, %s241
      %p250 = scmp.eq.s32.totalorder %s36, 0
      %p251 = por %p249, %p250
      %p252 = scmp.ne.s32.totalorder %s240, %s241
      %p253 = scmp.eq.s32.totalorder %s37, 1
      %p254 = por %p252, %p253
      %p256 = scmp.ne.s32.totalorder %s241, %s255
      %p257 = scmp.eq.s32.totalorder %s37, 0
      %p258 = por %p256, %p257
      %s260 = sadd.s32 %s259, 1
      %p263 = scmp.eq.s32.totalorder %s31, 1
      %p264 = scmp.ne.s32.totalorder %s259, %s261
      %p265 = scmp.eq.s32.totalorder %s31, 0
      %p266 = por %p264, %p265
      %p267 = scmp.ne.s32.totalorder %s259, %s261
      %p268 = scmp.eq.s32.totalorder %s36, 1
      %p269 = por %p267, %p268
      %p270 = scmp.ne.s32.totalorder %s261, %s262
      %p271 = scmp.eq.s32.totalorder %s36, 0
      %p272 = por %p270, %p271
      %p273 = scmp.ne.s32.totalorder %s261, %s262
      %p274 = scmp.eq.s32.totalorder %s37, 1
      %p275 = por %p273, %p274
      %p277 = scmp.ne.s32.totalorder %s262, %s276
      %p278 = scmp.eq.s32.totalorder %s37, 0
      %p279 = por %p277, %p278
      %s281 = sadd.s32 %s280, 1
      %p284 = scmp.eq.s32.totalorder %s31, 1
      %p285 = scmp.ne.s32.totalorder %s280, %s282
      %p286 = scmp.eq.s32.totalorder %s31, 0
      %p287 = por %p285, %p286
      %p288 = scmp.ne.s32.totalorder %s280, %s282
      %p289 = scmp.eq.s32.totalorder %s36, 1
      %p290 = por %p288, %p289
      %p291 = scmp.ne.s32.totalorder %s282, %s283
      %p292 = scmp.eq.s32.totalorder %s36, 0
      %p293 = por %p291, %p292
      %p294 = scmp.ne.s32.totalorder %s282, %s283
      %p295 = scmp.eq.s32.totalorder %s37, 1
      %p296 = por %p294, %p295
      %p298 = scmp.ne.s32.totalorder %s283, %s297
      %p299 = scmp.eq.s32.totalorder %s37, 0
      %p300 = por %p298, %p299
      %s302 = sadd.s32 %s301, 1
      %p305 = scmp.eq.s32.totalorder %s31, 1
      %p306 = scmp.ne.s32.totalorder %s301, %s303
      %p307 = scmp.eq.s32.totalorder %s31, 0
      %p308 = por %p306, %p307
      %p309 = scmp.ne.s32.totalorder %s301, %s303
      %p310 = scmp.eq.s32.totalorder %s36, 1
      %p311 = por %p309, %p310
      %p312 = scmp.ne.s32.totalorder %s303, %s304
      %p313 = scmp.eq.s32.totalorder %s36, 0
      %p314 = por %p312, %p313
      %p315 = scmp.ne.s32.totalorder %s303, %s304
      %p316 = scmp.eq.s32.totalorder %s37, 1
      %p317 = por %p315, %p316
      %p319 = scmp.ne.s32.totalorder %s304, %s318
      %p320 = scmp.eq.s32.totalorder %s37, 0
      %p321 = por %p319, %p320
      %s323 = sadd.s32 %s322, 1
      %p326 = scmp.eq.s32.totalorder %s31, 1
      %p327 = scmp.ne.s32.totalorder %s322, %s324
      %p328 = scmp.eq.s32.totalorder %s31, 0
      %p329 = por %p327, %p328
      %p330 = scmp.ne.s32.totalorder %s322, %s324
      %p331 = scmp.eq.s32.totalorder %s36, 1
      %p332 = por %p330, %p331
      %p333 = scmp.ne.s32.totalorder %s324, %s325
      %p334 = scmp.eq.s32.totalorder %s36, 0
      %p335 = por %p333, %p334
      %p336 = scmp.ne.s32.totalorder %s324, %s325
      %p337 = scmp.eq.s32.totalorder %s37, 1
      %p338 = por %p336, %p337
      %p340 = scmp.ne.s32.totalorder %s325, %s339
      %p341 = scmp.eq.s32.totalorder %s37, 0
      %p342 = por %p340, %p341
      %s343 = ssub.s32 %s31, %s38
      %p344 = scmp.eq.s32.totalorder %s343, 0
      %s346 = sadd.s32 %s345, 1
      %s347 = scalar_select %p344, %s345, %s346
      %p350 = pneg %p344
      %p351 = scmp.eq.s32.totalorder %s31, 1
      %p352 = por %p350, %p351
      %p353 = scmp.ne.s32.totalorder %s345, %s348
      %p354 = scmp.eq.s32.totalorder %s31, 0
      %p355 = por %p353, %p354
      %p356 = scmp.ne.s32.totalorder %s345, %s348
      %p357 = scmp.eq.s32.totalorder %s36, 1
      %p358 = por %p356, %p357
      %p359 = scmp.ne.s32.totalorder %s348, %s349
      %p360 = scmp.eq.s32.totalorder %s36, 0
      %p361 = por %p359, %p360
      %p362 = scmp.ne.s32.totalorder %s348, %s349
      %p363 = scmp.eq.s32.totalorder %s37, 1
      %p364 = por %p362, %p363
      %p366 = scmp.ne.s32.totalorder %s349, %s365
      %p367 = scmp.eq.s32.totalorder %s37, 0
      %p368 = por %p366, %p367
      %p369 = scmp.le.s32.totalorder 1, %s31
      %p370 = scmp.lt.s32.totalorder %s31, 3
      %p371 = pnand %p369, %p370
      %p372 = pneg %p371
      // Predicated region
      $region9: #{tpu_custom_call.1} parent=5 // pred_check
        _
      $region10: #{tpu_custom_call.1} parent=5 // pred_check_branch
        %374 = sbr.rel (%p371) target = $region12
      $region11: #{tpu_custom_call.1} parent=5 // pred_region
        %s375 = ssub.s32 %s31, 1
        // Predicated region
        $region13: #{tpu_custom_call.1} parent=11 // pred_check
          %p376 = pneg %p104
        $region14: #{tpu_custom_call.1} parent=11 // pred_check_branch
          %378 = sbr.rel (%p376) target = $region16
        $region15: #{tpu_custom_call.1} parent=11 // pred_region
          %s380 = ssub.s32 3072, 3072
          %381 = vsyncadd [#allocation8], %s380
          %s382 = sshll.u32 [#allocation9], 4
          %s383 = int_to_ptr.vmem [resolvable:$true] %s382
          %388 = dma.hbm_to_vmem [thread:$0]  %s2, 3072, %s383, [#allocation8], 192, 192, 12
        $region16: #{tpu_custom_call.1} parent=11 // pred_fallthru
          _
        // Predicated region
        $region17: #{tpu_custom_call.1} parent=11 // pred_check
          %p389 = pneg %p125
        $region18: #{tpu_custom_call.1} parent=11 // pred_check_branch
          %391 = sbr.rel (%p389) target = $region20
        $region19: #{tpu_custom_call.1} parent=11 // pred_region
          _
        $region20: #{tpu_custom_call.1} parent=11 // pred_fallthru
          _
        // Predicated region
        $region21: #{tpu_custom_call.1} parent=11 // pred_check
          %p392 = pneg %p146
        $region22: #{tpu_custom_call.1} parent=11 // pred_check_branch
          %394 = sbr.rel (%p392) target = $region24
        $region23: #{tpu_custom_call.1} parent=11 // pred_region
          %s396 = ssub.s32 1024, 1024
          %397 = vsyncadd [#allocation11], %s396
          %s398 = sshll.u32 [#allocation10], 4
          %s399 = int_to_ptr.vmem [resolvable:$true] %s398
          %404 = dma.hbm_to_vmem [thread:$0]  %s4, 1024, %s399, [#allocation11], 64, 64, 4
        $region24: #{tpu_custom_call.1} parent=11 // pred_fallthru
          _
        // Predicated region
        $region25: #{tpu_custom_call.1} parent=11 // pred_check
          %p405 = pneg %p167
        $region26: #{tpu_custom_call.1} parent=11 // pred_check_branch
          %407 = sbr.rel (%p405) target = $region28
        $region27: #{tpu_custom_call.1} parent=11 // pred_region
          _
        $region28: #{tpu_custom_call.1} parent=11 // pred_fallthru
          _
        // Predicated region
        $region29: #{tpu_custom_call.1} parent=11 // pred_check
          %p408 = pneg %p188
        $region30: #{tpu_custom_call.1} parent=11 // pred_check_branch
          %410 = sbr.rel (%p408) target = $region32
        $region31: #{tpu_custom_call.1} parent=11 // pred_region
          _
        $region32: #{tpu_custom_call.1} parent=11 // pred_fallthru
          _
        // Predicated region
        $region33: #{tpu_custom_call.1} parent=11 // pred_check
          %p411 = pneg %p209
        $region34: #{tpu_custom_call.1} parent=11 // pred_check_branch
          %413 = sbr.rel (%p411) target = $region36
        $region35: #{tpu_custom_call.1} parent=11 // pred_region
          _
        $region36: #{tpu_custom_call.1} parent=11 // pred_fallthru
          _
        // Predicated region
        $region37: #{tpu_custom_call.1} parent=11 // pred_check
          %p414 = pneg %p230
        $region38: #{tpu_custom_call.1} parent=11 // pred_check_branch
          %416 = sbr.rel (%p414) target = $region40
        $region39: #{tpu_custom_call.1} parent=11 // pred_region
          %s418 = ssub.s32 4096, 4096
          %419 = vsyncadd [#allocation11], %s418
          %s420 = sshll.u32 [#allocation12], 4
          %s421 = int_to_ptr.vmem [resolvable:$true] %s420
          %426 = dma.hbm_to_vmem [thread:$0]  %s8, 4096, %s421, [#allocation11], 256, 256, 16
        $region40: #{tpu_custom_call.1} parent=11 // pred_fallthru
          _
        // Predicated region
        $region41: #{tpu_custom_call.1} parent=11 // pred_check
          %p427 = pneg %p251
        $region42: #{tpu_custom_call.1} parent=11 // pred_check_branch
          %429 = sbr.rel (%p427) target = $region44
        $region43: #{tpu_custom_call.1} parent=11 // pred_region
          _
        $region44: #{tpu_custom_call.1} parent=11 // pred_fallthru
          _
        // Predicated region
        $region45: #{tpu_custom_call.1} parent=11 // pred_check
          %p430 = pneg %p272
        $region46: #{tpu_custom_call.1} parent=11 // pred_check_branch
          %432 = sbr.rel (%p430) target = $region48
        $region47: #{tpu_custom_call.1} parent=11 // pred_region
          %s434 = ssub.s32 4096, 4096
          %435 = vsyncadd [#allocation14], %s434
          %s436 = sshll.u32 [#allocation13], 4
          %s437 = int_to_ptr.vmem [resolvable:$true] %s436
          %442 = dma.hbm_to_vmem [thread:$0]  %s10, 4096, %s437, [#allocation14], 64, 64, 4
        $region48: #{tpu_custom_call.1} parent=11 // pred_fallthru
          _
        // Predicated region
        $region49: #{tpu_custom_call.1} parent=11 // pred_check
          %p443 = pneg %p293
        $region50: #{tpu_custom_call.1} parent=11 // pred_check_branch
          %445 = sbr.rel (%p443) target = $region52
        $region51: #{tpu_custom_call.1} parent=11 // pred_region
          _
        $region52: #{tpu_custom_call.1} parent=11 // pred_fallthru
          _
        // Predicated region
        $region53: #{tpu_custom_call.1} parent=11 // pred_check
          %p446 = pneg %p314
        $region54: #{tpu_custom_call.1} parent=11 // pred_check_branch
          %448 = sbr.rel (%p446) target = $region56
        $region55: #{tpu_custom_call.1} parent=11 // pred_region
          _
        $region56: #{tpu_custom_call.1} parent=11 // pred_fallthru
          _
        // Predicated region
        $region57: #{tpu_custom_call.1} parent=11 // pred_check
          %p449 = pneg %p335
        $region58: #{tpu_custom_call.1} parent=11 // pred_check_branch
          %451 = sbr.rel (%p449) target = $region60
        $region59: #{tpu_custom_call.1} parent=11 // pred_region
          _
        $region60: #{tpu_custom_call.1} parent=11 // pred_fallthru
          _
      $region12: #{tpu_custom_call.1} parent=5 // pred_fallthru
        _
      %p452 = scmp.lt.s32.totalorder %s31, 2
      // Predicated region
      $region61: #{tpu_custom_call.1} parent=5 // pred_check
        %p453 = pneg %p452
      $region62: #{tpu_custom_call.1} parent=5 // pred_check_branch
        %455 = sbr.rel (%p453) target = $region64
      $region63: #{tpu_custom_call.1} parent=5 // pred_region
        // Predicated region
        $region65: #{tpu_custom_call.1} parent=63 // pred_check
          %p456 = pneg %p51
        $region66: #{tpu_custom_call.1} parent=63 // pred_check_branch
          %458 = sbr.rel (%p456) target = $region68
        $region67: #{tpu_custom_call.1} parent=63 // pred_region
          %s459 = sand.u32 %s41, 1
          %s460 = scalar_lea.sflag [#allocation5], %s459
          %s461 = sand.u32 %s41, 1
          %s462 = smul.addr %s461, 128
          %s463 = scalar_lea.vmem [#allocation4], %s462
          %s465 = ssub.s32 2048, 2048
          %466 = vsyncadd %s460, %s465
          %s467 = smul.addr %s31, 16
          %s468 = smul.addr %s467, 128
          %s469 = scalar_lea.hbm %s0, %s468
          %s470 = sshll.u32 %s463, 4
          %s471 = int_to_ptr.vmem [resolvable:$true] %s470
          %476 = dma.hbm_to_vmem [thread:$0]  %s469, 2048, %s471, %s460, 128, 128, 8
        $region68: #{tpu_custom_call.1} parent=63 // pred_fallthru
          _
        // Predicated region
        $region69: #{tpu_custom_call.1} parent=63 // pred_check
          %p477 = pneg %p77
        $region70: #{tpu_custom_call.1} parent=63 // pred_check_branch
          %479 = sbr.rel (%p477) target = $region72
        $region71: #{tpu_custom_call.1} parent=63 // pred_region
          %s480 = sand.u32 %s31, 1
          %s481 = scalar_lea.sflag [#allocation8], %s480
          %s482 = sand.u32 %s67, 1
          %s483 = scalar_lea.vmem [#allocation7], %s482
          %s485 = ssub.s32 16, 16
          %486 = vsyncadd %s481, %s485
          %s487 = smul.addr %s31, 16
          %s488 = scalar_lea.hbm %s1, %s487
          %s490 = sshll.u32 %s483, 4
          %s491 = int_to_ptr.vmem [resolvable:$true] %s490
          %493 = dma.hbm_to_vmem [thread:$0]  %s488, 16, %s491, %s481
        $region72: #{tpu_custom_call.1} parent=63 // pred_fallthru
          _
      $region64: #{tpu_custom_call.1} parent=5 // pred_fallthru
        _
      %p494 = scmp.le.s32.totalorder 1, %s31
      %p495 = scmp.lt.s32.totalorder %s31, 3
      %p496 = pnand %p494, %p495
      %p497 = pneg %p496
      // Predicated region
      $region73: #{tpu_custom_call.1} parent=5 // pred_check
        _
      $region74: #{tpu_custom_call.1} parent=5 // pred_check_branch
        %499 = sbr.rel (%p496) target = $region76
      $region75: #{tpu_custom_call.1} parent=5 // pred_region
        %s500 = ssub.s32 %s31, 1
        %s501 = sand.u32 %s44, 1
        %s502 = scalar_lea.sflag [#allocation5], %s501
        %s503 = sand.u32 %s44, 1
        %s504 = smul.addr %s503, 128
        %s505 = scalar_lea.vmem [#allocation4], %s504
        // Predicated region
        $region77: #{tpu_custom_call.1} parent=75 // pred_check
          %p506 = pneg %p57
        $region78: #{tpu_custom_call.1} parent=75 // pred_check_branch
          %508 = sbr.rel (%p506) target = $region80
        $region79: #{tpu_custom_call.1} parent=75 // pred_region
          %509 = dma.done %s502, 2048
        $region80: #{tpu_custom_call.1} parent=75 // pred_fallthru
          _
        %s510 = sand.u32 %s36, 1
        %s511 = scalar_lea.sflag [#allocation8], %s510
        %s512 = sand.u32 %s70, 1
        %s513 = scalar_lea.vmem [#allocation7], %s512
        // Predicated region
        $region81: #{tpu_custom_call.1} parent=75 // pred_check
          %p514 = pneg %p83
        $region82: #{tpu_custom_call.1} parent=75 // pred_check_branch
          %516 = sbr.rel (%p514) target = $region84
        $region83: #{tpu_custom_call.1} parent=75 // pred_region
          %517 = dma.done %s511, 16
        $region84: #{tpu_custom_call.1} parent=75 // pred_fallthru
          _
        // Predicated region
        $region85: #{tpu_custom_call.1} parent=75 // pred_check
          %p518 = pneg %p104
        $region86: #{tpu_custom_call.1} parent=75 // pred_check_branch
          %520 = sbr.rel (%p518) target = $region88
        $region87: #{tpu_custom_call.1} parent=75 // pred_region
          %521 = dma.done [#allocation8], 3072
        $region88: #{tpu_custom_call.1} parent=75 // pred_fallthru
          _
        // Predicated region
        $region89: #{tpu_custom_call.1} parent=75 // pred_check
          %p522 = pneg %p146
        $region90: #{tpu_custom_call.1} parent=75 // pred_check_branch
          %524 = sbr.rel (%p522) target = $region92
        $region91: #{tpu_custom_call.1} parent=75 // pred_region
          %525 = dma.done [#allocation11], 1024
        $region92: #{tpu_custom_call.1} parent=75 // pred_fallthru
          _
        // Predicated region
        $region93: #{tpu_custom_call.1} parent=75 // pred_check
          %p526 = pneg %p230
        $region94: #{tpu_custom_call.1} parent=75 // pred_check_branch
          %528 = sbr.rel (%p526) target = $region96
        $region95: #{tpu_custom_call.1} parent=75 // pred_region
          %529 = dma.done [#allocation11], 4096
        $region96: #{tpu_custom_call.1} parent=75 // pred_fallthru
          _
        // Predicated region
        $region97: #{tpu_custom_call.1} parent=75 // pred_check
          %p530 = pneg %p272
        $region98: #{tpu_custom_call.1} parent=75 // pred_check_branch
          %532 = sbr.rel (%p530) target = $region100
        $region99: #{tpu_custom_call.1} parent=75 // pred_region
          %533 = dma.done [#allocation14], 4096
        $region100: #{tpu_custom_call.1} parent=75 // pred_fallthru
          _
        %s534 = sand.u32 %s44, 1
        %s535 = scalar_lea.sflag [#allocation5], %s534
        %s536 = sand.u32 %s44, 1
        %s537 = smul.addr %s536, 128
        %s538 = scalar_lea.vmem [#allocation4], %s537
        %p539 = pneg %p57
        %p540 = pneg %p54
        %s541 = sand.u32 %s36, 1
        %s542 = scalar_lea.sflag [#allocation8], %s541
        %s543 = sand.u32 %s70, 1
        %s544 = scalar_lea.vmem [#allocation7], %s543
        %p545 = pneg %p83
        %p546 = pneg %p80
        %p547 = pneg %p104
        %p548 = pneg %p101
        %p549 = pneg %p125
        %p550 = pneg %p122
        %p551 = pneg %p146
        %p552 = pneg %p143
        %p553 = pneg %p167
        %p554 = pneg %p164
        %p555 = pneg %p188
        %p556 = pneg %p185
        %p557 = pneg %p209
        %p558 = pneg %p206
        %p559 = pneg %p230
        %p560 = pneg %p227
        %p561 = pneg %p251
        %p562 = pneg %p248
        %p563 = pneg %p272
        %p564 = pneg %p269
        %p565 = pneg %p293
        %p566 = pneg %p290
        %p567 = pneg %p314
        %p568 = pneg %p311
        %p569 = pneg %p335
        %p570 = pneg %p332
        %p571 = pneg %p361
        %p572 = pneg %p358
        %s573 = sand.u32 %s348, 1
        %s574 = scalar_lea.sflag [#allocation6], %s573
        %s575 = sand.u32 %s348, 1
        %s576 = smul.addr %s575, 128
        %s577 = scalar_lea.vmem [#allocation15], %s576
        %v579 = vld [vmem:[%s505] sm:$0xff]
        %v580 = vld [vmem:[%s505 + $0x8] sm:$0xff]
        %v581 = vld [vmem:[%s505 + $0x10] sm:$0xff]
        %v582 = vld [vmem:[%s505 + $0x18] sm:$0xff]
        %v583 = vld [vmem:[%s505 + $0x20] sm:$0xff]
        %v584 = vld [vmem:[%s505 + $0x28] sm:$0xff]
        %v585 = vld [vmem:[%s505 + $0x30] sm:$0xff]
        %v586 = vld [vmem:[%s505 + $0x38] sm:$0xff]
        %v587 = vld [vmem:[%s505 + $0x40] sm:$0xff]
        %v588 = vld [vmem:[%s505 + $0x48] sm:$0xff]
        %v589 = vld [vmem:[%s505 + $0x50] sm:$0xff]
        %v590 = vld [vmem:[%s505 + $0x58] sm:$0xff]
        %v591 = vld [vmem:[%s505 + $0x60] sm:$0xff]
        %v592 = vld [vmem:[%s505 + $0x68] sm:$0xff]
        %v593 = vld [vmem:[%s505 + $0x70] sm:$0xff]
        %v594 = vld [vmem:[%s505 + $0x78] sm:$0xff]
        %v595 = vpack.c.bf16 %v580, %v579
        %v596 = vpack.c.bf16 %v582, %v581
        %v597 = vpack.c.bf16 %v584, %v583
        %v598 = vpack.c.bf16 %v586, %v585
        %v599 = vpack.c.bf16 %v588, %v587
        %v600 = vpack.c.bf16 %v590, %v589
        %v601 = vpack.c.bf16 %v592, %v591
        %v602 = vpack.c.bf16 %v594, %v593
        %v603 = vld [vmem:[#allocation9] sm:$0xff]
        %v604 = vld [vmem:[#allocation9 + $0x8] sm:$0xf]
        %v605 = vld [vmem:[#allocation9 + $0xc] sm:$0xff]
        %v606 = vld [vmem:[#allocation9 + $0x14] sm:$0xf]
        %v607 = vld [vmem:[#allocation9 + $0x18] sm:$0xff]
        %v608 = vld [vmem:[#allocation9 + $0x20] sm:$0xf]
        %v609 = vld [vmem:[#allocation9 + $0x24] sm:$0xff]
        %v610 = vld [vmem:[#allocation9 + $0x2c] sm:$0xf]
        %v611 = vld [vmem:[#allocation9 + $0x30] sm:$0xff]
        %v612 = vld [vmem:[#allocation9 + $0x38] sm:$0xf]
        %v613 = vld [vmem:[#allocation9 + $0x3c] sm:$0xff]
        %v614 = vld [vmem:[#allocation9 + $0x44] sm:$0xf]
        %v615 = vld [vmem:[#allocation9 + $0x48] sm:$0xff]
        %v616 = vld [vmem:[#allocation9 + $0x50] sm:$0xf]
        %v617 = vld [vmem:[#allocation9 + $0x54] sm:$0xff]
        %v618 = vld [vmem:[#allocation9 + $0x5c] sm:$0xf]
        %v619 = vld [vmem:[#allocation9 + $0x60] sm:$0xff]
        %v620 = vld [vmem:[#allocation9 + $0x68] sm:$0xf]
        %v621 = vld [vmem:[#allocation9 + $0x6c] sm:$0xff]
        %v622 = vld [vmem:[#allocation9 + $0x74] sm:$0xf]
        %v623 = vld [vmem:[#allocation9 + $0x78] sm:$0xff]
        %v624 = vld [vmem:[#allocation9 + $0x80] sm:$0xf]
        %v625 = vld [vmem:[#allocation9 + $0x84] sm:$0xff]
        %v626 = vld [vmem:[#allocation9 + $0x8c] sm:$0xf]
        %v627 = vld [vmem:[#allocation9 + $0x90] sm:$0xff]
        %v628 = vld [vmem:[#allocation9 + $0x98] sm:$0xf]
        %v629 = vld [vmem:[#allocation9 + $0x9c] sm:$0xff]
        %v630 = vld [vmem:[#allocation9 + $0xa4] sm:$0xf]
        %v631 = vld [vmem:[#allocation9 + $0xa8] sm:$0xff]
        %v632 = vld [vmem:[#allocation9 + $0xb0] sm:$0xf]
        %v633 = vld [vmem:[#allocation9 + $0xb4] sm:$0xff]
        %v634 = vld [vmem:[#allocation9 + $0xbc] sm:$0xf]
        %v635 = vld [vmem:[%s3] sm:$0x7]
        %v637 = vlaneseq
        %v638 = vshrl.u32 %v637, 7
        %v639 = vsub.s32 0, %v638
        %v640 = vrot.slane %v635, %v639
        %v641 = vlaneseq
        %v642 = vshrl.u32 %v641, 7
        %v643 = vsub.s32 1, %v642
        %v644 = vrot.slane %v635, %v643
        %v645 = vlaneseq
        %v646 = vshrl.u32 %v645, 7
        %v647 = vsub.s32 2, %v646
        %v648 = vrot.slane %v635, %v647
        %v684 = vunpack.c.l.b16 %v603
        %v685 = vunpack.c.h.b16 %v603
        %v686 = vunpack.c.l.b16 %v604
        %v687 = vunpack.c.l.b16 %v605
        %v688 = vunpack.c.h.b16 %v605
        %v689 = vunpack.c.l.b16 %v606
        %v690 = vunpack.c.l.b16 %v607
        %v691 = vunpack.c.h.b16 %v607
        %v692 = vunpack.c.l.b16 %v608
        %v693 = vunpack.c.l.b16 %v609
        %v694 = vunpack.c.h.b16 %v609
        %v695 = vunpack.c.l.b16 %v610
        %v696 = vunpack.c.l.b16 %v611
        %v697 = vunpack.c.h.b16 %v611
        %v698 = vunpack.c.l.b16 %v612
        %v699 = vunpack.c.l.b16 %v613
        %v700 = vunpack.c.h.b16 %v613
        %v701 = vunpack.c.l.b16 %v614
        %v702 = vunpack.c.l.b16 %v615
        %v703 = vunpack.c.h.b16 %v615
        %v704 = vunpack.c.l.b16 %v616
        %v705 = vunpack.c.l.b16 %v617
        %v706 = vunpack.c.h.b16 %v617
        %v707 = vunpack.c.l.b16 %v618
        %v708 = vunpack.c.l.b16 %v619
        %v709 = vunpack.c.h.b16 %v619
        %v710 = vunpack.c.l.b16 %v620
        %v711 = vunpack.c.l.b16 %v621
        %v712 = vunpack.c.h.b16 %v621
        %v713 = vunpack.c.l.b16 %v622
        %v714 = vunpack.c.l.b16 %v623
        %v715 = vunpack.c.h.b16 %v623
        %v716 = vunpack.c.l.b16 %v624
        %v717 = vunpack.c.l.b16 %v625
        %v718 = vunpack.c.h.b16 %v625
        %v719 = vunpack.c.l.b16 %v626
        %v720 = vunpack.c.l.b16 %v627
        %v721 = vunpack.c.h.b16 %v627
        %v722 = vunpack.c.l.b16 %v628
        %v723 = vunpack.c.l.b16 %v629
        %v724 = vunpack.c.h.b16 %v629
        %v725 = vunpack.c.l.b16 %v630
        %v726 = vunpack.c.l.b16 %v631
        %v727 = vunpack.c.h.b16 %v631
        %v728 = vunpack.c.l.b16 %v632
        %v729 = vunpack.c.l.b16 %v633
        %v730 = vunpack.c.h.b16 %v633
        %v731 = vunpack.c.l.b16 %v634
        %v732 = vpack.c.b16 %v687, %v684
        %v733 = vpack.c.b16 %v688, %v685
        %v734 = vpack.c.b16 %v689, %v686
        %v735 = vpack.c.b16 %v693, %v690
        %v736 = vpack.c.b16 %v694, %v691
        %v737 = vpack.c.b16 %v695, %v692
        %v738 = vpack.c.b16 %v699, %v696
        %v739 = vpack.c.b16 %v700, %v697
        %v740 = vpack.c.b16 %v701, %v698
        %v741 = vpack.c.b16 %v705, %v702
        %v742 = vpack.c.b16 %v706, %v703
        %v743 = vpack.c.b16 %v707, %v704
        %v744 = vpack.c.b16 %v711, %v708
        %v745 = vpack.c.b16 %v712, %v709
        %v746 = vpack.c.b16 %v713, %v710
        %v747 = vpack.c.b16 %v717, %v714
        %v748 = vpack.c.b16 %v718, %v715
        %v749 = vpack.c.b16 %v719, %v716
        %v750 = vpack.c.b16 %v723, %v720
        %v751 = vpack.c.b16 %v724, %v721
        %v752 = vpack.c.b16 %v725, %v722
        %v753 = vpack.c.b16 %v729, %v726
        %v754 = vpack.c.b16 %v730, %v727
        %v755 = vpack.c.b16 %v731, %v728
        %780 = vmatprep.subr.bf16.mxu0 %v733
        %781 = vmatpush1.bf16.msra.mxu0 %v732
        %782 = vmatprep.subr.bf16.mxu0 %v736
        %783 = vmatpush1.bf16.msra.mxu0 %v735
        %784 = vmatprep.subr.bf16.mxu0 %v739
        %785 = vmatpush1.bf16.msra.mxu0 %v738
        %786 = vmatprep.subr.bf16.mxu0 %v742
        %787 = vmatpush1.bf16.msra.mxu0 %v741
        %788 = vmatprep.subr.bf16.mxu0 %v745
        %789 = vmatpush1.bf16.msra.mxu0 %v744
        %790 = vmatprep.subr.bf16.mxu0 %v748
        %791 = vmatpush1.bf16.msra.mxu0 %v747
        %792 = vmatprep.subr.bf16.mxu0 %v751
        %793 = vmatpush1.bf16.msra.mxu0 %v750
        %794 = vmatprep.subr.bf16.mxu0 %v754
        %795 = vmatpush1.bf16.msra.mxu0 %v753
        %796 = vmatprep.subr.bf16.mxu0 0
        %797 = vmatpush1.bf16.msra.mxu0 0
        %798 = vmatprep.subr.bf16.mxu0 0
        %799 = vmatpush1.bf16.msra.mxu0 0
        %800 = vmatprep.subr.bf16.mxu0 0
        %801 = vmatpush1.bf16.msra.mxu0 0
        %802 = vmatprep.subr.bf16.mxu0 0
        %803 = vmatpush1.bf16.msra.mxu0 0
        %804 = vmatprep.subr.bf16.mxu0 0
        %805 = vmatpush1.bf16.msra.mxu0 0
        %806 = vmatprep.subr.bf16.mxu0 0
        %807 = vmatpush1.bf16.msra.mxu0 0
        %808 = vmatprep.subr.bf16.mxu0 0
        %809 = vmatpush1.bf16.msra.mxu0 0
        %810 = vmatprep.subr.bf16.mxu0 0
        %811 = vmatpush1.bf16.msra.mxu0 0
        %812 = vmatprep.mubr.bf16.mxu0 0
        %813 = vmatmul.mubr.bf16.gmra.mrb[0].mxu0 %v595
        %v814 = vpop.f32.mrb[0].mxu0
        %v815 = vadd.f32 %v640, %v814
        %v816 = vpop.f32.mrb[0].mxu0
        %v817 = vadd.f32 %v644, %v816
        %v818 = vpop.f32.mrb[0].mxu0
        %v819 = vadd.f32 %v640, %v818
        %v820 = vpop.f32.mrb[0].mxu0
        %v821 = vadd.f32 %v644, %v820
        %822 = vmatprep.mubr.bf16.mxu0 0
        %823 = vmatmul.mubr.bf16.gmra.mrb[0].mxu0 %v596
        %v824 = vpop.f32.mrb[0].mxu0
        %v825 = vadd.f32 %v640, %v824
        %v826 = vpop.f32.mrb[0].mxu0
        %v827 = vadd.f32 %v644, %v826
        %v828 = vpop.f32.mrb[0].mxu0
        %v829 = vadd.f32 %v640, %v828
        %v830 = vpop.f32.mrb[0].mxu0
        %v831 = vadd.f32 %v644, %v830
        %832 = vmatprep.mubr.bf16.mxu0 0
        %833 = vmatmul.mubr.bf16.gmra.mrb[0].mxu0 %v597
        %v834 = vpop.f32.mrb[0].mxu0
        %v835 = vadd.f32 %v640, %v834
        %v836 = vpop.f32.mrb[0].mxu0
        %v837 = vadd.f32 %v644, %v836
        %v838 = vpop.f32.mrb[0].mxu0
        %v839 = vadd.f32 %v640, %v838
        %v840 = vpop.f32.mrb[0].mxu0
        %v841 = vadd.f32 %v644, %v840
        %842 = vmatprep.mubr.bf16.mxu0 0
        %843 = vmatmul.mubr.bf16.gmra.mrb[0].mxu0 %v598
        %v844 = vpop.f32.mrb[0].mxu0
        %v845 = vadd.f32 %v640, %v844
        %v846 = vpop.f32.mrb[0].mxu0
        %v847 = vadd.f32 %v644, %v846
        %v848 = vpop.f32.mrb[0].mxu0
        %v849 = vadd.f32 %v640, %v848
        %v850 = vpop.f32.mrb[0].mxu0
        %v851 = vadd.f32 %v644, %v850
        %852 = vmatprep.mubr.bf16.mxu0 0
        %853 = vmatmul.mubr.bf16.gmra.mrb[0].mxu0 %v599
        %v854 = vpop.f32.mrb[0].mxu0
        %v855 = vadd.f32 %v640, %v854
        %v856 = vpop.f32.mrb[0].mxu0
        %v857 = vadd.f32 %v644, %v856
        %v858 = vpop.f32.mrb[0].mxu0
        %v859 = vadd.f32 %v640, %v858
        %v860 = vpop.f32.mrb[0].mxu0
        %v861 = vadd.f32 %v644, %v860
        %862 = vmatprep.mubr.bf16.mxu0 0
        %863 = vmatmul.mubr.bf16.gmra.mrb[0].mxu0 %v600
        %v864 = vpop.f32.mrb[0].mxu0
        %v865 = vadd.f32 %v640, %v864
        %v866 = vpop.f32.mrb[0].mxu0
        %v867 = vadd.f32 %v644, %v866
        %v868 = vpop.f32.mrb[0].mxu0
        %v869 = vadd.f32 %v640, %v868
        %v870 = vpop.f32.mrb[0].mxu0
        %v871 = vadd.f32 %v644, %v870
        %872 = vmatprep.mubr.bf16.mxu0 0
        %873 = vmatmul.mubr.bf16.gmra.mrb[0].mxu0 %v601
        %v874 = vpop.f32.mrb[0].mxu0
        %v875 = vadd.f32 %v640, %v874
        %v876 = vpop.f32.mrb[0].mxu0
        %v877 = vadd.f32 %v644, %v876
        %v878 = vpop.f32.mrb[0].mxu0
        %v879 = vadd.f32 %v640, %v878
        %v880 = vpop.f32.mrb[0].mxu0
        %v881 = vadd.f32 %v644, %v880
        %882 = vmatprep.mubr.bf16.mxu0 0
        %883 = vmatmul.mubr.bf16.gmra.mrb[0].mxu0 %v602
        %v884 = vpop.f32.mrb[0].mxu0
        %v885 = vadd.f32 %v640, %v884
        %v886 = vpop.f32.mrb[0].mxu0
        %v887 = vadd.f32 %v644, %v886
        %v888 = vpop.f32.mrb[0].mxu0
        %v889 = vadd.f32 %v640, %v888
        %v890 = vpop.f32.mrb[0].mxu0
        %v891 = vadd.f32 %v644, %v890
        %892 = vdwg.mxu0
        %893 = vmatprep.subr.bf16.mxu0 0
        %894 = vmatpush1.bf16.msra.mxu0 %v734
        %895 = vmatprep.subr.bf16.mxu0 0
        %896 = vmatpush1.bf16.msra.mxu0 %v737
        %897 = vmatprep.subr.bf16.mxu0 0
        %898 = vmatpush1.bf16.msra.mxu0 %v740
        %899 = vmatprep.subr.bf16.mxu0 0
        %900 = vmatpush1.bf16.msra.mxu0 %v743
        %901 = vmatprep.subr.bf16.mxu0 0
        %902 = vmatpush1.bf16.msra.mxu0 %v746
        %903 = vmatprep.subr.bf16.mxu0 0
        %904 = vmatpush1.bf16.msra.mxu0 %v749
        %905 = vmatprep.subr.bf16.mxu0 0
        %906 = vmatpush1.bf16.msra.mxu0 %v752
        %907 = vmatprep.subr.bf16.mxu0 0
        %908 = vmatpush1.bf16.msra.mxu0 %v755
        %909 = vmatprep.subr.bf16.mxu0 0
        %910 = vmatpush1.bf16.msra.mxu0 0
        %911 = vmatprep.subr.bf16.mxu0 0
        %912 = vmatpush1.bf16.msra.mxu0 0
        %913 = vmatprep.subr.bf16.mxu0 0
        %914 = vmatpush1.bf16.msra.mxu0 0
        %915 = vmatprep.subr.bf16.mxu0 0
        %916 = vmatpush1.bf16.msra.mxu0 0
        %917 = vmatprep.subr.bf16.mxu0 0
        %918 = vmatpush1.bf16.msra.mxu0 0
        %919 = vmatprep.subr.bf16.mxu0 0
        %920 = vmatpush1.bf16.msra.mxu0 0
        %921 = vmatprep.subr.bf16.mxu0 0
        %922 = vmatpush1.bf16.msra.mxu0 0
        %923 = vmatprep.subr.bf16.mxu0 0
        %924 = vmatpush1.bf16.msra.mxu0 0
        %925 = vmatprep.mubr.bf16.mxu0 0
        %926 = vmatmul.mubr.bf16.gmra.mrb[0].mxu0 %v595
        %v927 = vpop.f32.mrb[0].mxu0
        %v928 = vadd.f32 %v648, %v927
        %v929 = vpop.f32.mrb[0].mxu0
        %v930 = vpop.f32.mrb[0].mxu0
        %v931 = vadd.f32 %v648, %v930
        %v932 = vpop.f32.mrb[0].mxu0
        %933 = vmatprep.mubr.bf16.mxu0 0
        %934 = vmatmul.mubr.bf16.gmra.mrb[0].mxu0 %v596
        %v935 = vpop.f32.mrb[0].mxu0
        %v936 = vadd.f32 %v648, %v935
        %v937 = vpop.f32.mrb[0].mxu0
        %v938 = vpop.f32.mrb[0].mxu0
        %v939 = vadd.f32 %v648, %v938
        %v940 = vpop.f32.mrb[0].mxu0
        %941 = vmatprep.mubr.bf16.mxu0 0
        %942 = vmatmul.mubr.bf16.gmra.mrb[0].mxu0 %v597
        %v943 = vpop.f32.mrb[0].mxu0
        %v944 = vadd.f32 %v648, %v943
        %v945 = vpop.f32.mrb[0].mxu0
        %v946 = vpop.f32.mrb[0].mxu0
        %v947 = vadd.f32 %v648, %v946
        %v948 = vpop.f32.mrb[0].mxu0
        %949 = vmatprep.mubr.bf16.mxu0 0
        %950 = vmatmul.mubr.bf16.gmra.mrb[0].mxu0 %v598
        %v951 = vpop.f32.mrb[0].mxu0
        %v952 = vadd.f32 %v648, %v951
        %v953 = vpop.f32.mrb[0].mxu0
        %v954 = vpop.f32.mrb[0].mxu0
        %v955 = vadd.f32 %v648, %v954
        %v956 = vpop.f32.mrb[0].mxu0
        %957 = vmatprep.mubr.bf16.mxu0 0
        %958 = vmatmul.mubr.bf16.gmra.mrb[0].mxu0 %v599
        %v959 = vpop.f32.mrb[0].mxu0
        %v960 = vadd.f32 %v648, %v959
        %v961 = vpop.f32.mrb[0].mxu0
        %v962 = vpop.f32.mrb[0].mxu0
        %v963 = vadd.f32 %v648, %v962
        %v964 = vpop.f32.mrb[0].mxu0
        %965 = vmatprep.mubr.bf16.mxu0 0
        %966 = vmatmul.mubr.bf16.gmra.mrb[0].mxu0 %v600
        %v967 = vpop.f32.mrb[0].mxu0
        %v968 = vadd.f32 %v648, %v967
        %v969 = vpop.f32.mrb[0].mxu0
        %v970 = vpop.f32.mrb[0].mxu0
        %v971 = vadd.f32 %v648, %v970
        %v972 = vpop.f32.mrb[0].mxu0
        %973 = vmatprep.mubr.bf16.mxu0 0
        %974 = vmatmul.mubr.bf16.gmra.mrb[0].mxu0 %v601
        %v975 = vpop.f32.mrb[0].mxu0
        %v976 = vadd.f32 %v648, %v975
        %v977 = vpop.f32.mrb[0].mxu0
        %v978 = vpop.f32.mrb[0].mxu0
        %v979 = vadd.f32 %v648, %v978
        %v980 = vpop.f32.mrb[0].mxu0
        %981 = vmatprep.mubr.bf16.mxu0 0
        %982 = vmatmul.mubr.bf16.gmra.mrb[0].mxu0 %v602
        %v983 = vpop.f32.mrb[0].mxu0
        %v984 = vadd.f32 %v648, %v983
        %v985 = vpop.f32.mrb[0].mxu0
        %v986 = vpop.f32.mrb[0].mxu0
        %v987 = vadd.f32 %v648, %v986
        %v988 = vpop.f32.mrb[0].mxu0
        %989 = vdwg.mxu0
        %v990 = vpack.c.bf16 %v819, %v815
        %v991 = vpack.c.bf16 %v821, %v817
        %v992 = vpack.c.bf16 %v931, %v928
        %v993 = vpack.c.bf16 %v829, %v825
        %v994 = vpack.c.bf16 %v831, %v827
        %v995 = vpack.c.bf16 %v939, %v936
        %v996 = vpack.c.bf16 %v839, %v835
        %v997 = vpack.c.bf16 %v841, %v837
        %v998 = vpack.c.bf16 %v947, %v944
        %v999 = vpack.c.bf16 %v849, %v845
        %v1000 = vpack.c.bf16 %v851, %v847
        %v1001 = vpack.c.bf16 %v955, %v952
        %v1002 = vpack.c.bf16 %v859, %v855
        %v1003 = vpack.c.bf16 %v861, %v857
        %v1004 = vpack.c.bf16 %v963, %v960
        %v1005 = vpack.c.bf16 %v869, %v865
        %v1006 = vpack.c.bf16 %v871, %v867
        %v1007 = vpack.c.bf16 %v971, %v968
        %v1008 = vpack.c.bf16 %v879, %v875
        %v1009 = vpack.c.bf16 %v881, %v877
        %v1010 = vpack.c.bf16 %v979, %v976
        %v1011 = vpack.c.bf16 %v889, %v885
        %v1012 = vpack.c.bf16 %v891, %v887
        %v1013 = vpack.c.bf16 %v987, %v984
        %1014 = vst [vmem:[#allocation2] sm:$0xff] %v990
        %1015 = vst [vmem:[#allocation2 + $0x8] sm:$0xff] %v991
        %1016 = vst [vmem:[#allocation2 + $0x10] sm:$0xff] %v992
        %1017 = vst [vmem:[#allocation2 + $0x18] sm:$0xff] %v993
        %1018 = vst [vmem:[#allocation2 + $0x20] sm:$0xff] %v994
        %1019 = vst [vmem:[#allocation2 + $0x28] sm:$0xff] %v995
        %1020 = vst [vmem:[#allocation2 + $0x30] sm:$0xff] %v996
        %1021 = vst [vmem:[#allocation2 + $0x38] sm:$0xff] %v997
        %1022 = vst [vmem:[#allocation2 + $0x40] sm:$0xff] %v998
        %1023 = vst [vmem:[#allocation2 + $0x48] sm:$0xff] %v999
        %1024 = vst [vmem:[#allocation2 + $0x50] sm:$0xff] %v1000
        %1025 = vst [vmem:[#allocation2 + $0x58] sm:$0xff] %v1001
        %1026 = vst [vmem:[#allocation2 + $0x60] sm:$0xff] %v1002
        %1027 = vst [vmem:[#allocation2 + $0x68] sm:$0xff] %v1003
        %1028 = vst [vmem:[#allocation2 + $0x70] sm:$0xff] %v1004
        %1029 = vst [vmem:[#allocation2 + $0x78] sm:$0xff] %v1005
        %1030 = vst [vmem:[#allocation2 + $0x80] sm:$0xff] %v1006
        %1031 = vst [vmem:[#allocation2 + $0x88] sm:$0xff] %v1007
        %1032 = vst [vmem:[#allocation2 + $0x90] sm:$0xff] %v1008
        %1033 = vst [vmem:[#allocation2 + $0x98] sm:$0xff] %v1009
        %1034 = vst [vmem:[#allocation2 + $0xa0] sm:$0xff] %v1010
        %1035 = vst [vmem:[#allocation2 + $0xa8] sm:$0xff] %v1011
        %1036 = vst [vmem:[#allocation2 + $0xb0] sm:$0xff] %v1012
        %1037 = vst [vmem:[#allocation2 + $0xb8] sm:$0xff] %v1013
        %v1038 = vld [vmem:[%s513] sm:$0x1]
        %v1040 = vlaneseq
        %v1041 = vshrl.u32 %v1040, 7
        %v1042 = vsub.s32 0, %v1041
        %v1043 = vrot.slane %v1038, %v1042
        %v1045 = vld [vmem:[#allocation2] sm:$0xff]
        %v1046 = vld [vmem:[#allocation2 + $0x18] sm:$0xff]
        %v1047 = vld [vmem:[#allocation2 + $0x30] sm:$0xff]
        %v1048 = vld [vmem:[#allocation2 + $0x48] sm:$0xff]
        %v1049 = vld [vmem:[#allocation2 + $0x60] sm:$0xff]
        %v1050 = vld [vmem:[#allocation2 + $0x78] sm:$0xff]
        %v1051 = vld [vmem:[#allocation2 + $0x90] sm:$0xff]
        %v1052 = vld [vmem:[#allocation2 + $0xa8] sm:$0xff]
        %v1053 = vld [vmem:[#allocation2 + $0x8] sm:$0xff]
        %v1054 = vld [vmem:[#allocation2 + $0x20] sm:$0xff]
        %v1055 = vld [vmem:[#allocation2 + $0x38] sm:$0xff]
        %v1056 = vld [vmem:[#allocation2 + $0x50] sm:$0xff]
        %v1057 = vld [vmem:[#allocation2 + $0x68] sm:$0xff]
        %v1058 = vld [vmem:[#allocation2 + $0x80] sm:$0xff]
        %v1059 = vld [vmem:[#allocation2 + $0x98] sm:$0xff]
        %v1060 = vld [vmem:[#allocation2 + $0xb0] sm:$0xff]
        %v1061 = vld [vmem:[#allocation2 + $0x10] sm:$0xff]
        %v1062 = vld [vmem:[#allocation2 + $0x28] sm:$0xff]
        %v1063 = vld [vmem:[#allocation2 + $0x40] sm:$0xff]
        %v1064 = vld [vmem:[#allocation2 + $0x58] sm:$0xff]
        %v1065 = vld [vmem:[#allocation2 + $0x70] sm:$0xff]
        %v1066 = vld [vmem:[#allocation2 + $0x88] sm:$0xff]
        %v1067 = vld [vmem:[#allocation2 + $0xa0] sm:$0xff]
        %v1068 = vld [vmem:[#allocation2 + $0xb8] sm:$0xff]
        %vm1069 = vcmask 261120
        %v1071 = vsel %vm1069, %v1045, 0
        %v1074 = vsel %vm1069, %v1046, 0
        %v1077 = vsel %vm1069, %v1047, 0
        %v1080 = vsel %vm1069, %v1048, 0
        %v1083 = vsel %vm1069, %v1049, 0
        %v1086 = vsel %vm1069, %v1050, 0
        %v1089 = vsel %vm1069, %v1051, 0
        %v1092 = vsel %vm1069, %v1052, 0
        %v1095 = vsel %vm1069, %v1053, 0
        %v1098 = vsel %vm1069, %v1054, 0
        %v1101 = vsel %vm1069, %v1055, 0
        %v1104 = vsel %vm1069, %v1056, 0
        %v1107 = vsel %vm1069, %v1057, 0
        %v1110 = vsel %vm1069, %v1058, 0
        %v1113 = vsel %vm1069, %v1059, 0
        %v1116 = vsel %vm1069, %v1060, 0
        %1118 = vmatprep.subr.bf16.mxu0 0
        %1119 = vmatpush1.bf16.xpose.msra.mxu0 %v1095
        %1120 = vmatprep.subr.bf16.mxu0 0
        %1121 = vmatpush1.bf16.xpose.msra.mxu0 %v1098
        %1122 = vmatprep.subr.bf16.mxu0 0
        %1123 = vmatpush1.bf16.xpose.msra.mxu0 %v1101
        %1124 = vmatprep.subr.bf16.mxu0 0
        %1125 = vmatpush1.bf16.xpose.msra.mxu0 %v1104
        %1126 = vmatprep.subr.bf16.mxu0 0
        %1127 = vmatpush1.bf16.xpose.msra.mxu0 %v1107
        %1128 = vmatprep.subr.bf16.mxu0 0
        %1129 = vmatpush1.bf16.xpose.msra.mxu0 %v1110
        %1130 = vmatprep.subr.bf16.mxu0 0
        %1131 = vmatpush1.bf16.xpose.msra.mxu0 %v1113
        %1132 = vmatprep.subr.bf16.mxu0 0
        %1133 = vmatpush1.bf16.xpose.msra.mxu0 %v1116
        %1134 = vmatprep.subr.bf16.mxu0 0
        %1135 = vmatpush1.bf16.xpose.msra.mxu0 0
        %1136 = vmatprep.subr.bf16.mxu0 0
        %1137 = vmatpush1.bf16.xpose.msra.mxu0 0
        %1138 = vmatprep.subr.bf16.mxu0 0
        %1139 = vmatpush1.bf16.xpose.msra.mxu0 0
        %1140 = vmatprep.subr.bf16.mxu0 0
        %1141 = vmatpush1.bf16.xpose.msra.mxu0 0
        %1142 = vmatprep.subr.bf16.mxu0 0
        %1143 = vmatpush1.bf16.xpose.msra.mxu0 0
        %1144 = vmatprep.subr.bf16.mxu0 0
        %1145 = vmatpush1.bf16.xpose.msra.mxu0 0
        %1146 = vmatprep.subr.bf16.mxu0 0
        %1147 = vmatpush1.bf16.xpose.msra.mxu0 0
        %1148 = vmatprep.subr.bf16.mxu0 0
        %1149 = vmatpush1.bf16.xpose.msra.mxu0 0
        %1150 = vmatprep.mubr.bf16.mxu0 0
        %1151 = vmatmul.mubr.bf16.gmra.mrb[0].mxu0 %v1071
        %v1152 = vpop.f32.mrb[0].mxu0
        %v1153 = vadd.f32 %v1043, %v1152
        %v1154 = vpop.f32.mrb[0].mxu0
        %v1155 = vpop.f32.mrb[0].mxu0
        %v1156 = vadd.f32 %v1043, %v1155
        %v1157 = vpop.f32.mrb[0].mxu0
        %1158 = vmatprep.mubr.bf16.mxu0 0
        %1159 = vmatmul.mubr.bf16.gmra.mrb[0].mxu0 %v1074
        %v1160 = vpop.f32.mrb[0].mxu0
        %v1161 = vadd.f32 %v1043, %v1160
        %v1162 = vpop.f32.mrb[0].mxu0
        %v1163 = vpop.f32.mrb[0].mxu0
        %v1164 = vadd.f32 %v1043, %v1163
        %v1165 = vpop.f32.mrb[0].mxu0
        %1166 = vmatprep.mubr.bf16.mxu0 0
        %1167 = vmatmul.mubr.bf16.gmra.mrb[0].mxu0 %v1077
        %v1168 = vpop.f32.mrb[0].mxu0
        %v1169 = vadd.f32 %v1043, %v1168
        %v1170 = vpop.f32.mrb[0].mxu0
        %v1171 = vpop.f32.mrb[0].mxu0
        %v1172 = vadd.f32 %v1043, %v1171
        %v1173 = vpop.f32.mrb[0].mxu0
        %1174 = vmatprep.mubr.bf16.mxu0 0
        %1175 = vmatmul.mubr.bf16.gmra.mrb[0].mxu0 %v1080
        %v1176 = vpop.f32.mrb[0].mxu0
        %v1177 = vadd.f32 %v1043, %v1176
        %v1178 = vpop.f32.mrb[0].mxu0
        %v1179 = vpop.f32.mrb[0].mxu0
        %v1180 = vadd.f32 %v1043, %v1179
        %v1181 = vpop.f32.mrb[0].mxu0
        %1182 = vmatprep.mubr.bf16.mxu0 0
        %1183 = vmatmul.mubr.bf16.gmra.mrb[0].mxu0 %v1083
        %v1184 = vpop.f32.mrb[0].mxu0
        %v1185 = vadd.f32 %v1043, %v1184
        %v1186 = vpop.f32.mrb[0].mxu0
        %v1187 = vpop.f32.mrb[0].mxu0
        %v1188 = vadd.f32 %v1043, %v1187
        %v1189 = vpop.f32.mrb[0].mxu0
        %1190 = vmatprep.mubr.bf16.mxu0 0
        %1191 = vmatmul.mubr.bf16.gmra.mrb[0].mxu0 %v1086
        %v1192 = vpop.f32.mrb[0].mxu0
        %v1193 = vadd.f32 %v1043, %v1192
        %v1194 = vpop.f32.mrb[0].mxu0
        %v1195 = vpop.f32.mrb[0].mxu0
        %v1196 = vadd.f32 %v1043, %v1195
        %v1197 = vpop.f32.mrb[0].mxu0
        %1198 = vmatprep.mubr.bf16.mxu0 0
        %1199 = vmatmul.mubr.bf16.gmra.mrb[0].mxu0 %v1089
        %v1200 = vpop.f32.mrb[0].mxu0
        %v1201 = vadd.f32 %v1043, %v1200
        %v1202 = vpop.f32.mrb[0].mxu0
        %v1203 = vpop.f32.mrb[0].mxu0
        %v1204 = vadd.f32 %v1043, %v1203
        %v1205 = vpop.f32.mrb[0].mxu0
        %1206 = vmatprep.mubr.bf16.mxu0 0
        %1207 = vmatmul.mubr.bf16.gmra.mrb[0].mxu0 %v1092
        %v1208 = vpop.f32.mrb[0].mxu0
        %v1209 = vadd.f32 %v1043, %v1208
        %v1210 = vpop.f32.mrb[0].mxu0
        %v1211 = vpop.f32.mrb[0].mxu0
        %v1212 = vadd.f32 %v1043, %v1211
        %v1213 = vpop.f32.mrb[0].mxu0
        %1214 = vdwg.mxu0
        %1215 = vmax.xlane.f32.xlu0 %v1153
        %v1216 = vpop.xlane.xlu0 %1215
        %1217 = vmax.xlane.f32.xlu0 %v1156
        %v1218 = vpop.xlane.xlu0 %1217
        %1219 = vmax.xlane.f32.xlu0 %v1161
        %v1220 = vpop.xlane.xlu0 %1219
        %1221 = vmax.xlane.f32.xlu0 %v1164
        %v1222 = vpop.xlane.xlu0 %1221
        %1223 = vmax.xlane.f32.xlu0 %v1169
        %v1224 = vpop.xlane.xlu0 %1223
        %1225 = vmax.xlane.f32.xlu0 %v1172
        %v1226 = vpop.xlane.xlu0 %1225
        %1227 = vmax.xlane.f32.xlu0 %v1177
        %v1228 = vpop.xlane.xlu0 %1227
        %1229 = vmax.xlane.f32.xlu0 %v1180
        %v1230 = vpop.xlane.xlu0 %1229
        %1231 = vmax.xlane.f32.xlu0 %v1185
        %v1232 = vpop.xlane.xlu0 %1231
        %1233 = vmax.xlane.f32.xlu0 %v1188
        %v1234 = vpop.xlane.xlu0 %1233
        %1235 = vmax.xlane.f32.xlu0 %v1193
        %v1236 = vpop.xlane.xlu0 %1235
        %1237 = vmax.xlane.f32.xlu0 %v1196
        %v1238 = vpop.xlane.xlu0 %1237
        %1239 = vmax.xlane.f32.xlu0 %v1201
        %v1240 = vpop.xlane.xlu0 %1239
        %1241 = vmax.xlane.f32.xlu0 %v1204
        %v1242 = vpop.xlane.xlu0 %1241
        %1243 = vmax.xlane.f32.xlu0 %v1209
        %v1244 = vpop.xlane.xlu0 %1243
        %1245 = vmax.xlane.f32.xlu0 %v1212
        %v1246 = vpop.xlane.xlu0 %1245
        %v1247 = vsub.f32 %v1153, %v1216
        %v1248 = vsub.f32 %v1156, %v1218
        %v1249 = vsub.f32 %v1161, %v1220
        %v1250 = vsub.f32 %v1164, %v1222
        %v1251 = vsub.f32 %v1169, %v1224
        %v1252 = vsub.f32 %v1172, %v1226
        %v1253 = vsub.f32 %v1177, %v1228
        %v1254 = vsub.f32 %v1180, %v1230
        %v1255 = vsub.f32 %v1185, %v1232
        %v1256 = vsub.f32 %v1188, %v1234
        %v1257 = vsub.f32 %v1193, %v1236
        %v1258 = vsub.f32 %v1196, %v1238
        %v1259 = vsub.f32 %v1201, %v1240
        %v1260 = vsub.f32 %v1204, %v1242
        %v1261 = vsub.f32 %v1209, %v1244
        %v1262 = vsub.f32 %v1212, %v1246
        %v1263 = vmul.f32 %v1247, 1.442695
        %v1264 = vpow.pop %v1263
        %v1265 = vmul.f32 %v1248, 1.442695
        %v1266 = vpow.pop %v1265
        %v1267 = vmul.f32 %v1249, 1.442695
        %v1268 = vpow.pop %v1267
        %v1269 = vmul.f32 %v1250, 1.442695
        %v1270 = vpow.pop %v1269
        %v1271 = vmul.f32 %v1251, 1.442695
        %v1272 = vpow.pop %v1271
        %v1273 = vmul.f32 %v1252, 1.442695
        %v1274 = vpow.pop %v1273
        %v1275 = vmul.f32 %v1253, 1.442695
        %v1276 = vpow.pop %v1275
        %v1277 = vmul.f32 %v1254, 1.442695
        %v1278 = vpow.pop %v1277
        %v1279 = vmul.f32 %v1255, 1.442695
        %v1280 = vpow.pop %v1279
        %v1281 = vmul.f32 %v1256, 1.442695
        %v1282 = vpow.pop %v1281
        %v1283 = vmul.f32 %v1257, 1.442695
        %v1284 = vpow.pop %v1283
        %v1285 = vmul.f32 %v1258, 1.442695
        %v1286 = vpow.pop %v1285
        %v1287 = vmul.f32 %v1259, 1.442695
        %v1288 = vpow.pop %v1287
        %v1289 = vmul.f32 %v1260, 1.442695
        %v1290 = vpow.pop %v1289
        %v1291 = vmul.f32 %v1261, 1.442695
        %v1292 = vpow.pop %v1291
        %v1293 = vmul.f32 %v1262, 1.442695
        %v1294 = vpow.pop %v1293
        %1295 = vadd.xlane.f32.xlu0 %v1264
        %v1296 = vpop.xlane.xlu0 %1295
        %1297 = vadd.xlane.f32.xlu0 %v1266
        %v1298 = vpop.xlane.xlu0 %1297
        %1299 = vadd.xlane.f32.xlu0 %v1268
        %v1300 = vpop.xlane.xlu0 %1299
        %1301 = vadd.xlane.f32.xlu0 %v1270
        %v1302 = vpop.xlane.xlu0 %1301
        %1303 = vadd.xlane.f32.xlu0 %v1272
        %v1304 = vpop.xlane.xlu0 %1303
        %1305 = vadd.xlane.f32.xlu0 %v1274
        %v1306 = vpop.xlane.xlu0 %1305
        %1307 = vadd.xlane.f32.xlu0 %v1276
        %v1308 = vpop.xlane.xlu0 %1307
        %1309 = vadd.xlane.f32.xlu0 %v1278
        %v1310 = vpop.xlane.xlu0 %1309
        %1311 = vadd.xlane.f32.xlu0 %v1280
        %v1312 = vpop.xlane.xlu0 %1311
        %1313 = vadd.xlane.f32.xlu0 %v1282
        %v1314 = vpop.xlane.xlu0 %1313
        %1315 = vadd.xlane.f32.xlu0 %v1284
        %v1316 = vpop.xlane.xlu0 %1315
        %1317 = vadd.xlane.f32.xlu0 %v1286
        %v1318 = vpop.xlane.xlu0 %1317
        %1319 = vadd.xlane.f32.xlu0 %v1288
        %v1320 = vpop.xlane.xlu0 %1319
        %1321 = vadd.xlane.f32.xlu0 %v1290
        %v1322 = vpop.xlane.xlu0 %1321
        %1323 = vadd.xlane.f32.xlu0 %v1292
        %v1324 = vpop.xlane.xlu0 %1323
        %1325 = vadd.xlane.f32.xlu0 %v1294
        %v1326 = vpop.xlane.xlu0 %1325
        %v1327 = vpack.c.bf16 %v1266, %v1264
        %v1328 = vpack.c.bf16 %v1270, %v1268
        %v1329 = vpack.c.bf16 %v1274, %v1272
        %v1330 = vpack.c.bf16 %v1278, %v1276
        %v1331 = vpack.c.bf16 %v1282, %v1280
        %v1332 = vpack.c.bf16 %v1286, %v1284
        %v1333 = vpack.c.bf16 %v1290, %v1288
        %v1334 = vpack.c.bf16 %v1294, %v1292
        %1335 = vmatprep.subr.bf16.mxu0 0
        %1336 = vmatpush1.bf16.msra.mxu0 %v1061
        %1337 = vmatprep.subr.bf16.mxu0 0
        %1338 = vmatpush1.bf16.msra.mxu0 %v1062
        %1339 = vmatprep.subr.bf16.mxu0 0
        %1340 = vmatpush1.bf16.msra.mxu0 %v1063
        %1341 = vmatprep.subr.bf16.mxu0 0
        %1342 = vmatpush1.bf16.msra.mxu0 %v1064
        %1343 = vmatprep.subr.bf16.mxu0 0
        %1344 = vmatpush1.bf16.msra.mxu0 %v1065
        %1345 = vmatprep.subr.bf16.mxu0 0
        %1346 = vmatpush1.bf16.msra.mxu0 %v1066
        %1347 = vmatprep.subr.bf16.mxu0 0
        %1348 = vmatpush1.bf16.msra.mxu0 %v1067
        %1349 = vmatprep.subr.bf16.mxu0 0
        %1350 = vmatpush1.bf16.msra.mxu0 %v1068
        %1351 = vmatprep.subr.bf16.mxu0 0
        %1352 = vmatpush1.bf16.msra.mxu0 0
        %1353 = vmatprep.subr.bf16.mxu0 0
        %1354 = vmatpush1.bf16.msra.mxu0 0
        %1355 = vmatprep.subr.bf16.mxu0 0
        %1356 = vmatpush1.bf16.msra.mxu0 0
        %1357 = vmatprep.subr.bf16.mxu0 0
        %1358 = vmatpush1.bf16.msra.mxu0 0
        %1359 = vmatprep.subr.bf16.mxu0 0
        %1360 = vmatpush1.bf16.msra.mxu0 0
        %1361 = vmatprep.subr.bf16.mxu0 0
        %1362 = vmatpush1.bf16.msra.mxu0 0
        %1363 = vmatprep.subr.bf16.mxu0 0
        %1364 = vmatpush1.bf16.msra.mxu0 0
        %1365 = vmatprep.subr.bf16.mxu0 0
        %1366 = vmatpush1.bf16.msra.mxu0 0
        %1367 = vmatprep.mubr.bf16.mxu0 0
        %1368 = vmatmul.mubr.bf16.gmra.mrb[0].mxu0 %v1327
        %v1369 = vpop.f32.mrb[0].mxu0
        %v1370 = vadd.f32 0.0, %v1369
        %v1371 = vpop.f32.mrb[0].mxu0
        %v1372 = vpop.f32.mrb[0].mxu0
        %v1373 = vadd.f32 0.0, %v1372
        %v1374 = vpop.f32.mrb[0].mxu0
        %1375 = vmatprep.mubr.bf16.mxu0 0
        %1376 = vmatmul.mubr.bf16.gmra.mrb[0].mxu0 %v1328
        %v1377 = vpop.f32.mrb[0].mxu0
        %v1378 = vadd.f32 0.0, %v1377
        %v1379 = vpop.f32.mrb[0].mxu0
        %v1380 = vpop.f32.mrb[0].mxu0
        %v1381 = vadd.f32 0.0, %v1380
        %v1382 = vpop.f32.mrb[0].mxu0
        %1383 = vmatprep.mubr.bf16.mxu0 0
        %1384 = vmatmul.mubr.bf16.gmra.mrb[0].mxu0 %v1329
        %v1385 = vpop.f32.mrb[0].mxu0
        %v1386 = vadd.f32 0.0, %v1385
        %v1387 = vpop.f32.mrb[0].mxu0
        %v1388 = vpop.f32.mrb[0].mxu0
        %v1389 = vadd.f32 0.0, %v1388
        %v1390 = vpop.f32.mrb[0].mxu0
        %1391 = vmatprep.mubr.bf16.mxu0 0
        %1392 = vmatmul.mubr.bf16.gmra.mrb[0].mxu0 %v1330
        %v1393 = vpop.f32.mrb[0].mxu0
        %v1394 = vadd.f32 0.0, %v1393
        %v1395 = vpop.f32.mrb[0].mxu0
        %v1396 = vpop.f32.mrb[0].mxu0
        %v1397 = vadd.f32 0.0, %v1396
        %v1398 = vpop.f32.mrb[0].mxu0
        %1399 = vmatprep.mubr.bf16.mxu0 0
        %1400 = vmatmul.mubr.bf16.gmra.mrb[0].mxu0 %v1331
        %v1401 = vpop.f32.mrb[0].mxu0
        %v1402 = vadd.f32 0.0, %v1401
        %v1403 = vpop.f32.mrb[0].mxu0
        %v1404 = vpop.f32.mrb[0].mxu0
        %v1405 = vadd.f32 0.0, %v1404
        %v1406 = vpop.f32.mrb[0].mxu0
        %1407 = vmatprep.mubr.bf16.mxu0 0
        %1408 = vmatmul.mubr.bf16.gmra.mrb[0].mxu0 %v1332
        %v1409 = vpop.f32.mrb[0].mxu0
        %v1410 = vadd.f32 0.0, %v1409
        %v1411 = vpop.f32.mrb[0].mxu0
        %v1412 = vpop.f32.mrb[0].mxu0
        %v1413 = vadd.f32 0.0, %v1412
        %v1414 = vpop.f32.mrb[0].mxu0
        %1415 = vmatprep.mubr.bf16.mxu0 0
        %1416 = vmatmul.mubr.bf16.gmra.mrb[0].mxu0 %v1333
        %v1417 = vpop.f32.mrb[0].mxu0
        %v1418 = vadd.f32 0.0, %v1417
        %v1419 = vpop.f32.mrb[0].mxu0
        %v1420 = vpop.f32.mrb[0].mxu0
        %v1421 = vadd.f32 0.0, %v1420
        %v1422 = vpop.f32.mrb[0].mxu0
        %1423 = vmatprep.mubr.bf16.mxu0 0
        %1424 = vmatmul.mubr.bf16.gmra.mrb[0].mxu0 %v1334
        %v1425 = vpop.f32.mrb[0].mxu0
        %v1426 = vadd.f32 0.0, %v1425
        %v1427 = vpop.f32.mrb[0].mxu0
        %v1428 = vpop.f32.mrb[0].mxu0
        %v1429 = vadd.f32 0.0, %v1428
        %v1430 = vpop.f32.mrb[0].mxu0
        %1431 = vdwg.mxu0
        %v1432 = vrcp.pop %v1296
        %v1433 = vrcp.pop %v1298
        %v1434 = vrcp.pop %v1300
        %v1435 = vrcp.pop %v1302
        %v1436 = vrcp.pop %v1304
        %v1437 = vrcp.pop %v1306
        %v1438 = vrcp.pop %v1308
        %v1439 = vrcp.pop %v1310
        %v1440 = vrcp.pop %v1312
        %v1441 = vrcp.pop %v1314
        %v1442 = vrcp.pop %v1316
        %v1443 = vrcp.pop %v1318
        %v1444 = vrcp.pop %v1320
        %v1445 = vrcp.pop %v1322
        %v1446 = vrcp.pop %v1324
        %v1447 = vrcp.pop %v1326
        %v1448 = vmul.f32 %v1370, %v1432
        %v1449 = vmul.f32 %v1373, %v1433
        %v1450 = vmul.f32 %v1378, %v1434
        %v1451 = vmul.f32 %v1381, %v1435
        %v1452 = vmul.f32 %v1386, %v1436
        %v1453 = vmul.f32 %v1389, %v1437
        %v1454 = vmul.f32 %v1394, %v1438
        %v1455 = vmul.f32 %v1397, %v1439
        %v1456 = vmul.f32 %v1402, %v1440
        %v1457 = vmul.f32 %v1405, %v1441
        %v1458 = vmul.f32 %v1410, %v1442
        %v1459 = vmul.f32 %v1413, %v1443
        %v1460 = vmul.f32 %v1418, %v1444
        %v1461 = vmul.f32 %v1421, %v1445
        %v1462 = vmul.f32 %v1426, %v1446
        %v1463 = vmul.f32 %v1429, %v1447
        %v1464 = vpack.c.bf16 %v1449, %v1448
        %v1465 = vpack.c.bf16 %v1451, %v1450
        %v1466 = vpack.c.bf16 %v1453, %v1452
        %v1467 = vpack.c.bf16 %v1455, %v1454
        %v1468 = vpack.c.bf16 %v1457, %v1456
        %v1469 = vpack.c.bf16 %v1459, %v1458
        %v1470 = vpack.c.bf16 %v1461, %v1460
        %v1471 = vpack.c.bf16 %v1463, %v1462
        %1472 = vst.msk [vmem:[#allocation3] sm:$0xff] %vm1069, %v1464
        %1473 = vst.msk [vmem:[#allocation3 + $0x8] sm:$0xff] %vm1069, %v1465
        %1474 = vst.msk [vmem:[#allocation3 + $0x10] sm:$0xff] %vm1069, %v1466
        %1475 = vst.msk [vmem:[#allocation3 + $0x18] sm:$0xff] %vm1069, %v1467
        %1476 = vst.msk [vmem:[#allocation3 + $0x20] sm:$0xff] %vm1069, %v1468
        %1477 = vst.msk [vmem:[#allocation3 + $0x28] sm:$0xff] %vm1069, %v1469
        %1478 = vst.msk [vmem:[#allocation3 + $0x30] sm:$0xff] %vm1069, %v1470
        %1479 = vst.msk [vmem:[#allocation3 + $0x38] sm:$0xff] %vm1069, %v1471
        %v1480 = vld [vmem:[#allocation2] sm:$0xff]
        %v1481 = vld [vmem:[#allocation2 + $0x18] sm:$0xff]
        %v1482 = vld [vmem:[#allocation2 + $0x30] sm:$0xff]
        %v1483 = vld [vmem:[#allocation2 + $0x48] sm:$0xff]
        %v1484 = vld [vmem:[#allocation2 + $0x60] sm:$0xff]
        %v1485 = vld [vmem:[#allocation2 + $0x78] sm:$0xff]
        %v1486 = vld [vmem:[#allocation2 + $0x90] sm:$0xff]
        %v1487 = vld [vmem:[#allocation2 + $0xa8] sm:$0xff]
        %v1488 = vld [vmem:[#allocation2 + $0x8] sm:$0xff]
        %v1489 = vld [vmem:[#allocation2 + $0x20] sm:$0xff]
        %v1490 = vld [vmem:[#allocation2 + $0x38] sm:$0xff]
        %v1491 = vld [vmem:[#allocation2 + $0x50] sm:$0xff]
        %v1492 = vld [vmem:[#allocation2 + $0x68] sm:$0xff]
        %v1493 = vld [vmem:[#allocation2 + $0x80] sm:$0xff]
        %v1494 = vld [vmem:[#allocation2 + $0x98] sm:$0xff]
        %v1495 = vld [vmem:[#allocation2 + $0xb0] sm:$0xff]
        %v1496 = vld [vmem:[#allocation2 + $0x10] sm:$0xff]
        %v1497 = vld [vmem:[#allocation2 + $0x28] sm:$0xff]
        %v1498 = vld [vmem:[#allocation2 + $0x40] sm:$0xff]
        %v1499 = vld [vmem:[#allocation2 + $0x58] sm:$0xff]
        %v1500 = vld [vmem:[#allocation2 + $0x70] sm:$0xff]
        %v1501 = vld [vmem:[#allocation2 + $0x88] sm:$0xff]
        %v1502 = vld [vmem:[#allocation2 + $0xa0] sm:$0xff]
        %v1503 = vld [vmem:[#allocation2 + $0xb8] sm:$0xff]
        %1512 = vrot.lane.b32.xlu0 %v1480, 96
        %v1513 = vpop.permute.xlu0 %1512
        %1514 = vrot.lane.b32.xlu0 %v1481, 96
        %v1515 = vpop.permute.xlu0 %1514
        %1516 = vrot.lane.b32.xlu0 %v1482, 96
        %v1517 = vpop.permute.xlu0 %1516
        %1518 = vrot.lane.b32.xlu0 %v1483, 96
        %v1519 = vpop.permute.xlu0 %1518
        %1520 = vrot.lane.b32.xlu0 %v1484, 96
        %v1521 = vpop.permute.xlu0 %1520
        %1522 = vrot.lane.b32.xlu0 %v1485, 96
        %v1523 = vpop.permute.xlu0 %1522
        %1524 = vrot.lane.b32.xlu0 %v1486, 96
        %v1525 = vpop.permute.xlu0 %1524
        %1526 = vrot.lane.b32.xlu0 %v1487, 96
        %v1527 = vpop.permute.xlu0 %1526
        %1536 = vrot.lane.b32.xlu0 %v1488, 96
        %v1537 = vpop.permute.xlu0 %1536
        %1538 = vrot.lane.b32.xlu0 %v1489, 96
        %v1539 = vpop.permute.xlu0 %1538
        %1540 = vrot.lane.b32.xlu0 %v1490, 96
        %v1541 = vpop.permute.xlu0 %1540
        %1542 = vrot.lane.b32.xlu0 %v1491, 96
        %v1543 = vpop.permute.xlu0 %1542
        %1544 = vrot.lane.b32.xlu0 %v1492, 96
        %v1545 = vpop.permute.xlu0 %1544
        %1546 = vrot.lane.b32.xlu0 %v1493, 96
        %v1547 = vpop.permute.xlu0 %1546
        %1548 = vrot.lane.b32.xlu0 %v1494, 96
        %v1549 = vpop.permute.xlu0 %1548
        %1550 = vrot.lane.b32.xlu0 %v1495, 96
        %v1551 = vpop.permute.xlu0 %1550
        %v1553 = vsel %vm1069, %v1513, 0
        %v1556 = vsel %vm1069, %v1515, 0
        %v1559 = vsel %vm1069, %v1517, 0
        %v1562 = vsel %vm1069, %v1519, 0
        %v1565 = vsel %vm1069, %v1521, 0
        %v1568 = vsel %vm1069, %v1523, 0
        %v1571 = vsel %vm1069, %v1525, 0
        %v1574 = vsel %vm1069, %v1527, 0
        %v1577 = vsel %vm1069, %v1537, 0
        %v1580 = vsel %vm1069, %v1539, 0
        %v1583 = vsel %vm1069, %v1541, 0
        %v1586 = vsel %vm1069, %v1543, 0
        %v1589 = vsel %vm1069, %v1545, 0
        %v1592 = vsel %vm1069, %v1547, 0
        %v1595 = vsel %vm1069, %v1549, 0
        %v1598 = vsel %vm1069, %v1551, 0
        %1600 = vmatprep.subr.bf16.mxu0 0
        %1601 = vmatpush1.bf16.xpose.msra.mxu0 %v1577
        %1602 = vmatprep.subr.bf16.mxu0 0
        %1603 = vmatpush1.bf16.xpose.msra.mxu0 %v1580
        %1604 = vmatprep.subr.bf16.mxu0 0
        %1605 = vmatpush1.bf16.xpose.msra.mxu0 %v1583
        %1606 = vmatprep.subr.bf16.mxu0 0
        %1607 = vmatpush1.bf16.xpose.msra.mxu0 %v1586
        %1608 = vmatprep.subr.bf16.mxu0 0
        %1609 = vmatpush1.bf16.xpose.msra.mxu0 %v1589
        %1610 = vmatprep.subr.bf16.mxu0 0
        %1611 = vmatpush1.bf16.xpose.msra.mxu0 %v1592
        %1612 = vmatprep.subr.bf16.mxu0 0
        %1613 = vmatpush1.bf16.xpose.msra.mxu0 %v1595
        %1614 = vmatprep.subr.bf16.mxu0 0
        %1615 = vmatpush1.bf16.xpose.msra.mxu0 %v1598
        %1616 = vmatprep.subr.bf16.mxu0 0
        %1617 = vmatpush1.bf16.xpose.msra.mxu0 0
        %1618 = vmatprep.subr.bf16.mxu0 0
        %1619 = vmatpush1.bf16.xpose.msra.mxu0 0
        %1620 = vmatprep.subr.bf16.mxu0 0
        %1621 = vmatpush1.bf16.xpose.msra.mxu0 0
        %1622 = vmatprep.subr.bf16.mxu0 0
        %1623 = vmatpush1.bf16.xpose.msra.mxu0 0
        %1624 = vmatprep.subr.bf16.mxu0 0
        %1625 = vmatpush1.bf16.xpose.msra.mxu0 0
        %1626 = vmatprep.subr.bf16.mxu0 0
        %1627 = vmatpush1.bf16.xpose.msra.mxu0 0
        %1628 = vmatprep.subr.bf16.mxu0 0
        %1629 = vmatpush1.bf16.xpose.msra.mxu0 0
        %1630 = vmatprep.subr.bf16.mxu0 0
        %1631 = vmatpush1.bf16.xpose.msra.mxu0 0
        %1632 = vmatprep.mubr.bf16.mxu0 0
        %1633 = vmatmul.mubr.bf16.gmra.mrb[0].mxu0 %v1553
        %v1634 = vpop.f32.mrb[0].mxu0
        %v1635 = vadd.f32 %v1043, %v1634
        %v1636 = vpop.f32.mrb[0].mxu0
        %v1637 = vpop.f32.mrb[0].mxu0
        %v1638 = vadd.f32 %v1043, %v1637
        %v1639 = vpop.f32.mrb[0].mxu0
        %1640 = vmatprep.mubr.bf16.mxu0 0
        %1641 = vmatmul.mubr.bf16.gmra.mrb[0].mxu0 %v1556
        %v1642 = vpop.f32.mrb[0].mxu0
        %v1643 = vadd.f32 %v1043, %v1642
        %v1644 = vpop.f32.mrb[0].mxu0
        %v1645 = vpop.f32.mrb[0].mxu0
        %v1646 = vadd.f32 %v1043, %v1645
        %v1647 = vpop.f32.mrb[0].mxu0
        %1648 = vmatprep.mubr.bf16.mxu0 0
        %1649 = vmatmul.mubr.bf16.gmra.mrb[0].mxu0 %v1559
        %v1650 = vpop.f32.mrb[0].mxu0
        %v1651 = vadd.f32 %v1043, %v1650
        %v1652 = vpop.f32.mrb[0].mxu0
        %v1653 = vpop.f32.mrb[0].mxu0
        %v1654 = vadd.f32 %v1043, %v1653
        %v1655 = vpop.f32.mrb[0].mxu0
        %1656 = vmatprep.mubr.bf16.mxu0 0
        %1657 = vmatmul.mubr.bf16.gmra.mrb[0].mxu0 %v1562
        %v1658 = vpop.f32.mrb[0].mxu0
        %v1659 = vadd.f32 %v1043, %v1658
        %v1660 = vpop.f32.mrb[0].mxu0
        %v1661 = vpop.f32.mrb[0].mxu0
        %v1662 = vadd.f32 %v1043, %v1661
        %v1663 = vpop.f32.mrb[0].mxu0
        %1664 = vmatprep.mubr.bf16.mxu0 0
        %1665 = vmatmul.mubr.bf16.gmra.mrb[0].mxu0 %v1565
        %v1666 = vpop.f32.mrb[0].mxu0
        %v1667 = vadd.f32 %v1043, %v1666
        %v1668 = vpop.f32.mrb[0].mxu0
        %v1669 = vpop.f32.mrb[0].mxu0
        %v1670 = vadd.f32 %v1043, %v1669
        %v1671 = vpop.f32.mrb[0].mxu0
        %1672 = vmatprep.mubr.bf16.mxu0 0
        %1673 = vmatmul.mubr.bf16.gmra.mrb[0].mxu0 %v1568
        %v1674 = vpop.f32.mrb[0].mxu0
        %v1675 = vadd.f32 %v1043, %v1674
        %v1676 = vpop.f32.mrb[0].mxu0
        %v1677 = vpop.f32.mrb[0].mxu0
        %v1678 = vadd.f32 %v1043, %v1677
        %v1679 = vpop.f32.mrb[0].mxu0
        %1680 = vmatprep.mubr.bf16.mxu0 0
        %1681 = vmatmul.mubr.bf16.gmra.mrb[0].mxu0 %v1571
        %v1682 = vpop.f32.mrb[0].mxu0
        %v1683 = vadd.f32 %v1043, %v1682
        %v1684 = vpop.f32.mrb[0].mxu0
        %v1685 = vpop.f32.mrb[0].mxu0
        %v1686 = vadd.f32 %v1043, %v1685
        %v1687 = vpop.f32.mrb[0].mxu0
        %1688 = vmatprep.mubr.bf16.mxu0 0
        %1689 = vmatmul.mubr.bf16.gmra.mrb[0].mxu0 %v1574
        %v1690 = vpop.f32.mrb[0].mxu0
        %v1691 = vadd.f32 %v1043, %v1690
        %v1692 = vpop.f32.mrb[0].mxu0
        %v1693 = vpop.f32.mrb[0].mxu0
        %v1694 = vadd.f32 %v1043, %v1693
        %v1695 = vpop.f32.mrb[0].mxu0
        %1696 = vdwg.mxu0
        %1697 = vmax.xlane.f32.xlu0 %v1635
        %v1698 = vpop.xlane.xlu0 %1697
        %1699 = vmax.xlane.f32.xlu0 %v1638
        %v1700 = vpop.xlane.xlu0 %1699
        %1701 = vmax.xlane.f32.xlu0 %v1643
        %v1702 = vpop.xlane.xlu0 %1701
        %1703 = vmax.xlane.f32.xlu0 %v1646
        %v1704 = vpop.xlane.xlu0 %1703
        %1705 = vmax.xlane.f32.xlu0 %v1651
        %v1706 = vpop.xlane.xlu0 %1705
        %1707 = vmax.xlane.f32.xlu0 %v1654
        %v1708 = vpop.xlane.xlu0 %1707
        %1709 = vmax.xlane.f32.xlu0 %v1659
        %v1710 = vpop.xlane.xlu0 %1709
        %1711 = vmax.xlane.f32.xlu0 %v1662
        %v1712 = vpop.xlane.xlu0 %1711
        %1713 = vmax.xlane.f32.xlu0 %v1667
        %v1714 = vpop.xlane.xlu0 %1713
        %1715 = vmax.xlane.f32.xlu0 %v1670
        %v1716 = vpop.xlane.xlu0 %1715
        %1717 = vmax.xlane.f32.xlu0 %v1675
        %v1718 = vpop.xlane.xlu0 %1717
        %1719 = vmax.xlane.f32.xlu0 %v1678
        %v1720 = vpop.xlane.xlu0 %1719
        %1721 = vmax.xlane.f32.xlu0 %v1683
        %v1722 = vpop.xlane.xlu0 %1721
        %1723 = vmax.xlane.f32.xlu0 %v1686
        %v1724 = vpop.xlane.xlu0 %1723
        %1725 = vmax.xlane.f32.xlu0 %v1691
        %v1726 = vpop.xlane.xlu0 %1725
        %1727 = vmax.xlane.f32.xlu0 %v1694
        %v1728 = vpop.xlane.xlu0 %1727
        %v1729 = vsub.f32 %v1635, %v1698
        %v1730 = vsub.f32 %v1638, %v1700
        %v1731 = vsub.f32 %v1643, %v1702
        %v1732 = vsub.f32 %v1646, %v1704
        %v1733 = vsub.f32 %v1651, %v1706
        %v1734 = vsub.f32 %v1654, %v1708
        %v1735 = vsub.f32 %v1659, %v1710
        %v1736 = vsub.f32 %v1662, %v1712
        %v1737 = vsub.f32 %v1667, %v1714
        %v1738 = vsub.f32 %v1670, %v1716
        %v1739 = vsub.f32 %v1675, %v1718
        %v1740 = vsub.f32 %v1678, %v1720
        %v1741 = vsub.f32 %v1683, %v1722
        %v1742 = vsub.f32 %v1686, %v1724
        %v1743 = vsub.f32 %v1691, %v1726
        %v1744 = vsub.f32 %v1694, %v1728
        %v1745 = vmul.f32 %v1729, 1.442695
        %v1746 = vpow.pop %v1745
        %v1747 = vmul.f32 %v1730, 1.442695
        %v1748 = vpow.pop %v1747
        %v1749 = vmul.f32 %v1731, 1.442695
        %v1750 = vpow.pop %v1749
        %v1751 = vmul.f32 %v1732, 1.442695
        %v1752 = vpow.pop %v1751
        %v1753 = vmul.f32 %v1733, 1.442695
        %v1754 = vpow.pop %v1753
        %v1755 = vmul.f32 %v1734, 1.442695
        %v1756 = vpow.pop %v1755
        %v1757 = vmul.f32 %v1735, 1.442695
        %v1758 = vpow.pop %v1757
        %v1759 = vmul.f32 %v1736, 1.442695
        %v1760 = vpow.pop %v1759
        %v1761 = vmul.f32 %v1737, 1.442695
        %v1762 = vpow.pop %v1761
        %v1763 = vmul.f32 %v1738, 1.442695
        %v1764 = vpow.pop %v1763
        %v1765 = vmul.f32 %v1739, 1.442695
        %v1766 = vpow.pop %v1765
        %v1767 = vmul.f32 %v1740, 1.442695
        %v1768 = vpow.pop %v1767
        %v1769 = vmul.f32 %v1741, 1.442695
        %v1770 = vpow.pop %v1769
        %v1771 = vmul.f32 %v1742, 1.442695
        %v1772 = vpow.pop %v1771
        %v1773 = vmul.f32 %v1743, 1.442695
        %v1774 = vpow.pop %v1773
        %v1775 = vmul.f32 %v1744, 1.442695
        %v1776 = vpow.pop %v1775
        %1777 = vadd.xlane.f32.xlu0 %v1746
        %v1778 = vpop.xlane.xlu0 %1777
        %1779 = vadd.xlane.f32.xlu0 %v1748
        %v1780 = vpop.xlane.xlu0 %1779
        %1781 = vadd.xlane.f32.xlu0 %v1750
        %v1782 = vpop.xlane.xlu0 %1781
        %1783 = vadd.xlane.f32.xlu0 %v1752
        %v1784 = vpop.xlane.xlu0 %1783
        %1785 = vadd.xlane.f32.xlu0 %v1754
        %v1786 = vpop.xlane.xlu0 %1785
        %1787 = vadd.xlane.f32.xlu0 %v1756
        %v1788 = vpop.xlane.xlu0 %1787
        %1789 = vadd.xlane.f32.xlu0 %v1758
        %v1790 = vpop.xlane.xlu0 %1789
        %1791 = vadd.xlane.f32.xlu0 %v1760
        %v1792 = vpop.xlane.xlu0 %1791
        %1793 = vadd.xlane.f32.xlu0 %v1762
        %v1794 = vpop.xlane.xlu0 %1793
        %1795 = vadd.xlane.f32.xlu0 %v1764
        %v1796 = vpop.xlane.xlu0 %1795
        %1797 = vadd.xlane.f32.xlu0 %v1766
        %v1798 = vpop.xlane.xlu0 %1797
        %1799 = vadd.xlane.f32.xlu0 %v1768
        %v1800 = vpop.xlane.xlu0 %1799
        %1801 = vadd.xlane.f32.xlu0 %v1770
        %v1802 = vpop.xlane.xlu0 %1801
        %1803 = vadd.xlane.f32.xlu0 %v1772
        %v1804 = vpop.xlane.xlu0 %1803
        %1805 = vadd.xlane.f32.xlu0 %v1774
        %v1806 = vpop.xlane.xlu0 %1805
        %1807 = vadd.xlane.f32.xlu0 %v1776
        %v1808 = vpop.xlane.xlu0 %1807
        %v1809 = vpack.c.bf16 %v1748, %v1746
        %v1810 = vpack.c.bf16 %v1752, %v1750
        %v1811 = vpack.c.bf16 %v1756, %v1754
        %v1812 = vpack.c.bf16 %v1760, %v1758
        %v1813 = vpack.c.bf16 %v1764, %v1762
        %v1814 = vpack.c.bf16 %v1768, %v1766
        %v1815 = vpack.c.bf16 %v1772, %v1770
        %v1816 = vpack.c.bf16 %v1776, %v1774
        %1825 = vrot.lane.b32.xlu0 %v1496, 96
        %v1826 = vpop.permute.xlu0 %1825
        %1827 = vrot.lane.b32.xlu0 %v1497, 96
        %v1828 = vpop.permute.xlu0 %1827
        %1829 = vrot.lane.b32.xlu0 %v1498, 96
        %v1830 = vpop.permute.xlu0 %1829
        %1831 = vrot.lane.b32.xlu0 %v1499, 96
        %v1832 = vpop.permute.xlu0 %1831
        %1833 = vrot.lane.b32.xlu0 %v1500, 96
        %v1834 = vpop.permute.xlu0 %1833
        %1835 = vrot.lane.b32.xlu0 %v1501, 96
        %v1836 = vpop.permute.xlu0 %1835
        %1837 = vrot.lane.b32.xlu0 %v1502, 96
        %v1838 = vpop.permute.xlu0 %1837
        %1839 = vrot.lane.b32.xlu0 %v1503, 96
        %v1840 = vpop.permute.xlu0 %1839
        %1849 = vmatprep.subr.bf16.mxu0 0
        %1850 = vmatpush1.bf16.msra.mxu0 %v1826
        %1851 = vmatprep.subr.bf16.mxu0 0
        %1852 = vmatpush1.bf16.msra.mxu0 %v1828
        %1853 = vmatprep.subr.bf16.mxu0 0
        %1854 = vmatpush1.bf16.msra.mxu0 %v1830
        %1855 = vmatprep.subr.bf16.mxu0 0
        %1856 = vmatpush1.bf16.msra.mxu0 %v1832
        %1857 = vmatprep.subr.bf16.mxu0 0
        %1858 = vmatpush1.bf16.msra.mxu0 %v1834
        %1859 = vmatprep.subr.bf16.mxu0 0
        %1860 = vmatpush1.bf16.msra.mxu0 %v1836
        %1861 = vmatprep.subr.bf16.mxu0 0
        %1862 = vmatpush1.bf16.msra.mxu0 %v1838
        %1863 = vmatprep.subr.bf16.mxu0 0
        %1864 = vmatpush1.bf16.msra.mxu0 %v1840
        %1865 = vmatprep.subr.bf16.mxu0 0
        %1866 = vmatpush1.bf16.msra.mxu0 0
        %1867 = vmatprep.subr.bf16.mxu0 0
        %1868 = vmatpush1.bf16.msra.mxu0 0
        %1869 = vmatprep.subr.bf16.mxu0 0
        %1870 = vmatpush1.bf16.msra.mxu0 0
        %1871 = vmatprep.subr.bf16.mxu0 0
        %1872 = vmatpush1.bf16.msra.mxu0 0
        %1873 = vmatprep.subr.bf16.mxu0 0
        %1874 = vmatpush1.bf16.msra.mxu0 0
        %1875 = vmatprep.subr.bf16.mxu0 0
        %1876 = vmatpush1.bf16.msra.mxu0 0
        %1877 = vmatprep.subr.bf16.mxu0 0
        %1878 = vmatpush1.bf16.msra.mxu0 0
        %1879 = vmatprep.subr.bf16.mxu0 0
        %1880 = vmatpush1.bf16.msra.mxu0 0
        %1881 = vmatprep.mubr.bf16.mxu0 0
        %1882 = vmatmul.mubr.bf16.gmra.mrb[0].mxu0 %v1809
        %v1883 = vpop.f32.mrb[0].mxu0
        %v1884 = vadd.f32 0.0, %v1883
        %v1885 = vpop.f32.mrb[0].mxu0
        %v1886 = vpop.f32.mrb[0].mxu0
        %v1887 = vadd.f32 0.0, %v1886
        %v1888 = vpop.f32.mrb[0].mxu0
        %1889 = vmatprep.mubr.bf16.mxu0 0
        %1890 = vmatmul.mubr.bf16.gmra.mrb[0].mxu0 %v1810
        %v1891 = vpop.f32.mrb[0].mxu0
        %v1892 = vadd.f32 0.0, %v1891
        %v1893 = vpop.f32.mrb[0].mxu0
        %v1894 = vpop.f32.mrb[0].mxu0
        %v1895 = vadd.f32 0.0, %v1894
        %v1896 = vpop.f32.mrb[0].mxu0
        %1897 = vmatprep.mubr.bf16.mxu0 0
        %1898 = vmatmul.mubr.bf16.gmra.mrb[0].mxu0 %v1811
        %v1899 = vpop.f32.mrb[0].mxu0
        %v1900 = vadd.f32 0.0, %v1899
        %v1901 = vpop.f32.mrb[0].mxu0
        %v1902 = vpop.f32.mrb[0].mxu0
        %v1903 = vadd.f32 0.0, %v1902
        %v1904 = vpop.f32.mrb[0].mxu0
        %1905 = vmatprep.mubr.bf16.mxu0 0
        %1906 = vmatmul.mubr.bf16.gmra.mrb[0].mxu0 %v1812
        %v1907 = vpop.f32.mrb[0].mxu0
        %v1908 = vadd.f32 0.0, %v1907
        %v1909 = vpop.f32.mrb[0].mxu0
        %v1910 = vpop.f32.mrb[0].mxu0
        %v1911 = vadd.f32 0.0, %v1910
        %v1912 = vpop.f32.mrb[0].mxu0
        %1913 = vmatprep.mubr.bf16.mxu0 0
        %1914 = vmatmul.mubr.bf16.gmra.mrb[0].mxu0 %v1813
        %v1915 = vpop.f32.mrb[0].mxu0
        %v1916 = vadd.f32 0.0, %v1915
        %v1917 = vpop.f32.mrb[0].mxu0
        %v1918 = vpop.f32.mrb[0].mxu0
        %v1919 = vadd.f32 0.0, %v1918
        %v1920 = vpop.f32.mrb[0].mxu0
        %1921 = vmatprep.mubr.bf16.mxu0 0
        %1922 = vmatmul.mubr.bf16.gmra.mrb[0].mxu0 %v1814
        %v1923 = vpop.f32.mrb[0].mxu0
        %v1924 = vadd.f32 0.0, %v1923
        %v1925 = vpop.f32.mrb[0].mxu0
        %v1926 = vpop.f32.mrb[0].mxu0
        %v1927 = vadd.f32 0.0, %v1926
        %v1928 = vpop.f32.mrb[0].mxu0
        %1929 = vmatprep.mubr.bf16.mxu0 0
        %1930 = vmatmul.mubr.bf16.gmra.mrb[0].mxu0 %v1815
        %v1931 = vpop.f32.mrb[0].mxu0
        %v1932 = vadd.f32 0.0, %v1931
        %v1933 = vpop.f32.mrb[0].mxu0
        %v1934 = vpop.f32.mrb[0].mxu0
        %v1935 = vadd.f32 0.0, %v1934
        %v1936 = vpop.f32.mrb[0].mxu0
        %1937 = vmatprep.mubr.bf16.mxu0 0
        %1938 = vmatmul.mubr.bf16.gmra.mrb[0].mxu0 %v1816
        %v1939 = vpop.f32.mrb[0].mxu0
        %v1940 = vadd.f32 0.0, %v1939
        %v1941 = vpop.f32.mrb[0].mxu0
        %v1942 = vpop.f32.mrb[0].mxu0
        %v1943 = vadd.f32 0.0, %v1942
        %v1944 = vpop.f32.mrb[0].mxu0
        %1945 = vdwg.mxu0
        %v1946 = vrcp.pop %v1778
        %v1947 = vrcp.pop %v1780
        %v1948 = vrcp.pop %v1782
        %v1949 = vrcp.pop %v1784
        %v1950 = vrcp.pop %v1786
        %v1951 = vrcp.pop %v1788
        %v1952 = vrcp.pop %v1790
        %v1953 = vrcp.pop %v1792
        %v1954 = vrcp.pop %v1794
        %v1955 = vrcp.pop %v1796
        %v1956 = vrcp.pop %v1798
        %v1957 = vrcp.pop %v1800
        %v1958 = vrcp.pop %v1802
        %v1959 = vrcp.pop %v1804
        %v1960 = vrcp.pop %v1806
        %v1961 = vrcp.pop %v1808
        %v1962 = vmul.f32 %v1884, %v1946
        %v1963 = vmul.f32 %v1887, %v1947
        %v1964 = vmul.f32 %v1892, %v1948
        %v1965 = vmul.f32 %v1895, %v1949
        %v1966 = vmul.f32 %v1900, %v1950
        %v1967 = vmul.f32 %v1903, %v1951
        %v1968 = vmul.f32 %v1908, %v1952
        %v1969 = vmul.f32 %v1911, %v1953
        %v1970 = vmul.f32 %v1916, %v1954
        %v1971 = vmul.f32 %v1919, %v1955
        %v1972 = vmul.f32 %v1924, %v1956
        %v1973 = vmul.f32 %v1927, %v1957
        %v1974 = vmul.f32 %v1932, %v1958
        %v1975 = vmul.f32 %v1935, %v1959
        %v1976 = vmul.f32 %v1940, %v1960
        %v1977 = vmul.f32 %v1943, %v1961
        %v1978 = vpack.c.bf16 %v1963, %v1962
        %v1979 = vpack.c.bf16 %v1965, %v1964
        %v1980 = vpack.c.bf16 %v1967, %v1966
        %v1981 = vpack.c.bf16 %v1969, %v1968
        %v1982 = vpack.c.bf16 %v1971, %v1970
        %v1983 = vpack.c.bf16 %v1973, %v1972
        %v1984 = vpack.c.bf16 %v1975, %v1974
        %v1985 = vpack.c.bf16 %v1977, %v1976
        %1994 = vrot.lane.b32.xlu0 %v1978, 32
        %v1995 = vpop.permute.xlu0 %1994
        %1996 = vrot.lane.b32.xlu0 %v1979, 32
        %v1997 = vpop.permute.xlu0 %1996
        %1998 = vrot.lane.b32.xlu0 %v1980, 32
        %v1999 = vpop.permute.xlu0 %1998
        %2000 = vrot.lane.b32.xlu0 %v1981, 32
        %v2001 = vpop.permute.xlu0 %2000
        %2002 = vrot.lane.b32.xlu0 %v1982, 32
        %v2003 = vpop.permute.xlu0 %2002
        %2004 = vrot.lane.b32.xlu0 %v1983, 32
        %v2005 = vpop.permute.xlu0 %2004
        %2006 = vrot.lane.b32.xlu0 %v1984, 32
        %v2007 = vpop.permute.xlu0 %2006
        %2008 = vrot.lane.b32.xlu0 %v1985, 32
        %v2009 = vpop.permute.xlu0 %2008
        %vm2018 = vcmask 523520
        %2019 = vst.msk [vmem:[#allocation3] sm:$0xff] %vm2018, %v1995
        %2020 = vst.msk [vmem:[#allocation3 + $0x8] sm:$0xff] %vm2018, %v1997
        %2021 = vst.msk [vmem:[#allocation3 + $0x10] sm:$0xff] %vm2018, %v1999
        %2022 = vst.msk [vmem:[#allocation3 + $0x18] sm:$0xff] %vm2018, %v2001
        %2023 = vst.msk [vmem:[#allocation3 + $0x20] sm:$0xff] %vm2018, %v2003
        %2024 = vst.msk [vmem:[#allocation3 + $0x28] sm:$0xff] %vm2018, %v2005
        %2025 = vst.msk [vmem:[#allocation3 + $0x30] sm:$0xff] %vm2018, %v2007
        %2026 = vst.msk [vmem:[#allocation3 + $0x38] sm:$0xff] %vm2018, %v2009
        %v2027 = vld [vmem:[#allocation2] sm:$0xff]
        %v2028 = vld [vmem:[#allocation2 + $0x18] sm:$0xff]
        %v2029 = vld [vmem:[#allocation2 + $0x30] sm:$0xff]
        %v2030 = vld [vmem:[#allocation2 + $0x48] sm:$0xff]
        %v2031 = vld [vmem:[#allocation2 + $0x60] sm:$0xff]
        %v2032 = vld [vmem:[#allocation2 + $0x78] sm:$0xff]
        %v2033 = vld [vmem:[#allocation2 + $0x90] sm:$0xff]
        %v2034 = vld [vmem:[#allocation2 + $0xa8] sm:$0xff]
        %v2035 = vld [vmem:[#allocation2 + $0x8] sm:$0xff]
        %v2036 = vld [vmem:[#allocation2 + $0x20] sm:$0xff]
        %v2037 = vld [vmem:[#allocation2 + $0x38] sm:$0xff]
        %v2038 = vld [vmem:[#allocation2 + $0x50] sm:$0xff]
        %v2039 = vld [vmem:[#allocation2 + $0x68] sm:$0xff]
        %v2040 = vld [vmem:[#allocation2 + $0x80] sm:$0xff]
        %v2041 = vld [vmem:[#allocation2 + $0x98] sm:$0xff]
        %v2042 = vld [vmem:[#allocation2 + $0xb0] sm:$0xff]
        %v2043 = vld [vmem:[#allocation2 + $0x10] sm:$0xff]
        %v2044 = vld [vmem:[#allocation2 + $0x28] sm:$0xff]
        %v2045 = vld [vmem:[#allocation2 + $0x40] sm:$0xff]
        %v2046 = vld [vmem:[#allocation2 + $0x58] sm:$0xff]
        %v2047 = vld [vmem:[#allocation2 + $0x70] sm:$0xff]
        %v2048 = vld [vmem:[#allocation2 + $0x88] sm:$0xff]
        %v2049 = vld [vmem:[#allocation2 + $0xa0] sm:$0xff]
        %v2050 = vld [vmem:[#allocation2 + $0xb8] sm:$0xff]
        %2059 = vrot.lane.b32.xlu0 %v2027, 64
        %v2060 = vpop.permute.xlu0 %2059
        %2061 = vrot.lane.b32.xlu0 %v2028, 64
        %v2062 = vpop.permute.xlu0 %2061
        %2063 = vrot.lane.b32.xlu0 %v2029, 64
        %v2064 = vpop.permute.xlu0 %2063
        %2065 = vrot.lane.b32.xlu0 %v2030, 64
        %v2066 = vpop.permute.xlu0 %2065
        %2067 = vrot.lane.b32.xlu0 %v2031, 64
        %v2068 = vpop.permute.xlu0 %2067
        %2069 = vrot.lane.b32.xlu0 %v2032, 64
        %v2070 = vpop.permute.xlu0 %2069
        %2071 = vrot.lane.b32.xlu0 %v2033, 64
        %v2072 = vpop.permute.xlu0 %2071
        %2073 = vrot.lane.b32.xlu0 %v2034, 64
        %v2074 = vpop.permute.xlu0 %2073
        %2083 = vrot.lane.b32.xlu0 %v2035, 64
        %v2084 = vpop.permute.xlu0 %2083
        %2085 = vrot.lane.b32.xlu0 %v2036, 64
        %v2086 = vpop.permute.xlu0 %2085
        %2087 = vrot.lane.b32.xlu0 %v2037, 64
        %v2088 = vpop.permute.xlu0 %2087
        %2089 = vrot.lane.b32.xlu0 %v2038, 64
        %v2090 = vpop.permute.xlu0 %2089
        %2091 = vrot.lane.b32.xlu0 %v2039, 64
        %v2092 = vpop.permute.xlu0 %2091
        %2093 = vrot.lane.b32.xlu0 %v2040, 64
        %v2094 = vpop.permute.xlu0 %2093
        %2095 = vrot.lane.b32.xlu0 %v2041, 64
        %v2096 = vpop.permute.xlu0 %2095
        %2097 = vrot.lane.b32.xlu0 %v2042, 64
        %v2098 = vpop.permute.xlu0 %2097
        %v2100 = vsel %vm1069, %v2060, 0
        %v2103 = vsel %vm1069, %v2062, 0
        %v2106 = vsel %vm1069, %v2064, 0
        %v2109 = vsel %vm1069, %v2066, 0
        %v2112 = vsel %vm1069, %v2068, 0
        %v2115 = vsel %vm1069, %v2070, 0
        %v2118 = vsel %vm1069, %v2072, 0
        %v2121 = vsel %vm1069, %v2074, 0
        %v2124 = vsel %vm1069, %v2084, 0
        %v2127 = vsel %vm1069, %v2086, 0
        %v2130 = vsel %vm1069, %v2088, 0
        %v2133 = vsel %vm1069, %v2090, 0
        %v2136 = vsel %vm1069, %v2092, 0
        %v2139 = vsel %vm1069, %v2094, 0
        %v2142 = vsel %vm1069, %v2096, 0
        %v2145 = vsel %vm1069, %v2098, 0
        %2147 = vmatprep.subr.bf16.mxu0 0
        %2148 = vmatpush1.bf16.xpose.msra.mxu0 %v2124
        %2149 = vmatprep.subr.bf16.mxu0 0
        %2150 = vmatpush1.bf16.xpose.msra.mxu0 %v2127
        %2151 = vmatprep.subr.bf16.mxu0 0
        %2152 = vmatpush1.bf16.xpose.msra.mxu0 %v2130
        %2153 = vmatprep.subr.bf16.mxu0 0
        %2154 = vmatpush1.bf16.xpose.msra.mxu0 %v2133
        %2155 = vmatprep.subr.bf16.mxu0 0
        %2156 = vmatpush1.bf16.xpose.msra.mxu0 %v2136
        %2157 = vmatprep.subr.bf16.mxu0 0
        %2158 = vmatpush1.bf16.xpose.msra.mxu0 %v2139
        %2159 = vmatprep.subr.bf16.mxu0 0
        %2160 = vmatpush1.bf16.xpose.msra.mxu0 %v2142
        %2161 = vmatprep.subr.bf16.mxu0 0
        %2162 = vmatpush1.bf16.xpose.msra.mxu0 %v2145
        %2163 = vmatprep.subr.bf16.mxu0 0
        %2164 = vmatpush1.bf16.xpose.msra.mxu0 0
        %2165 = vmatprep.subr.bf16.mxu0 0
        %2166 = vmatpush1.bf16.xpose.msra.mxu0 0
        %2167 = vmatprep.subr.bf16.mxu0 0
        %2168 = vmatpush1.bf16.xpose.msra.mxu0 0
        %2169 = vmatprep.subr.bf16.mxu0 0
        %2170 = vmatpush1.bf16.xpose.msra.mxu0 0
        %2171 = vmatprep.subr.bf16.mxu0 0
        %2172 = vmatpush1.bf16.xpose.msra.mxu0 0
        %2173 = vmatprep.subr.bf16.mxu0 0
        %2174 = vmatpush1.bf16.xpose.msra.mxu0 0
        %2175 = vmatprep.subr.bf16.mxu0 0
        %2176 = vmatpush1.bf16.xpose.msra.mxu0 0
        %2177 = vmatprep.subr.bf16.mxu0 0
        %2178 = vmatpush1.bf16.xpose.msra.mxu0 0
        %2179 = vmatprep.mubr.bf16.mxu0 0
        %2180 = vmatmul.mubr.bf16.gmra.mrb[0].mxu0 %v2100
        %v2181 = vpop.f32.mrb[0].mxu0
        %v2182 = vadd.f32 %v1043, %v2181
        %v2183 = vpop.f32.mrb[0].mxu0
        %v2184 = vpop.f32.mrb[0].mxu0
        %v2185 = vadd.f32 %v1043, %v2184
        %v2186 = vpop.f32.mrb[0].mxu0
        %2187 = vmatprep.mubr.bf16.mxu0 0
        %2188 = vmatmul.mubr.bf16.gmra.mrb[0].mxu0 %v2103
        %v2189 = vpop.f32.mrb[0].mxu0
        %v2190 = vadd.f32 %v1043, %v2189
        %v2191 = vpop.f32.mrb[0].mxu0
        %v2192 = vpop.f32.mrb[0].mxu0
        %v2193 = vadd.f32 %v1043, %v2192
        %v2194 = vpop.f32.mrb[0].mxu0
        %2195 = vmatprep.mubr.bf16.mxu0 0
        %2196 = vmatmul.mubr.bf16.gmra.mrb[0].mxu0 %v2106
        %v2197 = vpop.f32.mrb[0].mxu0
        %v2198 = vadd.f32 %v1043, %v2197
        %v2199 = vpop.f32.mrb[0].mxu0
        %v2200 = vpop.f32.mrb[0].mxu0
        %v2201 = vadd.f32 %v1043, %v2200
        %v2202 = vpop.f32.mrb[0].mxu0
        %2203 = vmatprep.mubr.bf16.mxu0 0
        %2204 = vmatmul.mubr.bf16.gmra.mrb[0].mxu0 %v2109
        %v2205 = vpop.f32.mrb[0].mxu0
        %v2206 = vadd.f32 %v1043, %v2205
        %v2207 = vpop.f32.mrb[0].mxu0
        %v2208 = vpop.f32.mrb[0].mxu0
        %v2209 = vadd.f32 %v1043, %v2208
        %v2210 = vpop.f32.mrb[0].mxu0
        %2211 = vmatprep.mubr.bf16.mxu0 0
        %2212 = vmatmul.mubr.bf16.gmra.mrb[0].mxu0 %v2112
        %v2213 = vpop.f32.mrb[0].mxu0
        %v2214 = vadd.f32 %v1043, %v2213
        %v2215 = vpop.f32.mrb[0].mxu0
        %v2216 = vpop.f32.mrb[0].mxu0
        %v2217 = vadd.f32 %v1043, %v2216
        %v2218 = vpop.f32.mrb[0].mxu0
        %2219 = vmatprep.mubr.bf16.mxu0 0
        %2220 = vmatmul.mubr.bf16.gmra.mrb[0].mxu0 %v2115
        %v2221 = vpop.f32.mrb[0].mxu0
        %v2222 = vadd.f32 %v1043, %v2221
        %v2223 = vpop.f32.mrb[0].mxu0
        %v2224 = vpop.f32.mrb[0].mxu0
        %v2225 = vadd.f32 %v1043, %v2224
        %v2226 = vpop.f32.mrb[0].mxu0
        %2227 = vmatprep.mubr.bf16.mxu0 0
        %2228 = vmatmul.mubr.bf16.gmra.mrb[0].mxu0 %v2118
        %v2229 = vpop.f32.mrb[0].mxu0
        %v2230 = vadd.f32 %v1043, %v2229
        %v2231 = vpop.f32.mrb[0].mxu0
        %v2232 = vpop.f32.mrb[0].mxu0
        %v2233 = vadd.f32 %v1043, %v2232
        %v2234 = vpop.f32.mrb[0].mxu0
        %2235 = vmatprep.mubr.bf16.mxu0 0
        %2236 = vmatmul.mubr.bf16.gmra.mrb[0].mxu0 %v2121
        %v2237 = vpop.f32.mrb[0].mxu0
        %v2238 = vadd.f32 %v1043, %v2237
        %v2239 = vpop.f32.mrb[0].mxu0
        %v2240 = vpop.f32.mrb[0].mxu0
        %v2241 = vadd.f32 %v1043, %v2240
        %v2242 = vpop.f32.mrb[0].mxu0
        %2243 = vdwg.mxu0
        %2244 = vmax.xlane.f32.xlu0 %v2182
        %v2245 = vpop.xlane.xlu0 %2244
        %2246 = vmax.xlane.f32.xlu0 %v2185
        %v2247 = vpop.xlane.xlu0 %2246
        %2248 = vmax.xlane.f32.xlu0 %v2190
        %v2249 = vpop.xlane.xlu0 %2248
        %2250 = vmax.xlane.f32.xlu0 %v2193
        %v2251 = vpop.xlane.xlu0 %2250
        %2252 = vmax.xlane.f32.xlu0 %v2198
        %v2253 = vpop.xlane.xlu0 %2252
        %2254 = vmax.xlane.f32.xlu0 %v2201
        %v2255 = vpop.xlane.xlu0 %2254
        %2256 = vmax.xlane.f32.xlu0 %v2206
        %v2257 = vpop.xlane.xlu0 %2256
        %2258 = vmax.xlane.f32.xlu0 %v2209
        %v2259 = vpop.xlane.xlu0 %2258
        %2260 = vmax.xlane.f32.xlu0 %v2214
        %v2261 = vpop.xlane.xlu0 %2260
        %2262 = vmax.xlane.f32.xlu0 %v2217
        %v2263 = vpop.xlane.xlu0 %2262
        %2264 = vmax.xlane.f32.xlu0 %v2222
        %v2265 = vpop.xlane.xlu0 %2264
        %2266 = vmax.xlane.f32.xlu0 %v2225
        %v2267 = vpop.xlane.xlu0 %2266
        %2268 = vmax.xlane.f32.xlu0 %v2230
        %v2269 = vpop.xlane.xlu0 %2268
        %2270 = vmax.xlane.f32.xlu0 %v2233
        %v2271 = vpop.xlane.xlu0 %2270
        %2272 = vmax.xlane.f32.xlu0 %v2238
        %v2273 = vpop.xlane.xlu0 %2272
        %2274 = vmax.xlane.f32.xlu0 %v2241
        %v2275 = vpop.xlane.xlu0 %2274
        %v2276 = vsub.f32 %v2182, %v2245
        %v2277 = vsub.f32 %v2185, %v2247
        %v2278 = vsub.f32 %v2190, %v2249
        %v2279 = vsub.f32 %v2193, %v2251
        %v2280 = vsub.f32 %v2198, %v2253
        %v2281 = vsub.f32 %v2201, %v2255
        %v2282 = vsub.f32 %v2206, %v2257
        %v2283 = vsub.f32 %v2209, %v2259
        %v2284 = vsub.f32 %v2214, %v2261
        %v2285 = vsub.f32 %v2217, %v2263
        %v2286 = vsub.f32 %v2222, %v2265
        %v2287 = vsub.f32 %v2225, %v2267
        %v2288 = vsub.f32 %v2230, %v2269
        %v2289 = vsub.f32 %v2233, %v2271
        %v2290 = vsub.f32 %v2238, %v2273
        %v2291 = vsub.f32 %v2241, %v2275
        %v2292 = vmul.f32 %v2276, 1.442695
        %v2293 = vpow.pop %v2292
        %v2294 = vmul.f32 %v2277, 1.442695
        %v2295 = vpow.pop %v2294
        %v2296 = vmul.f32 %v2278, 1.442695
        %v2297 = vpow.pop %v2296
        %v2298 = vmul.f32 %v2279, 1.442695
        %v2299 = vpow.pop %v2298
        %v2300 = vmul.f32 %v2280, 1.442695
        %v2301 = vpow.pop %v2300
        %v2302 = vmul.f32 %v2281, 1.442695
        %v2303 = vpow.pop %v2302
        %v2304 = vmul.f32 %v2282, 1.442695
        %v2305 = vpow.pop %v2304
        %v2306 = vmul.f32 %v2283, 1.442695
        %v2307 = vpow.pop %v2306
        %v2308 = vmul.f32 %v2284, 1.442695
        %v2309 = vpow.pop %v2308
        %v2310 = vmul.f32 %v2285, 1.442695
        %v2311 = vpow.pop %v2310
        %v2312 = vmul.f32 %v2286, 1.442695
        %v2313 = vpow.pop %v2312
        %v2314 = vmul.f32 %v2287, 1.442695
        %v2315 = vpow.pop %v2314
        %v2316 = vmul.f32 %v2288, 1.442695
        %v2317 = vpow.pop %v2316
        %v2318 = vmul.f32 %v2289, 1.442695
        %v2319 = vpow.pop %v2318
        %v2320 = vmul.f32 %v2290, 1.442695
        %v2321 = vpow.pop %v2320
        %v2322 = vmul.f32 %v2291, 1.442695
        %v2323 = vpow.pop %v2322
        %2324 = vadd.xlane.f32.xlu0 %v2293
        %v2325 = vpop.xlane.xlu0 %2324
        %2326 = vadd.xlane.f32.xlu0 %v2295
        %v2327 = vpop.xlane.xlu0 %2326
        %2328 = vadd.xlane.f32.xlu0 %v2297
        %v2329 = vpop.xlane.xlu0 %2328
        %2330 = vadd.xlane.f32.xlu0 %v2299
        %v2331 = vpop.xlane.xlu0 %2330
        %2332 = vadd.xlane.f32.xlu0 %v2301
        %v2333 = vpop.xlane.xlu0 %2332
        %2334 = vadd.xlane.f32.xlu0 %v2303
        %v2335 = vpop.xlane.xlu0 %2334
        %2336 = vadd.xlane.f32.xlu0 %v2305
        %v2337 = vpop.xlane.xlu0 %2336
        %2338 = vadd.xlane.f32.xlu0 %v2307
        %v2339 = vpop.xlane.xlu0 %2338
        %2340 = vadd.xlane.f32.xlu0 %v2309
        %v2341 = vpop.xlane.xlu0 %2340
        %2342 = vadd.xlane.f32.xlu0 %v2311
        %v2343 = vpop.xlane.xlu0 %2342
        %2344 = vadd.xlane.f32.xlu0 %v2313
        %v2345 = vpop.xlane.xlu0 %2344
        %2346 = vadd.xlane.f32.xlu0 %v2315
        %v2347 = vpop.xlane.xlu0 %2346
        %2348 = vadd.xlane.f32.xlu0 %v2317
        %v2349 = vpop.xlane.xlu0 %2348
        %2350 = vadd.xlane.f32.xlu0 %v2319
        %v2351 = vpop.xlane.xlu0 %2350
        %2352 = vadd.xlane.f32.xlu0 %v2321
        %v2353 = vpop.xlane.xlu0 %2352
        %2354 = vadd.xlane.f32.xlu0 %v2323
        %v2355 = vpop.xlane.xlu0 %2354
        %v2356 = vpack.c.bf16 %v2295, %v2293
        %v2357 = vpack.c.bf16 %v2299, %v2297
        %v2358 = vpack.c.bf16 %v2303, %v2301
        %v2359 = vpack.c.bf16 %v2307, %v2305
        %v2360 = vpack.c.bf16 %v2311, %v2309
        %v2361 = vpack.c.bf16 %v2315, %v2313
        %v2362 = vpack.c.bf16 %v2319, %v2317
        %v2363 = vpack.c.bf16 %v2323, %v2321
        %2372 = vrot.lane.b32.xlu0 %v2043, 64
        %v2373 = vpop.permute.xlu0 %2372
        %2374 = vrot.lane.b32.xlu0 %v2044, 64
        %v2375 = vpop.permute.xlu0 %2374
        %2376 = vrot.lane.b32.xlu0 %v2045, 64
        %v2377 = vpop.permute.xlu0 %2376
        %2378 = vrot.lane.b32.xlu0 %v2046, 64
        %v2379 = vpop.permute.xlu0 %2378
        %2380 = vrot.lane.b32.xlu0 %v2047, 64
        %v2381 = vpop.permute.xlu0 %2380
        %2382 = vrot.lane.b32.xlu0 %v2048, 64
        %v2383 = vpop.permute.xlu0 %2382
        %2384 = vrot.lane.b32.xlu0 %v2049, 64
        %v2385 = vpop.permute.xlu0 %2384
        %2386 = vrot.lane.b32.xlu0 %v2050, 64
        %v2387 = vpop.permute.xlu0 %2386
        %2396 = vmatprep.subr.bf16.mxu0 0
        %2397 = vmatpush1.bf16.msra.mxu0 %v2373
        %2398 = vmatprep.subr.bf16.mxu0 0
        %2399 = vmatpush1.bf16.msra.mxu0 %v2375
        %2400 = vmatprep.subr.bf16.mxu0 0
        %2401 = vmatpush1.bf16.msra.mxu0 %v2377
        %2402 = vmatprep.subr.bf16.mxu0 0
        %2403 = vmatpush1.bf16.msra.mxu0 %v2379
        %2404 = vmatprep.subr.bf16.mxu0 0
        %2405 = vmatpush1.bf16.msra.mxu0 %v2381
        %2406 = vmatprep.subr.bf16.mxu0 0
        %2407 = vmatpush1.bf16.msra.mxu0 %v2383
        %2408 = vmatprep.subr.bf16.mxu0 0
        %2409 = vmatpush1.bf16.msra.mxu0 %v2385
        %2410 = vmatprep.subr.bf16.mxu0 0
        %2411 = vmatpush1.bf16.msra.mxu0 %v2387
        %2412 = vmatprep.subr.bf16.mxu0 0
        %2413 = vmatpush1.bf16.msra.mxu0 0
        %2414 = vmatprep.subr.bf16.mxu0 0
        %2415 = vmatpush1.bf16.msra.mxu0 0
        %2416 = vmatprep.subr.bf16.mxu0 0
        %2417 = vmatpush1.bf16.msra.mxu0 0
        %2418 = vmatprep.subr.bf16.mxu0 0
        %2419 = vmatpush1.bf16.msra.mxu0 0
        %2420 = vmatprep.subr.bf16.mxu0 0
        %2421 = vmatpush1.bf16.msra.mxu0 0
        %2422 = vmatprep.subr.bf16.mxu0 0
        %2423 = vmatpush1.bf16.msra.mxu0 0
        %2424 = vmatprep.subr.bf16.mxu0 0
        %2425 = vmatpush1.bf16.msra.mxu0 0
        %2426 = vmatprep.subr.bf16.mxu0 0
        %2427 = vmatpush1.bf16.msra.mxu0 0
        %2428 = vmatprep.mubr.bf16.mxu0 0
        %2429 = vmatmul.mubr.bf16.gmra.mrb[0].mxu0 %v2356
        %v2430 = vpop.f32.mrb[0].mxu0
        %v2431 = vadd.f32 0.0, %v2430
        %v2432 = vpop.f32.mrb[0].mxu0
        %v2433 = vpop.f32.mrb[0].mxu0
        %v2434 = vadd.f32 0.0, %v2433
        %v2435 = vpop.f32.mrb[0].mxu0
        %2436 = vmatprep.mubr.bf16.mxu0 0
        %2437 = vmatmul.mubr.bf16.gmra.mrb[0].mxu0 %v2357
        %v2438 = vpop.f32.mrb[0].mxu0
        %v2439 = vadd.f32 0.0, %v2438
        %v2440 = vpop.f32.mrb[0].mxu0
        %v2441 = vpop.f32.mrb[0].mxu0
        %v2442 = vadd.f32 0.0, %v2441
        %v2443 = vpop.f32.mrb[0].mxu0
        %2444 = vmatprep.mubr.bf16.mxu0 0
        %2445 = vmatmul.mubr.bf16.gmra.mrb[0].mxu0 %v2358
        %v2446 = vpop.f32.mrb[0].mxu0
        %v2447 = vadd.f32 0.0, %v2446
        %v2448 = vpop.f32.mrb[0].mxu0
        %v2449 = vpop.f32.mrb[0].mxu0
        %v2450 = vadd.f32 0.0, %v2449
        %v2451 = vpop.f32.mrb[0].mxu0
        %2452 = vmatprep.mubr.bf16.mxu0 0
        %2453 = vmatmul.mubr.bf16.gmra.mrb[0].mxu0 %v2359
        %v2454 = vpop.f32.mrb[0].mxu0
        %v2455 = vadd.f32 0.0, %v2454
        %v2456 = vpop.f32.mrb[0].mxu0
        %v2457 = vpop.f32.mrb[0].mxu0
        %v2458 = vadd.f32 0.0, %v2457
        %v2459 = vpop.f32.mrb[0].mxu0
        %2460 = vmatprep.mubr.bf16.mxu0 0
        %2461 = vmatmul.mubr.bf16.gmra.mrb[0].mxu0 %v2360
        %v2462 = vpop.f32.mrb[0].mxu0
        %v2463 = vadd.f32 0.0, %v2462
        %v2464 = vpop.f32.mrb[0].mxu0
        %v2465 = vpop.f32.mrb[0].mxu0
        %v2466 = vadd.f32 0.0, %v2465
        %v2467 = vpop.f32.mrb[0].mxu0
        %2468 = vmatprep.mubr.bf16.mxu0 0
        %2469 = vmatmul.mubr.bf16.gmra.mrb[0].mxu0 %v2361
        %v2470 = vpop.f32.mrb[0].mxu0
        %v2471 = vadd.f32 0.0, %v2470
        %v2472 = vpop.f32.mrb[0].mxu0
        %v2473 = vpop.f32.mrb[0].mxu0
        %v2474 = vadd.f32 0.0, %v2473
        %v2475 = vpop.f32.mrb[0].mxu0
        %2476 = vmatprep.mubr.bf16.mxu0 0
        %2477 = vmatmul.mubr.bf16.gmra.mrb[0].mxu0 %v2362
        %v2478 = vpop.f32.mrb[0].mxu0
        %v2479 = vadd.f32 0.0, %v2478
        %v2480 = vpop.f32.mrb[0].mxu0
        %v2481 = vpop.f32.mrb[0].mxu0
        %v2482 = vadd.f32 0.0, %v2481
        %v2483 = vpop.f32.mrb[0].mxu0
        %2484 = vmatprep.mubr.bf16.mxu0 0
        %2485 = vmatmul.mubr.bf16.gmra.mrb[0].mxu0 %v2363
        %v2486 = vpop.f32.mrb[0].mxu0
        %v2487 = vadd.f32 0.0, %v2486
        %v2488 = vpop.f32.mrb[0].mxu0
        %v2489 = vpop.f32.mrb[0].mxu0
        %v2490 = vadd.f32 0.0, %v2489
        %v2491 = vpop.f32.mrb[0].mxu0
        %2492 = vdwg.mxu0
        %v2493 = vrcp.pop %v2325
        %v2494 = vrcp.pop %v2327
        %v2495 = vrcp.pop %v2329
        %v2496 = vrcp.pop %v2331
        %v2497 = vrcp.pop %v2333
        %v2498 = vrcp.pop %v2335
        %v2499 = vrcp.pop %v2337
        %v2500 = vrcp.pop %v2339
        %v2501 = vrcp.pop %v2341
        %v2502 = vrcp.pop %v2343
        %v2503 = vrcp.pop %v2345
        %v2504 = vrcp.pop %v2347
        %v2505 = vrcp.pop %v2349
        %v2506 = vrcp.pop %v2351
        %v2507 = vrcp.pop %v2353
        %v2508 = vrcp.pop %v2355
        %v2509 = vmul.f32 %v2431, %v2493
        %v2510 = vmul.f32 %v2434, %v2494
        %v2511 = vmul.f32 %v2439, %v2495
        %v2512 = vmul.f32 %v2442, %v2496
        %v2513 = vmul.f32 %v2447, %v2497
        %v2514 = vmul.f32 %v2450, %v2498
        %v2515 = vmul.f32 %v2455, %v2499
        %v2516 = vmul.f32 %v2458, %v2500
        %v2517 = vmul.f32 %v2463, %v2501
        %v2518 = vmul.f32 %v2466, %v2502
        %v2519 = vmul.f32 %v2471, %v2503
        %v2520 = vmul.f32 %v2474, %v2504
        %v2521 = vmul.f32 %v2479, %v2505
        %v2522 = vmul.f32 %v2482, %v2506
        %v2523 = vmul.f32 %v2487, %v2507
        %v2524 = vmul.f32 %v2490, %v2508
        %v2525 = vpack.c.bf16 %v2510, %v2509
        %v2526 = vpack.c.bf16 %v2512, %v2511
        %v2527 = vpack.c.bf16 %v2514, %v2513
        %v2528 = vpack.c.bf16 %v2516, %v2515
        %v2529 = vpack.c.bf16 %v2518, %v2517
        %v2530 = vpack.c.bf16 %v2520, %v2519
        %v2531 = vpack.c.bf16 %v2522, %v2521
        %v2532 = vpack.c.bf16 %v2524, %v2523
        %2541 = vrot.lane.b32.xlu0 %v2525, 64
        %v2542 = vpop.permute.xlu0 %2541
        %2543 = vrot.lane.b32.xlu0 %v2526, 64
        %v2544 = vpop.permute.xlu0 %2543
        %2545 = vrot.lane.b32.xlu0 %v2527, 64
        %v2546 = vpop.permute.xlu0 %2545
        %2547 = vrot.lane.b32.xlu0 %v2528, 64
        %v2548 = vpop.permute.xlu0 %2547
        %2549 = vrot.lane.b32.xlu0 %v2529, 64
        %v2550 = vpop.permute.xlu0 %2549
        %2551 = vrot.lane.b32.xlu0 %v2530, 64
        %v2552 = vpop.permute.xlu0 %2551
        %2553 = vrot.lane.b32.xlu0 %v2531, 64
        %v2554 = vpop.permute.xlu0 %2553
        %2555 = vrot.lane.b32.xlu0 %v2532, 64
        %v2556 = vpop.permute.xlu0 %2555
        %vm2565 = vcmask 785920
        %2566 = vst.msk [vmem:[#allocation3] sm:$0xff] %vm2565, %v2542
        %2567 = vst.msk [vmem:[#allocation3 + $0x8] sm:$0xff] %vm2565, %v2544
        %2568 = vst.msk [vmem:[#allocation3 + $0x10] sm:$0xff] %vm2565, %v2546
        %2569 = vst.msk [vmem:[#allocation3 + $0x18] sm:$0xff] %vm2565, %v2548
        %2570 = vst.msk [vmem:[#allocation3 + $0x20] sm:$0xff] %vm2565, %v2550
        %2571 = vst.msk [vmem:[#allocation3 + $0x28] sm:$0xff] %vm2565, %v2552
        %2572 = vst.msk [vmem:[#allocation3 + $0x30] sm:$0xff] %vm2565, %v2554
        %2573 = vst.msk [vmem:[#allocation3 + $0x38] sm:$0xff] %vm2565, %v2556
        %v2574 = vld [vmem:[#allocation2] sm:$0xff]
        %v2575 = vld [vmem:[#allocation2 + $0x18] sm:$0xff]
        %v2576 = vld [vmem:[#allocation2 + $0x30] sm:$0xff]
        %v2577 = vld [vmem:[#allocation2 + $0x48] sm:$0xff]
        %v2578 = vld [vmem:[#allocation2 + $0x60] sm:$0xff]
        %v2579 = vld [vmem:[#allocation2 + $0x78] sm:$0xff]
        %v2580 = vld [vmem:[#allocation2 + $0x90] sm:$0xff]
        %v2581 = vld [vmem:[#allocation2 + $0xa8] sm:$0xff]
        %v2582 = vld [vmem:[#allocation2 + $0x8] sm:$0xff]
        %v2583 = vld [vmem:[#allocation2 + $0x20] sm:$0xff]
        %v2584 = vld [vmem:[#allocation2 + $0x38] sm:$0xff]
        %v2585 = vld [vmem:[#allocation2 + $0x50] sm:$0xff]
        %v2586 = vld [vmem:[#allocation2 + $0x68] sm:$0xff]
        %v2587 = vld [vmem:[#allocation2 + $0x80] sm:$0xff]
        %v2588 = vld [vmem:[#allocation2 + $0x98] sm:$0xff]
        %v2589 = vld [vmem:[#allocation2 + $0xb0] sm:$0xff]
        %v2590 = vld [vmem:[#allocation2 + $0x10] sm:$0xff]
        %v2591 = vld [vmem:[#allocation2 + $0x28] sm:$0xff]
        %v2592 = vld [vmem:[#allocation2 + $0x40] sm:$0xff]
        %v2593 = vld [vmem:[#allocation2 + $0x58] sm:$0xff]
        %v2594 = vld [vmem:[#allocation2 + $0x70] sm:$0xff]
        %v2595 = vld [vmem:[#allocation2 + $0x88] sm:$0xff]
        %v2596 = vld [vmem:[#allocation2 + $0xa0] sm:$0xff]
        %v2597 = vld [vmem:[#allocation2 + $0xb8] sm:$0xff]
        %2606 = vrot.lane.b32.xlu0 %v2574, 32
        %v2607 = vpop.permute.xlu0 %2606
        %2608 = vrot.lane.b32.xlu0 %v2575, 32
        %v2609 = vpop.permute.xlu0 %2608
        %2610 = vrot.lane.b32.xlu0 %v2576, 32
        %v2611 = vpop.permute.xlu0 %2610
        %2612 = vrot.lane.b32.xlu0 %v2577, 32
        %v2613 = vpop.permute.xlu0 %2612
        %2614 = vrot.lane.b32.xlu0 %v2578, 32
        %v2615 = vpop.permute.xlu0 %2614
        %2616 = vrot.lane.b32.xlu0 %v2579, 32
        %v2617 = vpop.permute.xlu0 %2616
        %2618 = vrot.lane.b32.xlu0 %v2580, 32
        %v2619 = vpop.permute.xlu0 %2618
        %2620 = vrot.lane.b32.xlu0 %v2581, 32
        %v2621 = vpop.permute.xlu0 %2620
        %2630 = vrot.lane.b32.xlu0 %v2582, 32
        %v2631 = vpop.permute.xlu0 %2630
        %2632 = vrot.lane.b32.xlu0 %v2583, 32
        %v2633 = vpop.permute.xlu0 %2632
        %2634 = vrot.lane.b32.xlu0 %v2584, 32
        %v2635 = vpop.permute.xlu0 %2634
        %2636 = vrot.lane.b32.xlu0 %v2585, 32
        %v2637 = vpop.permute.xlu0 %2636
        %2638 = vrot.lane.b32.xlu0 %v2586, 32
        %v2639 = vpop.permute.xlu0 %2638
        %2640 = vrot.lane.b32.xlu0 %v2587, 32
        %v2641 = vpop.permute.xlu0 %2640
        %2642 = vrot.lane.b32.xlu0 %v2588, 32
        %v2643 = vpop.permute.xlu0 %2642
        %2644 = vrot.lane.b32.xlu0 %v2589, 32
        %v2645 = vpop.permute.xlu0 %2644
        %v2647 = vsel %vm1069, %v2607, 0
        %v2650 = vsel %vm1069, %v2609, 0
        %v2653 = vsel %vm1069, %v2611, 0
        %v2656 = vsel %vm1069, %v2613, 0
        %v2659 = vsel %vm1069, %v2615, 0
        %v2662 = vsel %vm1069, %v2617, 0
        %v2665 = vsel %vm1069, %v2619, 0
        %v2668 = vsel %vm1069, %v2621, 0
        %v2671 = vsel %vm1069, %v2631, 0
        %v2674 = vsel %vm1069, %v2633, 0
        %v2677 = vsel %vm1069, %v2635, 0
        %v2680 = vsel %vm1069, %v2637, 0
        %v2683 = vsel %vm1069, %v2639, 0
        %v2686 = vsel %vm1069, %v2641, 0
        %v2689 = vsel %vm1069, %v2643, 0
        %v2692 = vsel %vm1069, %v2645, 0
        %2694 = vmatprep.subr.bf16.mxu0 0
        %2695 = vmatpush1.bf16.xpose.msra.mxu0 %v2671
        %2696 = vmatprep.subr.bf16.mxu0 0
        %2697 = vmatpush1.bf16.xpose.msra.mxu0 %v2674
        %2698 = vmatprep.subr.bf16.mxu0 0
        %2699 = vmatpush1.bf16.xpose.msra.mxu0 %v2677
        %2700 = vmatprep.subr.bf16.mxu0 0
        %2701 = vmatpush1.bf16.xpose.msra.mxu0 %v2680
        %2702 = vmatprep.subr.bf16.mxu0 0
        %2703 = vmatpush1.bf16.xpose.msra.mxu0 %v2683
        %2704 = vmatprep.subr.bf16.mxu0 0
        %2705 = vmatpush1.bf16.xpose.msra.mxu0 %v2686
        %2706 = vmatprep.subr.bf16.mxu0 0
        %2707 = vmatpush1.bf16.xpose.msra.mxu0 %v2689
        %2708 = vmatprep.subr.bf16.mxu0 0
        %2709 = vmatpush1.bf16.xpose.msra.mxu0 %v2692
        %2710 = vmatprep.subr.bf16.mxu0 0
        %2711 = vmatpush1.bf16.xpose.msra.mxu0 0
        %2712 = vmatprep.subr.bf16.mxu0 0
        %2713 = vmatpush1.bf16.xpose.msra.mxu0 0
        %2714 = vmatprep.subr.bf16.mxu0 0
        %2715 = vmatpush1.bf16.xpose.msra.mxu0 0
        %2716 = vmatprep.subr.bf16.mxu0 0
        %2717 = vmatpush1.bf16.xpose.msra.mxu0 0
        %2718 = vmatprep.subr.bf16.mxu0 0
        %2719 = vmatpush1.bf16.xpose.msra.mxu0 0
        %2720 = vmatprep.subr.bf16.mxu0 0
        %2721 = vmatpush1.bf16.xpose.msra.mxu0 0
        %2722 = vmatprep.subr.bf16.mxu0 0
        %2723 = vmatpush1.bf16.xpose.msra.mxu0 0
        %2724 = vmatprep.subr.bf16.mxu0 0
        %2725 = vmatpush1.bf16.xpose.msra.mxu0 0
        %2726 = vmatprep.mubr.bf16.mxu0 0
        %2727 = vmatmul.mubr.bf16.gmra.mrb[0].mxu0 %v2647
        %v2728 = vpop.f32.mrb[0].mxu0
        %v2729 = vadd.f32 %v1043, %v2728
        %v2730 = vpop.f32.mrb[0].mxu0
        %v2731 = vpop.f32.mrb[0].mxu0
        %v2732 = vadd.f32 %v1043, %v2731
        %v2733 = vpop.f32.mrb[0].mxu0
        %2734 = vmatprep.mubr.bf16.mxu0 0
        %2735 = vmatmul.mubr.bf16.gmra.mrb[0].mxu0 %v2650
        %v2736 = vpop.f32.mrb[0].mxu0
        %v2737 = vadd.f32 %v1043, %v2736
        %v2738 = vpop.f32.mrb[0].mxu0
        %v2739 = vpop.f32.mrb[0].mxu0
        %v2740 = vadd.f32 %v1043, %v2739
        %v2741 = vpop.f32.mrb[0].mxu0
        %2742 = vmatprep.mubr.bf16.mxu0 0
        %2743 = vmatmul.mubr.bf16.gmra.mrb[0].mxu0 %v2653
        %v2744 = vpop.f32.mrb[0].mxu0
        %v2745 = vadd.f32 %v1043, %v2744
        %v2746 = vpop.f32.mrb[0].mxu0
        %v2747 = vpop.f32.mrb[0].mxu0
        %v2748 = vadd.f32 %v1043, %v2747
        %v2749 = vpop.f32.mrb[0].mxu0
        %2750 = vmatprep.mubr.bf16.mxu0 0
        %2751 = vmatmul.mubr.bf16.gmra.mrb[0].mxu0 %v2656
        %v2752 = vpop.f32.mrb[0].mxu0
        %v2753 = vadd.f32 %v1043, %v2752
        %v2754 = vpop.f32.mrb[0].mxu0
        %v2755 = vpop.f32.mrb[0].mxu0
        %v2756 = vadd.f32 %v1043, %v2755
        %v2757 = vpop.f32.mrb[0].mxu0
        %2758 = vmatprep.mubr.bf16.mxu0 0
        %2759 = vmatmul.mubr.bf16.gmra.mrb[0].mxu0 %v2659
        %v2760 = vpop.f32.mrb[0].mxu0
        %v2761 = vadd.f32 %v1043, %v2760
        %v2762 = vpop.f32.mrb[0].mxu0
        %v2763 = vpop.f32.mrb[0].mxu0
        %v2764 = vadd.f32 %v1043, %v2763
        %v2765 = vpop.f32.mrb[0].mxu0
        %2766 = vmatprep.mubr.bf16.mxu0 0
        %2767 = vmatmul.mubr.bf16.gmra.mrb[0].mxu0 %v2662
        %v2768 = vpop.f32.mrb[0].mxu0
        %v2769 = vadd.f32 %v1043, %v2768
        %v2770 = vpop.f32.mrb[0].mxu0
        %v2771 = vpop.f32.mrb[0].mxu0
        %v2772 = vadd.f32 %v1043, %v2771
        %v2773 = vpop.f32.mrb[0].mxu0
        %2774 = vmatprep.mubr.bf16.mxu0 0
        %2775 = vmatmul.mubr.bf16.gmra.mrb[0].mxu0 %v2665
        %v2776 = vpop.f32.mrb[0].mxu0
        %v2777 = vadd.f32 %v1043, %v2776
        %v2778 = vpop.f32.mrb[0].mxu0
        %v2779 = vpop.f32.mrb[0].mxu0
        %v2780 = vadd.f32 %v1043, %v2779
        %v2781 = vpop.f32.mrb[0].mxu0
        %2782 = vmatprep.mubr.bf16.mxu0 0
        %2783 = vmatmul.mubr.bf16.gmra.mrb[0].mxu0 %v2668
        %v2784 = vpop.f32.mrb[0].mxu0
        %v2785 = vadd.f32 %v1043, %v2784
        %v2786 = vpop.f32.mrb[0].mxu0
        %v2787 = vpop.f32.mrb[0].mxu0
        %v2788 = vadd.f32 %v1043, %v2787
        %v2789 = vpop.f32.mrb[0].mxu0
        %2790 = vdwg.mxu0
        %2791 = vmax.xlane.f32.xlu0 %v2729
        %v2792 = vpop.xlane.xlu0 %2791
        %2793 = vmax.xlane.f32.xlu0 %v2732
        %v2794 = vpop.xlane.xlu0 %2793
        %2795 = vmax.xlane.f32.xlu0 %v2737
        %v2796 = vpop.xlane.xlu0 %2795
        %2797 = vmax.xlane.f32.xlu0 %v2740
        %v2798 = vpop.xlane.xlu0 %2797
        %2799 = vmax.xlane.f32.xlu0 %v2745
        %v2800 = vpop.xlane.xlu0 %2799
        %2801 = vmax.xlane.f32.xlu0 %v2748
        %v2802 = vpop.xlane.xlu0 %2801
        %2803 = vmax.xlane.f32.xlu0 %v2753
        %v2804 = vpop.xlane.xlu0 %2803
        %2805 = vmax.xlane.f32.xlu0 %v2756
        %v2806 = vpop.xlane.xlu0 %2805
        %2807 = vmax.xlane.f32.xlu0 %v2761
        %v2808 = vpop.xlane.xlu0 %2807
        %2809 = vmax.xlane.f32.xlu0 %v2764
        %v2810 = vpop.xlane.xlu0 %2809
        %2811 = vmax.xlane.f32.xlu0 %v2769
        %v2812 = vpop.xlane.xlu0 %2811
        %2813 = vmax.xlane.f32.xlu0 %v2772
        %v2814 = vpop.xlane.xlu0 %2813
        %2815 = vmax.xlane.f32.xlu0 %v2777
        %v2816 = vpop.xlane.xlu0 %2815
        %2817 = vmax.xlane.f32.xlu0 %v2780
        %v2818 = vpop.xlane.xlu0 %2817
        %2819 = vmax.xlane.f32.xlu0 %v2785
        %v2820 = vpop.xlane.xlu0 %2819
        %2821 = vmax.xlane.f32.xlu0 %v2788
        %v2822 = vpop.xlane.xlu0 %2821
        %v2823 = vsub.f32 %v2729, %v2792
        %v2824 = vsub.f32 %v2732, %v2794
        %v2825 = vsub.f32 %v2737, %v2796
        %v2826 = vsub.f32 %v2740, %v2798
        %v2827 = vsub.f32 %v2745, %v2800
        %v2828 = vsub.f32 %v2748, %v2802
        %v2829 = vsub.f32 %v2753, %v2804
        %v2830 = vsub.f32 %v2756, %v2806
        %v2831 = vsub.f32 %v2761, %v2808
        %v2832 = vsub.f32 %v2764, %v2810
        %v2833 = vsub.f32 %v2769, %v2812
        %v2834 = vsub.f32 %v2772, %v2814
        %v2835 = vsub.f32 %v2777, %v2816
        %v2836 = vsub.f32 %v2780, %v2818
        %v2837 = vsub.f32 %v2785, %v2820
        %v2838 = vsub.f32 %v2788, %v2822
        %v2839 = vmul.f32 %v2823, 1.442695
        %v2840 = vpow.pop %v2839
        %v2841 = vmul.f32 %v2824, 1.442695
        %v2842 = vpow.pop %v2841
        %v2843 = vmul.f32 %v2825, 1.442695
        %v2844 = vpow.pop %v2843
        %v2845 = vmul.f32 %v2826, 1.442695
        %v2846 = vpow.pop %v2845
        %v2847 = vmul.f32 %v2827, 1.442695
        %v2848 = vpow.pop %v2847
        %v2849 = vmul.f32 %v2828, 1.442695
        %v2850 = vpow.pop %v2849
        %v2851 = vmul.f32 %v2829, 1.442695
        %v2852 = vpow.pop %v2851
        %v2853 = vmul.f32 %v2830, 1.442695
        %v2854 = vpow.pop %v2853
        %v2855 = vmul.f32 %v2831, 1.442695
        %v2856 = vpow.pop %v2855
        %v2857 = vmul.f32 %v2832, 1.442695
        %v2858 = vpow.pop %v2857
        %v2859 = vmul.f32 %v2833, 1.442695
        %v2860 = vpow.pop %v2859
        %v2861 = vmul.f32 %v2834, 1.442695
        %v2862 = vpow.pop %v2861
        %v2863 = vmul.f32 %v2835, 1.442695
        %v2864 = vpow.pop %v2863
        %v2865 = vmul.f32 %v2836, 1.442695
        %v2866 = vpow.pop %v2865
        %v2867 = vmul.f32 %v2837, 1.442695
        %v2868 = vpow.pop %v2867
        %v2869 = vmul.f32 %v2838, 1.442695
        %v2870 = vpow.pop %v2869
        %2871 = vadd.xlane.f32.xlu0 %v2840
        %v2872 = vpop.xlane.xlu0 %2871
        %2873 = vadd.xlane.f32.xlu0 %v2842
        %v2874 = vpop.xlane.xlu0 %2873
        %2875 = vadd.xlane.f32.xlu0 %v2844
        %v2876 = vpop.xlane.xlu0 %2875
        %2877 = vadd.xlane.f32.xlu0 %v2846
        %v2878 = vpop.xlane.xlu0 %2877
        %2879 = vadd.xlane.f32.xlu0 %v2848
        %v2880 = vpop.xlane.xlu0 %2879
        %2881 = vadd.xlane.f32.xlu0 %v2850
        %v2882 = vpop.xlane.xlu0 %2881
        %2883 = vadd.xlane.f32.xlu0 %v2852
        %v2884 = vpop.xlane.xlu0 %2883
        %2885 = vadd.xlane.f32.xlu0 %v2854
        %v2886 = vpop.xlane.xlu0 %2885
        %2887 = vadd.xlane.f32.xlu0 %v2856
        %v2888 = vpop.xlane.xlu0 %2887
        %2889 = vadd.xlane.f32.xlu0 %v2858
        %v2890 = vpop.xlane.xlu0 %2889
        %2891 = vadd.xlane.f32.xlu0 %v2860
        %v2892 = vpop.xlane.xlu0 %2891
        %2893 = vadd.xlane.f32.xlu0 %v2862
        %v2894 = vpop.xlane.xlu0 %2893
        %2895 = vadd.xlane.f32.xlu0 %v2864
        %v2896 = vpop.xlane.xlu0 %2895
        %2897 = vadd.xlane.f32.xlu0 %v2866
        %v2898 = vpop.xlane.xlu0 %2897
        %2899 = vadd.xlane.f32.xlu0 %v2868
        %v2900 = vpop.xlane.xlu0 %2899
        %2901 = vadd.xlane.f32.xlu0 %v2870
        %v2902 = vpop.xlane.xlu0 %2901
        %v2903 = vpack.c.bf16 %v2842, %v2840
        %v2904 = vpack.c.bf16 %v2846, %v2844
        %v2905 = vpack.c.bf16 %v2850, %v2848
        %v2906 = vpack.c.bf16 %v2854, %v2852
        %v2907 = vpack.c.bf16 %v2858, %v2856
        %v2908 = vpack.c.bf16 %v2862, %v2860
        %v2909 = vpack.c.bf16 %v2866, %v2864
        %v2910 = vpack.c.bf16 %v2870, %v2868
        %2919 = vrot.lane.b32.xlu0 %v2590, 32
        %v2920 = vpop.permute.xlu0 %2919
        %2921 = vrot.lane.b32.xlu0 %v2591, 32
        %v2922 = vpop.permute.xlu0 %2921
        %2923 = vrot.lane.b32.xlu0 %v2592, 32
        %v2924 = vpop.permute.xlu0 %2923
        %2925 = vrot.lane.b32.xlu0 %v2593, 32
        %v2926 = vpop.permute.xlu0 %2925
        %2927 = vrot.lane.b32.xlu0 %v2594, 32
        %v2928 = vpop.permute.xlu0 %2927
        %2929 = vrot.lane.b32.xlu0 %v2595, 32
        %v2930 = vpop.permute.xlu0 %2929
        %2931 = vrot.lane.b32.xlu0 %v2596, 32
        %v2932 = vpop.permute.xlu0 %2931
        %2933 = vrot.lane.b32.xlu0 %v2597, 32
        %v2934 = vpop.permute.xlu0 %2933
        %2943 = vmatprep.subr.bf16.mxu0 0
        %2944 = vmatpush1.bf16.msra.mxu0 %v2920
        %2945 = vmatprep.subr.bf16.mxu0 0
        %2946 = vmatpush1.bf16.msra.mxu0 %v2922
        %2947 = vmatprep.subr.bf16.mxu0 0
        %2948 = vmatpush1.bf16.msra.mxu0 %v2924
        %2949 = vmatprep.subr.bf16.mxu0 0
        %2950 = vmatpush1.bf16.msra.mxu0 %v2926
        %2951 = vmatprep.subr.bf16.mxu0 0
        %2952 = vmatpush1.bf16.msra.mxu0 %v2928
        %2953 = vmatprep.subr.bf16.mxu0 0
        %2954 = vmatpush1.bf16.msra.mxu0 %v2930
        %2955 = vmatprep.subr.bf16.mxu0 0
        %2956 = vmatpush1.bf16.msra.mxu0 %v2932
        %2957 = vmatprep.subr.bf16.mxu0 0
        %2958 = vmatpush1.bf16.msra.mxu0 %v2934
        %2959 = vmatprep.subr.bf16.mxu0 0
        %2960 = vmatpush1.bf16.msra.mxu0 0
        %2961 = vmatprep.subr.bf16.mxu0 0
        %2962 = vmatpush1.bf16.msra.mxu0 0
        %2963 = vmatprep.subr.bf16.mxu0 0
        %2964 = vmatpush1.bf16.msra.mxu0 0
        %2965 = vmatprep.subr.bf16.mxu0 0
        %2966 = vmatpush1.bf16.msra.mxu0 0
        %2967 = vmatprep.subr.bf16.mxu0 0
        %2968 = vmatpush1.bf16.msra.mxu0 0
        %2969 = vmatprep.subr.bf16.mxu0 0
        %2970 = vmatpush1.bf16.msra.mxu0 0
        %2971 = vmatprep.subr.bf16.mxu0 0
        %2972 = vmatpush1.bf16.msra.mxu0 0
        %2973 = vmatprep.subr.bf16.mxu0 0
        %2974 = vmatpush1.bf16.msra.mxu0 0
        %2975 = vmatprep.mubr.bf16.mxu0 0
        %2976 = vmatmul.mubr.bf16.gmra.mrb[0].mxu0 %v2903
        %v2977 = vpop.f32.mrb[0].mxu0
        %v2978 = vadd.f32 0.0, %v2977
        %v2979 = vpop.f32.mrb[0].mxu0
        %v2980 = vpop.f32.mrb[0].mxu0
        %v2981 = vadd.f32 0.0, %v2980
        %v2982 = vpop.f32.mrb[0].mxu0
        %2983 = vmatprep.mubr.bf16.mxu0 0
        %2984 = vmatmul.mubr.bf16.gmra.mrb[0].mxu0 %v2904
        %v2985 = vpop.f32.mrb[0].mxu0
        %v2986 = vadd.f32 0.0, %v2985
        %v2987 = vpop.f32.mrb[0].mxu0
        %v2988 = vpop.f32.mrb[0].mxu0
        %v2989 = vadd.f32 0.0, %v2988
        %v2990 = vpop.f32.mrb[0].mxu0
        %2991 = vmatprep.mubr.bf16.mxu0 0
        %2992 = vmatmul.mubr.bf16.gmra.mrb[0].mxu0 %v2905
        %v2993 = vpop.f32.mrb[0].mxu0
        %v2994 = vadd.f32 0.0, %v2993
        %v2995 = vpop.f32.mrb[0].mxu0
        %v2996 = vpop.f32.mrb[0].mxu0
        %v2997 = vadd.f32 0.0, %v2996
        %v2998 = vpop.f32.mrb[0].mxu0
        %2999 = vmatprep.mubr.bf16.mxu0 0
        %3000 = vmatmul.mubr.bf16.gmra.mrb[0].mxu0 %v2906
        %v3001 = vpop.f32.mrb[0].mxu0
        %v3002 = vadd.f32 0.0, %v3001
        %v3003 = vpop.f32.mrb[0].mxu0
        %v3004 = vpop.f32.mrb[0].mxu0
        %v3005 = vadd.f32 0.0, %v3004
        %v3006 = vpop.f32.mrb[0].mxu0
        %3007 = vmatprep.mubr.bf16.mxu0 0
        %3008 = vmatmul.mubr.bf16.gmra.mrb[0].mxu0 %v2907
        %v3009 = vpop.f32.mrb[0].mxu0
        %v3010 = vadd.f32 0.0, %v3009
        %v3011 = vpop.f32.mrb[0].mxu0
        %v3012 = vpop.f32.mrb[0].mxu0
        %v3013 = vadd.f32 0.0, %v3012
        %v3014 = vpop.f32.mrb[0].mxu0
        %3015 = vmatprep.mubr.bf16.mxu0 0
        %3016 = vmatmul.mubr.bf16.gmra.mrb[0].mxu0 %v2908
        %v3017 = vpop.f32.mrb[0].mxu0
        %v3018 = vadd.f32 0.0, %v3017
        %v3019 = vpop.f32.mrb[0].mxu0
        %v3020 = vpop.f32.mrb[0].mxu0
        %v3021 = vadd.f32 0.0, %v3020
        %v3022 = vpop.f32.mrb[0].mxu0
        %3023 = vmatprep.mubr.bf16.mxu0 0
        %3024 = vmatmul.mubr.bf16.gmra.mrb[0].mxu0 %v2909
        %v3025 = vpop.f32.mrb[0].mxu0
        %v3026 = vadd.f32 0.0, %v3025
        %v3027 = vpop.f32.mrb[0].mxu0
        %v3028 = vpop.f32.mrb[0].mxu0
        %v3029 = vadd.f32 0.0, %v3028
        %v3030 = vpop.f32.mrb[0].mxu0
        %3031 = vmatprep.mubr.bf16.mxu0 0
        %3032 = vmatmul.mubr.bf16.gmra.mrb[0].mxu0 %v2910
        %v3033 = vpop.f32.mrb[0].mxu0
        %v3034 = vadd.f32 0.0, %v3033
        %v3035 = vpop.f32.mrb[0].mxu0
        %v3036 = vpop.f32.mrb[0].mxu0
        %v3037 = vadd.f32 0.0, %v3036
        %v3038 = vpop.f32.mrb[0].mxu0
        %3039 = vdwg.mxu0
        %v3040 = vrcp.pop %v2872
        %v3041 = vrcp.pop %v2874
        %v3042 = vrcp.pop %v2876
        %v3043 = vrcp.pop %v2878
        %v3044 = vrcp.pop %v2880
        %v3045 = vrcp.pop %v2882
        %v3046 = vrcp.pop %v2884
        %v3047 = vrcp.pop %v2886
        %v3048 = vrcp.pop %v2888
        %v3049 = vrcp.pop %v2890
        %v3050 = vrcp.pop %v2892
        %v3051 = vrcp.pop %v2894
        %v3052 = vrcp.pop %v2896
        %v3053 = vrcp.pop %v2898
        %v3054 = vrcp.pop %v2900
        %v3055 = vrcp.pop %v2902
        %v3056 = vmul.f32 %v2978, %v3040
        %v3057 = vmul.f32 %v2981, %v3041
        %v3058 = vmul.f32 %v2986, %v3042
        %v3059 = vmul.f32 %v2989, %v3043
        %v3060 = vmul.f32 %v2994, %v3044
        %v3061 = vmul.f32 %v2997, %v3045
        %v3062 = vmul.f32 %v3002, %v3046
        %v3063 = vmul.f32 %v3005, %v3047
        %v3064 = vmul.f32 %v3010, %v3048
        %v3065 = vmul.f32 %v3013, %v3049
        %v3066 = vmul.f32 %v3018, %v3050
        %v3067 = vmul.f32 %v3021, %v3051
        %v3068 = vmul.f32 %v3026, %v3052
        %v3069 = vmul.f32 %v3029, %v3053
        %v3070 = vmul.f32 %v3034, %v3054
        %v3071 = vmul.f32 %v3037, %v3055
        %v3072 = vpack.c.bf16 %v3057, %v3056
        %v3073 = vpack.c.bf16 %v3059, %v3058
        %v3074 = vpack.c.bf16 %v3061, %v3060
        %v3075 = vpack.c.bf16 %v3063, %v3062
        %v3076 = vpack.c.bf16 %v3065, %v3064
        %v3077 = vpack.c.bf16 %v3067, %v3066
        %v3078 = vpack.c.bf16 %v3069, %v3068
        %v3079 = vpack.c.bf16 %v3071, %v3070
        %3088 = vrot.lane.b32.xlu0 %v3072, 96
        %v3089 = vpop.permute.xlu0 %3088
        %3090 = vrot.lane.b32.xlu0 %v3073, 96
        %v3091 = vpop.permute.xlu0 %3090
        %3092 = vrot.lane.b32.xlu0 %v3074, 96
        %v3093 = vpop.permute.xlu0 %3092
        %3094 = vrot.lane.b32.xlu0 %v3075, 96
        %v3095 = vpop.permute.xlu0 %3094
        %3096 = vrot.lane.b32.xlu0 %v3076, 96
        %v3097 = vpop.permute.xlu0 %3096
        %3098 = vrot.lane.b32.xlu0 %v3077, 96
        %v3099 = vpop.permute.xlu0 %3098
        %3100 = vrot.lane.b32.xlu0 %v3078, 96
        %v3101 = vpop.permute.xlu0 %3100
        %3102 = vrot.lane.b32.xlu0 %v3079, 96
        %v3103 = vpop.permute.xlu0 %3102
        %vm3112 = vcmask 1048320
        %3113 = vst.msk [vmem:[#allocation3] sm:$0xff] %vm3112, %v3089
        %3114 = vst.msk [vmem:[#allocation3 + $0x8] sm:$0xff] %vm3112, %v3091
        %3115 = vst.msk [vmem:[#allocation3 + $0x10] sm:$0xff] %vm3112, %v3093
        %3116 = vst.msk [vmem:[#allocation3 + $0x18] sm:$0xff] %vm3112, %v3095
        %3117 = vst.msk [vmem:[#allocation3 + $0x20] sm:$0xff] %vm3112, %v3097
        %3118 = vst.msk [vmem:[#allocation3 + $0x28] sm:$0xff] %vm3112, %v3099
        %3119 = vst.msk [vmem:[#allocation3 + $0x30] sm:$0xff] %vm3112, %v3101
        %3120 = vst.msk [vmem:[#allocation3 + $0x38] sm:$0xff] %vm3112, %v3103
        %v3121 = vld [vmem:[#allocation3] sm:$0xff]
        %v3122 = vld [vmem:[#allocation3 + $0x8] sm:$0xff]
        %v3123 = vld [vmem:[#allocation3 + $0x10] sm:$0xff]
        %v3124 = vld [vmem:[#allocation3 + $0x18] sm:$0xff]
        %v3125 = vld [vmem:[#allocation3 + $0x20] sm:$0xff]
        %v3126 = vld [vmem:[#allocation3 + $0x28] sm:$0xff]
        %v3127 = vld [vmem:[#allocation3 + $0x30] sm:$0xff]
        %v3128 = vld [vmem:[#allocation3 + $0x38] sm:$0xff]
        %v3129 = vld [vmem:[#allocation10] sm:$0xf]
        %v3130 = vld [vmem:[#allocation10 + $0x4] sm:$0xf]
        %v3131 = vld [vmem:[#allocation10 + $0x8] sm:$0xf]
        %v3132 = vld [vmem:[#allocation10 + $0xc] sm:$0xf]
        %v3133 = vld [vmem:[#allocation10 + $0x10] sm:$0xf]
        %v3134 = vld [vmem:[#allocation10 + $0x14] sm:$0xf]
        %v3135 = vld [vmem:[#allocation10 + $0x18] sm:$0xf]
        %v3136 = vld [vmem:[#allocation10 + $0x1c] sm:$0xf]
        %v3137 = vld [vmem:[#allocation10 + $0x20] sm:$0xf]
        %v3138 = vld [vmem:[#allocation10 + $0x24] sm:$0xf]
        %v3139 = vld [vmem:[#allocation10 + $0x28] sm:$0xf]
        %v3140 = vld [vmem:[#allocation10 + $0x2c] sm:$0xf]
        %v3141 = vld [vmem:[#allocation10 + $0x30] sm:$0xf]
        %v3142 = vld [vmem:[#allocation10 + $0x34] sm:$0xf]
        %v3143 = vld [vmem:[#allocation10 + $0x38] sm:$0xf]
        %v3144 = vld [vmem:[#allocation10 + $0x3c] sm:$0xf]
        %v3145 = vld [vmem:[%s5] sm:$0x1]
        %v3147 = vlaneseq
        %v3148 = vshrl.u32 %v3147, 7
        %v3149 = vsub.s32 0, %v3148
        %v3150 = vrot.slane %v3145, %v3149
        %v3168 = vunpack.c.l.b16 %v3129
        %v3169 = vunpack.c.l.b16 %v3130
        %v3170 = vunpack.c.l.b16 %v3131
        %v3171 = vunpack.c.l.b16 %v3132
        %v3172 = vunpack.c.l.b16 %v3133
        %v3173 = vunpack.c.l.b16 %v3134
        %v3174 = vunpack.c.l.b16 %v3135
        %v3175 = vunpack.c.l.b16 %v3136
        %v3176 = vunpack.c.l.b16 %v3137
        %v3177 = vunpack.c.l.b16 %v3138
        %v3178 = vunpack.c.l.b16 %v3139
        %v3179 = vunpack.c.l.b16 %v3140
        %v3180 = vunpack.c.l.b16 %v3141
        %v3181 = vunpack.c.l.b16 %v3142
        %v3182 = vunpack.c.l.b16 %v3143
        %v3183 = vunpack.c.l.b16 %v3144
        %v3184 = vpack.c.b16 %v3169, %v3168
        %v3185 = vpack.c.b16 %v3171, %v3170
        %v3186 = vpack.c.b16 %v3173, %v3172
        %v3187 = vpack.c.b16 %v3175, %v3174
        %v3188 = vpack.c.b16 %v3177, %v3176
        %v3189 = vpack.c.b16 %v3179, %v3178
        %v3190 = vpack.c.b16 %v3181, %v3180
        %v3191 = vpack.c.b16 %v3183, %v3182
        %3200 = vmatprep.subr.bf16.mxu0 0
        %3201 = vmatpush1.bf16.msra.mxu0 %v3184
        %3202 = vmatprep.subr.bf16.mxu0 0
        %3203 = vmatpush1.bf16.msra.mxu0 %v3185
        %3204 = vmatprep.subr.bf16.mxu0 0
        %3205 = vmatpush1.bf16.msra.mxu0 %v3186
        %3206 = vmatprep.subr.bf16.mxu0 0
        %3207 = vmatpush1.bf16.msra.mxu0 %v3187
        %3208 = vmatprep.subr.bf16.mxu0 0
        %3209 = vmatpush1.bf16.msra.mxu0 %v3188
        %3210 = vmatprep.subr.bf16.mxu0 0
        %3211 = vmatpush1.bf16.msra.mxu0 %v3189
        %3212 = vmatprep.subr.bf16.mxu0 0
        %3213 = vmatpush1.bf16.msra.mxu0 %v3190
        %3214 = vmatprep.subr.bf16.mxu0 0
        %3215 = vmatpush1.bf16.msra.mxu0 %v3191
        %3216 = vmatprep.subr.bf16.mxu0 0
        %3217 = vmatpush1.bf16.msra.mxu0 0
        %3218 = vmatprep.subr.bf16.mxu0 0
        %3219 = vmatpush1.bf16.msra.mxu0 0
        %3220 = vmatprep.subr.bf16.mxu0 0
        %3221 = vmatpush1.bf16.msra.mxu0 0
        %3222 = vmatprep.subr.bf16.mxu0 0
        %3223 = vmatpush1.bf16.msra.mxu0 0
        %3224 = vmatprep.subr.bf16.mxu0 0
        %3225 = vmatpush1.bf16.msra.mxu0 0
        %3226 = vmatprep.subr.bf16.mxu0 0
        %3227 = vmatpush1.bf16.msra.mxu0 0
        %3228 = vmatprep.subr.bf16.mxu0 0
        %3229 = vmatpush1.bf16.msra.mxu0 0
        %3230 = vmatprep.subr.bf16.mxu0 0
        %3231 = vmatpush1.bf16.msra.mxu0 0
        %3232 = vmatprep.mubr.bf16.mxu0 0
        %3233 = vmatmul.mubr.bf16.gmra.mrb[0].mxu0 %v3121
        %v3234 = vpop.f32.mrb[0].mxu0
        %v3235 = vadd.f32 %v3150, %v3234
        %v3236 = vpop.f32.mrb[0].mxu0
        %v3237 = vpop.f32.mrb[0].mxu0
        %v3238 = vadd.f32 %v3150, %v3237
        %v3239 = vpop.f32.mrb[0].mxu0
        %3240 = vmatprep.mubr.bf16.mxu0 0
        %3241 = vmatmul.mubr.bf16.gmra.mrb[0].mxu0 %v3122
        %v3242 = vpop.f32.mrb[0].mxu0
        %v3243 = vadd.f32 %v3150, %v3242
        %v3244 = vpop.f32.mrb[0].mxu0
        %v3245 = vpop.f32.mrb[0].mxu0
        %v3246 = vadd.f32 %v3150, %v3245
        %v3247 = vpop.f32.mrb[0].mxu0
        %3248 = vmatprep.mubr.bf16.mxu0 0
        %3249 = vmatmul.mubr.bf16.gmra.mrb[0].mxu0 %v3123
        %v3250 = vpop.f32.mrb[0].mxu0
        %v3251 = vadd.f32 %v3150, %v3250
        %v3252 = vpop.f32.mrb[0].mxu0
        %v3253 = vpop.f32.mrb[0].mxu0
        %v3254 = vadd.f32 %v3150, %v3253
        %v3255 = vpop.f32.mrb[0].mxu0
        %3256 = vmatprep.mubr.bf16.mxu0 0
        %3257 = vmatmul.mubr.bf16.gmra.mrb[0].mxu0 %v3124
        %v3258 = vpop.f32.mrb[0].mxu0
        %v3259 = vadd.f32 %v3150, %v3258
        %v3260 = vpop.f32.mrb[0].mxu0
        %v3261 = vpop.f32.mrb[0].mxu0
        %v3262 = vadd.f32 %v3150, %v3261
        %v3263 = vpop.f32.mrb[0].mxu0
        %3264 = vmatprep.mubr.bf16.mxu0 0
        %3265 = vmatmul.mubr.bf16.gmra.mrb[0].mxu0 %v3125
        %v3266 = vpop.f32.mrb[0].mxu0
        %v3267 = vadd.f32 %v3150, %v3266
        %v3268 = vpop.f32.mrb[0].mxu0
        %v3269 = vpop.f32.mrb[0].mxu0
        %v3270 = vadd.f32 %v3150, %v3269
        %v3271 = vpop.f32.mrb[0].mxu0
        %3272 = vmatprep.mubr.bf16.mxu0 0
        %3273 = vmatmul.mubr.bf16.gmra.mrb[0].mxu0 %v3126
        %v3274 = vpop.f32.mrb[0].mxu0
        %v3275 = vadd.f32 %v3150, %v3274
        %v3276 = vpop.f32.mrb[0].mxu0
        %v3277 = vpop.f32.mrb[0].mxu0
        %v3278 = vadd.f32 %v3150, %v3277
        %v3279 = vpop.f32.mrb[0].mxu0
        %3280 = vmatprep.mubr.bf16.mxu0 0
        %3281 = vmatmul.mubr.bf16.gmra.mrb[0].mxu0 %v3127
        %v3282 = vpop.f32.mrb[0].mxu0
        %v3283 = vadd.f32 %v3150, %v3282
        %v3284 = vpop.f32.mrb[0].mxu0
        %v3285 = vpop.f32.mrb[0].mxu0
        %v3286 = vadd.f32 %v3150, %v3285
        %v3287 = vpop.f32.mrb[0].mxu0
        %3288 = vmatprep.mubr.bf16.mxu0 0
        %3289 = vmatmul.mubr.bf16.gmra.mrb[0].mxu0 %v3128
        %v3290 = vpop.f32.mrb[0].mxu0
        %v3291 = vadd.f32 %v3150, %v3290
        %v3292 = vpop.f32.mrb[0].mxu0
        %v3293 = vpop.f32.mrb[0].mxu0
        %v3294 = vadd.f32 %v3150, %v3293
        %v3295 = vpop.f32.mrb[0].mxu0
        %3296 = vdwg.mxu0
        %v3297 = vld [vmem:[%s505] sm:$0xff]
        %v3298 = vld [vmem:[%s505 + $0x8] sm:$0xff]
        %v3299 = vld [vmem:[%s505 + $0x10] sm:$0xff]
        %v3300 = vld [vmem:[%s505 + $0x18] sm:$0xff]
        %v3301 = vld [vmem:[%s505 + $0x20] sm:$0xff]
        %v3302 = vld [vmem:[%s505 + $0x28] sm:$0xff]
        %v3303 = vld [vmem:[%s505 + $0x30] sm:$0xff]
        %v3304 = vld [vmem:[%s505 + $0x38] sm:$0xff]
        %v3305 = vld [vmem:[%s505 + $0x40] sm:$0xff]
        %v3306 = vld [vmem:[%s505 + $0x48] sm:$0xff]
        %v3307 = vld [vmem:[%s505 + $0x50] sm:$0xff]
        %v3308 = vld [vmem:[%s505 + $0x58] sm:$0xff]
        %v3309 = vld [vmem:[%s505 + $0x60] sm:$0xff]
        %v3310 = vld [vmem:[%s505 + $0x68] sm:$0xff]
        %v3311 = vld [vmem:[%s505 + $0x70] sm:$0xff]
        %v3312 = vld [vmem:[%s505 + $0x78] sm:$0xff]
        %v3313 = vadd.f32 %v3235, %v3297
        %v3314 = vadd.f32 %v3238, %v3298
        %v3315 = vadd.f32 %v3243, %v3299
        %v3316 = vadd.f32 %v3246, %v3300
        %v3317 = vadd.f32 %v3251, %v3301
        %v3318 = vadd.f32 %v3254, %v3302
        %v3319 = vadd.f32 %v3259, %v3303
        %v3320 = vadd.f32 %v3262, %v3304
        %v3321 = vadd.f32 %v3267, %v3305
        %v3322 = vadd.f32 %v3270, %v3306
        %v3323 = vadd.f32 %v3275, %v3307
        %v3324 = vadd.f32 %v3278, %v3308
        %v3325 = vadd.f32 %v3283, %v3309
        %v3326 = vadd.f32 %v3286, %v3310
        %v3327 = vadd.f32 %v3291, %v3311
        %v3328 = vadd.f32 %v3294, %v3312
        %v3329 = vld [vmem:[%s6] sm:$0x1]
        %v3330 = vld [vmem:[%s7] sm:$0x1]
        %3331 = vadd.xlane.f32.xlu0 %v3313
        %v3332 = vpop.xlane.xlu0 %3331
        %3333 = vadd.xlane.f32.xlu0 %v3314
        %v3334 = vpop.xlane.xlu0 %3333
        %3335 = vadd.xlane.f32.xlu0 %v3315
        %v3336 = vpop.xlane.xlu0 %3335
        %3337 = vadd.xlane.f32.xlu0 %v3316
        %v3338 = vpop.xlane.xlu0 %3337
        %3339 = vadd.xlane.f32.xlu0 %v3317
        %v3340 = vpop.xlane.xlu0 %3339
        %3341 = vadd.xlane.f32.xlu0 %v3318
        %v3342 = vpop.xlane.xlu0 %3341
        %3343 = vadd.xlane.f32.xlu0 %v3319
        %v3344 = vpop.xlane.xlu0 %3343
        %3345 = vadd.xlane.f32.xlu0 %v3320
        %v3346 = vpop.xlane.xlu0 %3345
        %3347 = vadd.xlane.f32.xlu0 %v3321
        %v3348 = vpop.xlane.xlu0 %3347
        %3349 = vadd.xlane.f32.xlu0 %v3322
        %v3350 = vpop.xlane.xlu0 %3349
        %3351 = vadd.xlane.f32.xlu0 %v3323
        %v3352 = vpop.xlane.xlu0 %3351
        %3353 = vadd.xlane.f32.xlu0 %v3324
        %v3354 = vpop.xlane.xlu0 %3353
        %3355 = vadd.xlane.f32.xlu0 %v3325
        %v3356 = vpop.xlane.xlu0 %3355
        %3357 = vadd.xlane.f32.xlu0 %v3326
        %v3358 = vpop.xlane.xlu0 %3357
        %3359 = vadd.xlane.f32.xlu0 %v3327
        %v3360 = vpop.xlane.xlu0 %3359
        %3361 = vadd.xlane.f32.xlu0 %v3328
        %v3362 = vpop.xlane.xlu0 %3361
        %v3363 = vrcp.pop 128.0
        %v3364 = vmul.f32 %v3332, %v3363
        %v3365 = vmul.f32 %v3334, %v3363
        %v3366 = vmul.f32 %v3336, %v3363
        %v3367 = vmul.f32 %v3338, %v3363
        %v3368 = vmul.f32 %v3340, %v3363
        %v3369 = vmul.f32 %v3342, %v3363
        %v3370 = vmul.f32 %v3344, %v3363
        %v3371 = vmul.f32 %v3346, %v3363
        %v3372 = vmul.f32 %v3348, %v3363
        %v3373 = vmul.f32 %v3350, %v3363
        %v3374 = vmul.f32 %v3352, %v3363
        %v3375 = vmul.f32 %v3354, %v3363
        %v3376 = vmul.f32 %v3356, %v3363
        %v3377 = vmul.f32 %v3358, %v3363
        %v3378 = vmul.f32 %v3360, %v3363
        %v3379 = vmul.f32 %v3362, %v3363
        %v3380 = vsub.f32 %v3313, %v3364
        %v3381 = vsub.f32 %v3314, %v3365
        %v3382 = vsub.f32 %v3315, %v3366
        %v3383 = vsub.f32 %v3316, %v3367
        %v3384 = vsub.f32 %v3317, %v3368
        %v3385 = vsub.f32 %v3318, %v3369
        %v3386 = vsub.f32 %v3319, %v3370
        %v3387 = vsub.f32 %v3320, %v3371
        %v3388 = vsub.f32 %v3321, %v3372
        %v3389 = vsub.f32 %v3322, %v3373
        %v3390 = vsub.f32 %v3323, %v3374
        %v3391 = vsub.f32 %v3324, %v3375
        %v3392 = vsub.f32 %v3325, %v3376
        %v3393 = vsub.f32 %v3326, %v3377
        %v3394 = vsub.f32 %v3327, %v3378
        %v3395 = vsub.f32 %v3328, %v3379
        %v3396 = vmul.f32 %v3380, %v3380
        %v3397 = vmul.f32 %v3381, %v3381
        %v3398 = vmul.f32 %v3382, %v3382
        %v3399 = vmul.f32 %v3383, %v3383
        %v3400 = vmul.f32 %v3384, %v3384
        %v3401 = vmul.f32 %v3385, %v3385
        %v3402 = vmul.f32 %v3386, %v3386
        %v3403 = vmul.f32 %v3387, %v3387
        %v3404 = vmul.f32 %v3388, %v3388
        %v3405 = vmul.f32 %v3389, %v3389
        %v3406 = vmul.f32 %v3390, %v3390
        %v3407 = vmul.f32 %v3391, %v3391
        %v3408 = vmul.f32 %v3392, %v3392
        %v3409 = vmul.f32 %v3393, %v3393
        %v3410 = vmul.f32 %v3394, %v3394
        %v3411 = vmul.f32 %v3395, %v3395
        %3412 = vadd.xlane.f32.xlu0 %v3396
        %v3413 = vpop.xlane.xlu0 %3412
        %3414 = vadd.xlane.f32.xlu0 %v3397
        %v3415 = vpop.xlane.xlu0 %3414
        %3416 = vadd.xlane.f32.xlu0 %v3398
        %v3417 = vpop.xlane.xlu0 %3416
        %3418 = vadd.xlane.f32.xlu0 %v3399
        %v3419 = vpop.xlane.xlu0 %3418
        %3420 = vadd.xlane.f32.xlu0 %v3400
        %v3421 = vpop.xlane.xlu0 %3420
        %3422 = vadd.xlane.f32.xlu0 %v3401
        %v3423 = vpop.xlane.xlu0 %3422
        %3424 = vadd.xlane.f32.xlu0 %v3402
        %v3425 = vpop.xlane.xlu0 %3424
        %3426 = vadd.xlane.f32.xlu0 %v3403
        %v3427 = vpop.xlane.xlu0 %3426
        %3428 = vadd.xlane.f32.xlu0 %v3404
        %v3429 = vpop.xlane.xlu0 %3428
        %3430 = vadd.xlane.f32.xlu0 %v3405
        %v3431 = vpop.xlane.xlu0 %3430
        %3432 = vadd.xlane.f32.xlu0 %v3406
        %v3433 = vpop.xlane.xlu0 %3432
        %3434 = vadd.xlane.f32.xlu0 %v3407
        %v3435 = vpop.xlane.xlu0 %3434
        %3436 = vadd.xlane.f32.xlu0 %v3408
        %v3437 = vpop.xlane.xlu0 %3436
        %3438 = vadd.xlane.f32.xlu0 %v3409
        %v3439 = vpop.xlane.xlu0 %3438
        %3440 = vadd.xlane.f32.xlu0 %v3410
        %v3441 = vpop.xlane.xlu0 %3440
        %3442 = vadd.xlane.f32.xlu0 %v3411
        %v3443 = vpop.xlane.xlu0 %3442
        %v3444 = vmul.f32 %v3413, %v3363
        %v3445 = vmul.f32 %v3415, %v3363
        %v3446 = vmul.f32 %v3417, %v3363
        %v3447 = vmul.f32 %v3419, %v3363
        %v3448 = vmul.f32 %v3421, %v3363
        %v3449 = vmul.f32 %v3423, %v3363
        %v3450 = vmul.f32 %v3425, %v3363
        %v3451 = vmul.f32 %v3427, %v3363
        %v3452 = vmul.f32 %v3429, %v3363
        %v3453 = vmul.f32 %v3431, %v3363
        %v3454 = vmul.f32 %v3433, %v3363
        %v3455 = vmul.f32 %v3435, %v3363
        %v3456 = vmul.f32 %v3437, %v3363
        %v3457 = vmul.f32 %v3439, %v3363
        %v3458 = vmul.f32 %v3441, %v3363
        %v3459 = vmul.f32 %v3443, %v3363
        %v3460 = vadd.f32 %v3444, 1e-12
        %v3461 = vadd.f32 %v3445, 1e-12
        %v3462 = vadd.f32 %v3446, 1e-12
        %v3463 = vadd.f32 %v3447, 1e-12
        %v3464 = vadd.f32 %v3448, 1e-12
        %v3465 = vadd.f32 %v3449, 1e-12
        %v3466 = vadd.f32 %v3450, 1e-12
        %v3467 = vadd.f32 %v3451, 1e-12
        %v3468 = vadd.f32 %v3452, 1e-12
        %v3469 = vadd.f32 %v3453, 1e-12
        %v3470 = vadd.f32 %v3454, 1e-12
        %v3471 = vadd.f32 %v3455, 1e-12
        %v3472 = vadd.f32 %v3456, 1e-12
        %v3473 = vadd.f32 %v3457, 1e-12
        %v3474 = vadd.f32 %v3458, 1e-12
        %v3475 = vadd.f32 %v3459, 1e-12
        %v3476 = vrsqrt.pop %v3460
        %v3477 = vrsqrt.pop %v3461
        %v3478 = vrsqrt.pop %v3462
        %v3479 = vrsqrt.pop %v3463
        %v3480 = vrsqrt.pop %v3464
        %v3481 = vrsqrt.pop %v3465
        %v3482 = vrsqrt.pop %v3466
        %v3483 = vrsqrt.pop %v3467
        %v3484 = vrsqrt.pop %v3468
        %v3485 = vrsqrt.pop %v3469
        %v3486 = vrsqrt.pop %v3470
        %v3487 = vrsqrt.pop %v3471
        %v3488 = vrsqrt.pop %v3472
        %v3489 = vrsqrt.pop %v3473
        %v3490 = vrsqrt.pop %v3474
        %v3491 = vrsqrt.pop %v3475
        %v3492 = vmul.f32 %v3380, %v3476
        %v3493 = vmul.f32 %v3381, %v3477
        %v3494 = vmul.f32 %v3382, %v3478
        %v3495 = vmul.f32 %v3383, %v3479
        %v3496 = vmul.f32 %v3384, %v3480
        %v3497 = vmul.f32 %v3385, %v3481
        %v3498 = vmul.f32 %v3386, %v3482
        %v3499 = vmul.f32 %v3387, %v3483
        %v3500 = vmul.f32 %v3388, %v3484
        %v3501 = vmul.f32 %v3389, %v3485
        %v3502 = vmul.f32 %v3390, %v3486
        %v3503 = vmul.f32 %v3391, %v3487
        %v3504 = vmul.f32 %v3392, %v3488
        %v3505 = vmul.f32 %v3393, %v3489
        %v3506 = vmul.f32 %v3394, %v3490
        %v3507 = vmul.f32 %v3395, %v3491
        %v3509 = vlaneseq
        %v3510 = vshrl.u32 %v3509, 7
        %v3511 = vsub.s32 0, %v3510
        %v3512 = vrot.slane %v3329, %v3511
        %v3514 = vmul.f32 %v3492, %v3512
        %v3515 = vmul.f32 %v3493, %v3512
        %v3516 = vmul.f32 %v3494, %v3512
        %v3517 = vmul.f32 %v3495, %v3512
        %v3518 = vmul.f32 %v3496, %v3512
        %v3519 = vmul.f32 %v3497, %v3512
        %v3520 = vmul.f32 %v3498, %v3512
        %v3521 = vmul.f32 %v3499, %v3512
        %v3522 = vmul.f32 %v3500, %v3512
        %v3523 = vmul.f32 %v3501, %v3512
        %v3524 = vmul.f32 %v3502, %v3512
        %v3525 = vmul.f32 %v3503, %v3512
        %v3526 = vmul.f32 %v3504, %v3512
        %v3527 = vmul.f32 %v3505, %v3512
        %v3528 = vmul.f32 %v3506, %v3512
        %v3529 = vmul.f32 %v3507, %v3512
        %v3531 = vlaneseq
        %v3532 = vshrl.u32 %v3531, 7
        %v3533 = vsub.s32 0, %v3532
        %v3534 = vrot.slane %v3330, %v3533
        %v3536 = vadd.f32 %v3514, %v3534
        %v3537 = vadd.f32 %v3515, %v3534
        %v3538 = vadd.f32 %v3516, %v3534
        %v3539 = vadd.f32 %v3517, %v3534
        %v3540 = vadd.f32 %v3518, %v3534
        %v3541 = vadd.f32 %v3519, %v3534
        %v3542 = vadd.f32 %v3520, %v3534
        %v3543 = vadd.f32 %v3521, %v3534
        %v3544 = vadd.f32 %v3522, %v3534
        %v3545 = vadd.f32 %v3523, %v3534
        %v3546 = vadd.f32 %v3524, %v3534
        %v3547 = vadd.f32 %v3525, %v3534
        %v3548 = vadd.f32 %v3526, %v3534
        %v3549 = vadd.f32 %v3527, %v3534
        %v3550 = vadd.f32 %v3528, %v3534
        %v3551 = vadd.f32 %v3529, %v3534
        %v3552 = vpack.c.bf16 %v3537, %v3536
        %v3553 = vpack.c.bf16 %v3539, %v3538
        %v3554 = vpack.c.bf16 %v3541, %v3540
        %v3555 = vpack.c.bf16 %v3543, %v3542
        %v3556 = vpack.c.bf16 %v3545, %v3544
        %v3557 = vpack.c.bf16 %v3547, %v3546
        %v3558 = vpack.c.bf16 %v3549, %v3548
        %v3559 = vpack.c.bf16 %v3551, %v3550
        %v3560 = vld [vmem:[#allocation12] sm:$0xff]
        %v3561 = vld [vmem:[#allocation12 + $0x8] sm:$0xff]
        %v3562 = vld [vmem:[#allocation12 + $0x10] sm:$0xff]
        %v3563 = vld [vmem:[#allocation12 + $0x18] sm:$0xff]
        %v3564 = vld [vmem:[#allocation12 + $0x20] sm:$0xff]
        %v3565 = vld [vmem:[#allocation12 + $0x28] sm:$0xff]
        %v3566 = vld [vmem:[#allocation12 + $0x30] sm:$0xff]
        %v3567 = vld [vmem:[#allocation12 + $0x38] sm:$0xff]
        %v3568 = vld [vmem:[#allocation12 + $0x40] sm:$0xff]
        %v3569 = vld [vmem:[#allocation12 + $0x48] sm:$0xff]
        %v3570 = vld [vmem:[#allocation12 + $0x50] sm:$0xff]
        %v3571 = vld [vmem:[#allocation12 + $0x58] sm:$0xff]
        %v3572 = vld [vmem:[#allocation12 + $0x60] sm:$0xff]
        %v3573 = vld [vmem:[#allocation12 + $0x68] sm:$0xff]
        %v3574 = vld [vmem:[#allocation12 + $0x70] sm:$0xff]
        %v3575 = vld [vmem:[#allocation12 + $0x78] sm:$0xff]
        %v3576 = vld [vmem:[#allocation12 + $0x80] sm:$0xff]
        %v3577 = vld [vmem:[#allocation12 + $0x88] sm:$0xff]
        %v3578 = vld [vmem:[#allocation12 + $0x90] sm:$0xff]
        %v3579 = vld [vmem:[#allocation12 + $0x98] sm:$0xff]
        %v3580 = vld [vmem:[#allocation12 + $0xa0] sm:$0xff]
        %v3581 = vld [vmem:[#allocation12 + $0xa8] sm:$0xff]
        %v3582 = vld [vmem:[#allocation12 + $0xb0] sm:$0xff]
        %v3583 = vld [vmem:[#allocation12 + $0xb8] sm:$0xff]
        %v3584 = vld [vmem:[#allocation12 + $0xc0] sm:$0xff]
        %v3585 = vld [vmem:[#allocation12 + $0xc8] sm:$0xff]
        %v3586 = vld [vmem:[#allocation12 + $0xd0] sm:$0xff]
        %v3587 = vld [vmem:[#allocation12 + $0xd8] sm:$0xff]
        %v3588 = vld [vmem:[#allocation12 + $0xe0] sm:$0xff]
        %v3589 = vld [vmem:[#allocation12 + $0xe8] sm:$0xff]
        %v3590 = vld [vmem:[#allocation12 + $0xf0] sm:$0xff]
        %v3591 = vld [vmem:[#allocation12 + $0xf8] sm:$0xff]
        %v3592 = vld [vmem:[%s9] sm:$0xf]
        %v3594 = vlaneseq
        %v3595 = vshrl.u32 %v3594, 7
        %v3596 = vsub.s32 0, %v3595
        %v3597 = vrot.slane %v3592, %v3596
        %v3598 = vlaneseq
        %v3599 = vshrl.u32 %v3598, 7
        %v3600 = vsub.s32 1, %v3599
        %v3601 = vrot.slane %v3592, %v3600
        %v3602 = vlaneseq
        %v3603 = vshrl.u32 %v3602, 7
        %v3604 = vsub.s32 2, %v3603
        %v3605 = vrot.slane %v3592, %v3604
        %v3606 = vlaneseq
        %v3607 = vshrl.u32 %v3606, 7
        %v3608 = vsub.s32 3, %v3607
        %v3609 = vrot.slane %v3592, %v3608
        %v3646 = vunpack.c.l.b16 %v3560
        %v3647 = vunpack.c.h.b16 %v3560
        %v3648 = vunpack.c.l.b16 %v3561
        %v3649 = vunpack.c.h.b16 %v3561
        %v3650 = vunpack.c.l.b16 %v3562
        %v3651 = vunpack.c.h.b16 %v3562
        %v3652 = vunpack.c.l.b16 %v3563
        %v3653 = vunpack.c.h.b16 %v3563
        %v3654 = vunpack.c.l.b16 %v3564
        %v3655 = vunpack.c.h.b16 %v3564
        %v3656 = vunpack.c.l.b16 %v3565
        %v3657 = vunpack.c.h.b16 %v3565
        %v3658 = vunpack.c.l.b16 %v3566
        %v3659 = vunpack.c.h.b16 %v3566
        %v3660 = vunpack.c.l.b16 %v3567
        %v3661 = vunpack.c.h.b16 %v3567
        %v3662 = vunpack.c.l.b16 %v3568
        %v3663 = vunpack.c.h.b16 %v3568
        %v3664 = vunpack.c.l.b16 %v3569
        %v3665 = vunpack.c.h.b16 %v3569
        %v3666 = vunpack.c.l.b16 %v3570
        %v3667 = vunpack.c.h.b16 %v3570
        %v3668 = vunpack.c.l.b16 %v3571
        %v3669 = vunpack.c.h.b16 %v3571
        %v3670 = vunpack.c.l.b16 %v3572
        %v3671 = vunpack.c.h.b16 %v3572
        %v3672 = vunpack.c.l.b16 %v3573
        %v3673 = vunpack.c.h.b16 %v3573
        %v3674 = vunpack.c.l.b16 %v3574
        %v3675 = vunpack.c.h.b16 %v3574
        %v3676 = vunpack.c.l.b16 %v3575
        %v3677 = vunpack.c.h.b16 %v3575
        %v3678 = vunpack.c.l.b16 %v3576
        %v3679 = vunpack.c.h.b16 %v3576
        %v3680 = vunpack.c.l.b16 %v3577
        %v3681 = vunpack.c.h.b16 %v3577
        %v3682 = vunpack.c.l.b16 %v3578
        %v3683 = vunpack.c.h.b16 %v3578
        %v3684 = vunpack.c.l.b16 %v3579
        %v3685 = vunpack.c.h.b16 %v3579
        %v3686 = vunpack.c.l.b16 %v3580
        %v3687 = vunpack.c.h.b16 %v3580
        %v3688 = vunpack.c.l.b16 %v3581
        %v3689 = vunpack.c.h.b16 %v3581
        %v3690 = vunpack.c.l.b16 %v3582
        %v3691 = vunpack.c.h.b16 %v3582
        %v3692 = vunpack.c.l.b16 %v3583
        %v3693 = vunpack.c.h.b16 %v3583
        %v3694 = vunpack.c.l.b16 %v3584
        %v3695 = vunpack.c.h.b16 %v3584
        %v3696 = vunpack.c.l.b16 %v3585
        %v3697 = vunpack.c.h.b16 %v3585
        %v3698 = vunpack.c.l.b16 %v3586
        %v3699 = vunpack.c.h.b16 %v3586
        %v3700 = vunpack.c.l.b16 %v3587
        %v3701 = vunpack.c.h.b16 %v3587
        %v3702 = vunpack.c.l.b16 %v3588
        %v3703 = vunpack.c.h.b16 %v3588
        %v3704 = vunpack.c.l.b16 %v3589
        %v3705 = vunpack.c.h.b16 %v3589
        %v3706 = vunpack.c.l.b16 %v3590
        %v3707 = vunpack.c.h.b16 %v3590
        %v3708 = vunpack.c.l.b16 %v3591
        %v3709 = vunpack.c.h.b16 %v3591
        %v3710 = vpack.c.b16 %v3650, %v3646
        %v3711 = vpack.c.b16 %v3651, %v3647
        %v3712 = vpack.c.b16 %v3652, %v3648
        %v3713 = vpack.c.b16 %v3653, %v3649
        %v3714 = vpack.c.b16 %v3658, %v3654
        %v3715 = vpack.c.b16 %v3659, %v3655
        %v3716 = vpack.c.b16 %v3660, %v3656
        %v3717 = vpack.c.b16 %v3661, %v3657
        %v3718 = vpack.c.b16 %v3666, %v3662
        %v3719 = vpack.c.b16 %v3667, %v3663
        %v3720 = vpack.c.b16 %v3668, %v3664
        %v3721 = vpack.c.b16 %v3669, %v3665
        %v3722 = vpack.c.b16 %v3674, %v3670
        %v3723 = vpack.c.b16 %v3675, %v3671
        %v3724 = vpack.c.b16 %v3676, %v3672
        %v3725 = vpack.c.b16 %v3677, %v3673
        %v3726 = vpack.c.b16 %v3682, %v3678
        %v3727 = vpack.c.b16 %v3683, %v3679
        %v3728 = vpack.c.b16 %v3684, %v3680
        %v3729 = vpack.c.b16 %v3685, %v3681
        %v3730 = vpack.c.b16 %v3690, %v3686
        %v3731 = vpack.c.b16 %v3691, %v3687
        %v3732 = vpack.c.b16 %v3692, %v3688
        %v3733 = vpack.c.b16 %v3693, %v3689
        %v3734 = vpack.c.b16 %v3698, %v3694
        %v3735 = vpack.c.b16 %v3699, %v3695
        %v3736 = vpack.c.b16 %v3700, %v3696
        %v3737 = vpack.c.b16 %v3701, %v3697
        %v3738 = vpack.c.b16 %v3706, %v3702
        %v3739 = vpack.c.b16 %v3707, %v3703
        %v3740 = vpack.c.b16 %v3708, %v3704
        %v3741 = vpack.c.b16 %v3709, %v3705
        %3774 = vmatprep.subr.bf16.mxu0 %v3711
        %3775 = vmatpush1.bf16.msra.mxu0 %v3710
        %3776 = vmatprep.subr.bf16.mxu0 %v3715
        %3777 = vmatpush1.bf16.msra.mxu0 %v3714
        %3778 = vmatprep.subr.bf16.mxu0 %v3719
        %3779 = vmatpush1.bf16.msra.mxu0 %v3718
        %3780 = vmatprep.subr.bf16.mxu0 %v3723
        %3781 = vmatpush1.bf16.msra.mxu0 %v3722
        %3782 = vmatprep.subr.bf16.mxu0 %v3727
        %3783 = vmatpush1.bf16.msra.mxu0 %v3726
        %3784 = vmatprep.subr.bf16.mxu0 %v3731
        %3785 = vmatpush1.bf16.msra.mxu0 %v3730
        %3786 = vmatprep.subr.bf16.mxu0 %v3735
        %3787 = vmatpush1.bf16.msra.mxu0 %v3734
        %3788 = vmatprep.subr.bf16.mxu0 %v3739
        %3789 = vmatpush1.bf16.msra.mxu0 %v3738
        %3790 = vmatprep.subr.bf16.mxu0 0
        %3791 = vmatpush1.bf16.msra.mxu0 0
        %3792 = vmatprep.subr.bf16.mxu0 0
        %3793 = vmatpush1.bf16.msra.mxu0 0
        %3794 = vmatprep.subr.bf16.mxu0 0
        %3795 = vmatpush1.bf16.msra.mxu0 0
        %3796 = vmatprep.subr.bf16.mxu0 0
        %3797 = vmatpush1.bf16.msra.mxu0 0
        %3798 = vmatprep.subr.bf16.mxu0 0
        %3799 = vmatpush1.bf16.msra.mxu0 0
        %3800 = vmatprep.subr.bf16.mxu0 0
        %3801 = vmatpush1.bf16.msra.mxu0 0
        %3802 = vmatprep.subr.bf16.mxu0 0
        %3803 = vmatpush1.bf16.msra.mxu0 0
        %3804 = vmatprep.subr.bf16.mxu0 0
        %3805 = vmatpush1.bf16.msra.mxu0 0
        %3806 = vmatprep.mubr.bf16.mxu0 0
        %3807 = vmatmul.mubr.bf16.gmra.mrb[0].mxu0 %v3552
        %v3808 = vpop.f32.mrb[0].mxu0
        %v3809 = vadd.f32 %v3597, %v3808
        %v3810 = vpop.f32.mrb[0].mxu0
        %v3811 = vadd.f32 %v3601, %v3810
        %v3812 = vpop.f32.mrb[0].mxu0
        %v3813 = vadd.f32 %v3597, %v3812
        %v3814 = vpop.f32.mrb[0].mxu0
        %v3815 = vadd.f32 %v3601, %v3814
        %3816 = vmatprep.mubr.bf16.mxu0 0
        %3817 = vmatmul.mubr.bf16.gmra.mrb[0].mxu0 %v3553
        %v3818 = vpop.f32.mrb[0].mxu0
        %v3819 = vadd.f32 %v3597, %v3818
        %v3820 = vpop.f32.mrb[0].mxu0
        %v3821 = vadd.f32 %v3601, %v3820
        %v3822 = vpop.f32.mrb[0].mxu0
        %v3823 = vadd.f32 %v3597, %v3822
        %v3824 = vpop.f32.mrb[0].mxu0
        %v3825 = vadd.f32 %v3601, %v3824
        %3826 = vmatprep.mubr.bf16.mxu0 0
        %3827 = vmatmul.mubr.bf16.gmra.mrb[0].mxu0 %v3554
        %v3828 = vpop.f32.mrb[0].mxu0
        %v3829 = vadd.f32 %v3597, %v3828
        %v3830 = vpop.f32.mrb[0].mxu0
        %v3831 = vadd.f32 %v3601, %v3830
        %v3832 = vpop.f32.mrb[0].mxu0
        %v3833 = vadd.f32 %v3597, %v3832
        %v3834 = vpop.f32.mrb[0].mxu0
        %v3835 = vadd.f32 %v3601, %v3834
        %3836 = vmatprep.mubr.bf16.mxu0 0
        %3837 = vmatmul.mubr.bf16.gmra.mrb[0].mxu0 %v3555
        %v3838 = vpop.f32.mrb[0].mxu0
        %v3839 = vadd.f32 %v3597, %v3838
        %v3840 = vpop.f32.mrb[0].mxu0
        %v3841 = vadd.f32 %v3601, %v3840
        %v3842 = vpop.f32.mrb[0].mxu0
        %v3843 = vadd.f32 %v3597, %v3842
        %v3844 = vpop.f32.mrb[0].mxu0
        %v3845 = vadd.f32 %v3601, %v3844
        %3846 = vmatprep.mubr.bf16.mxu0 0
        %3847 = vmatmul.mubr.bf16.gmra.mrb[0].mxu0 %v3556
        %v3848 = vpop.f32.mrb[0].mxu0
        %v3849 = vadd.f32 %v3597, %v3848
        %v3850 = vpop.f32.mrb[0].mxu0
        %v3851 = vadd.f32 %v3601, %v3850
        %v3852 = vpop.f32.mrb[0].mxu0
        %v3853 = vadd.f32 %v3597, %v3852
        %v3854 = vpop.f32.mrb[0].mxu0
        %v3855 = vadd.f32 %v3601, %v3854
        %3856 = vmatprep.mubr.bf16.mxu0 0
        %3857 = vmatmul.mubr.bf16.gmra.mrb[0].mxu0 %v3557
        %v3858 = vpop.f32.mrb[0].mxu0
        %v3859 = vadd.f32 %v3597, %v3858
        %v3860 = vpop.f32.mrb[0].mxu0
        %v3861 = vadd.f32 %v3601, %v3860
        %v3862 = vpop.f32.mrb[0].mxu0
        %v3863 = vadd.f32 %v3597, %v3862
        %v3864 = vpop.f32.mrb[0].mxu0
        %v3865 = vadd.f32 %v3601, %v3864
        %3866 = vmatprep.mubr.bf16.mxu0 0
        %3867 = vmatmul.mubr.bf16.gmra.mrb[0].mxu0 %v3558
        %v3868 = vpop.f32.mrb[0].mxu0
        %v3869 = vadd.f32 %v3597, %v3868
        %v3870 = vpop.f32.mrb[0].mxu0
        %v3871 = vadd.f32 %v3601, %v3870
        %v3872 = vpop.f32.mrb[0].mxu0
        %v3873 = vadd.f32 %v3597, %v3872
        %v3874 = vpop.f32.mrb[0].mxu0
        %v3875 = vadd.f32 %v3601, %v3874
        %3876 = vmatprep.mubr.bf16.mxu0 0
        %3877 = vmatmul.mubr.bf16.gmra.mrb[0].mxu0 %v3559
        %v3878 = vpop.f32.mrb[0].mxu0
        %v3879 = vadd.f32 %v3597, %v3878
        %v3880 = vpop.f32.mrb[0].mxu0
        %v3881 = vadd.f32 %v3601, %v3880
        %v3882 = vpop.f32.mrb[0].mxu0
        %v3883 = vadd.f32 %v3597, %v3882
        %v3884 = vpop.f32.mrb[0].mxu0
        %v3885 = vadd.f32 %v3601, %v3884
        %3886 = vdwg.mxu0
        %3887 = vmatprep.subr.bf16.mxu0 %v3713
        %3888 = vmatpush1.bf16.msra.mxu0 %v3712
        %3889 = vmatprep.subr.bf16.mxu0 %v3717
        %3890 = vmatpush1.bf16.msra.mxu0 %v3716
        %3891 = vmatprep.subr.bf16.mxu0 %v3721
        %3892 = vmatpush1.bf16.msra.mxu0 %v3720
        %3893 = vmatprep.subr.bf16.mxu0 %v3725
        %3894 = vmatpush1.bf16.msra.mxu0 %v3724
        %3895 = vmatprep.subr.bf16.mxu0 %v3729
        %3896 = vmatpush1.bf16.msra.mxu0 %v3728
        %3897 = vmatprep.subr.bf16.mxu0 %v3733
        %3898 = vmatpush1.bf16.msra.mxu0 %v3732
        %3899 = vmatprep.subr.bf16.mxu0 %v3737
        %3900 = vmatpush1.bf16.msra.mxu0 %v3736
        %3901 = vmatprep.subr.bf16.mxu0 %v3741
        %3902 = vmatpush1.bf16.msra.mxu0 %v3740
        %3903 = vmatprep.subr.bf16.mxu0 0
        %3904 = vmatpush1.bf16.msra.mxu0 0
        %3905 = vmatprep.subr.bf16.mxu0 0
        %3906 = vmatpush1.bf16.msra.mxu0 0
        %3907 = vmatprep.subr.bf16.mxu0 0
        %3908 = vmatpush1.bf16.msra.mxu0 0
        %3909 = vmatprep.subr.bf16.mxu0 0
        %3910 = vmatpush1.bf16.msra.mxu0 0
        %3911 = vmatprep.subr.bf16.mxu0 0
        %3912 = vmatpush1.bf16.msra.mxu0 0
        %3913 = vmatprep.subr.bf16.mxu0 0
        %3914 = vmatpush1.bf16.msra.mxu0 0
        %3915 = vmatprep.subr.bf16.mxu0 0
        %3916 = vmatpush1.bf16.msra.mxu0 0
        %3917 = vmatprep.subr.bf16.mxu0 0
        %3918 = vmatpush1.bf16.msra.mxu0 0
        %3919 = vmatprep.mubr.bf16.mxu0 0
        %3920 = vmatmul.mubr.bf16.gmra.mrb[0].mxu0 %v3552
        %v3921 = vpop.f32.mrb[0].mxu0
        %v3922 = vadd.f32 %v3605, %v3921
        %v3923 = vpop.f32.mrb[0].mxu0
        %v3924 = vadd.f32 %v3609, %v3923
        %v3925 = vpop.f32.mrb[0].mxu0
        %v3926 = vadd.f32 %v3605, %v3925
        %v3927 = vpop.f32.mrb[0].mxu0
        %v3928 = vadd.f32 %v3609, %v3927
        %3929 = vmatprep.mubr.bf16.mxu0 0
        %3930 = vmatmul.mubr.bf16.gmra.mrb[0].mxu0 %v3553
        %v3931 = vpop.f32.mrb[0].mxu0
        %v3932 = vadd.f32 %v3605, %v3931
        %v3933 = vpop.f32.mrb[0].mxu0
        %v3934 = vadd.f32 %v3609, %v3933
        %v3935 = vpop.f32.mrb[0].mxu0
        %v3936 = vadd.f32 %v3605, %v3935
        %v3937 = vpop.f32.mrb[0].mxu0
        %v3938 = vadd.f32 %v3609, %v3937
        %3939 = vmatprep.mubr.bf16.mxu0 0
        %3940 = vmatmul.mubr.bf16.gmra.mrb[0].mxu0 %v3554
        %v3941 = vpop.f32.mrb[0].mxu0
        %v3942 = vadd.f32 %v3605, %v3941
        %v3943 = vpop.f32.mrb[0].mxu0
        %v3944 = vadd.f32 %v3609, %v3943
        %v3945 = vpop.f32.mrb[0].mxu0
        %v3946 = vadd.f32 %v3605, %v3945
        %v3947 = vpop.f32.mrb[0].mxu0
        %v3948 = vadd.f32 %v3609, %v3947
        %3949 = vmatprep.mubr.bf16.mxu0 0
        %3950 = vmatmul.mubr.bf16.gmra.mrb[0].mxu0 %v3555
        %v3951 = vpop.f32.mrb[0].mxu0
        %v3952 = vadd.f32 %v3605, %v3951
        %v3953 = vpop.f32.mrb[0].mxu0
        %v3954 = vadd.f32 %v3609, %v3953
        %v3955 = vpop.f32.mrb[0].mxu0
        %v3956 = vadd.f32 %v3605, %v3955
        %v3957 = vpop.f32.mrb[0].mxu0
        %v3958 = vadd.f32 %v3609, %v3957
        %3959 = vmatprep.mubr.bf16.mxu0 0
        %3960 = vmatmul.mubr.bf16.gmra.mrb[0].mxu0 %v3556
        %v3961 = vpop.f32.mrb[0].mxu0
        %v3962 = vadd.f32 %v3605, %v3961
        %v3963 = vpop.f32.mrb[0].mxu0
        %v3964 = vadd.f32 %v3609, %v3963
        %v3965 = vpop.f32.mrb[0].mxu0
        %v3966 = vadd.f32 %v3605, %v3965
        %v3967 = vpop.f32.mrb[0].mxu0
        %v3968 = vadd.f32 %v3609, %v3967
        %3969 = vmatprep.mubr.bf16.mxu0 0
        %3970 = vmatmul.mubr.bf16.gmra.mrb[0].mxu0 %v3557
        %v3971 = vpop.f32.mrb[0].mxu0
        %v3972 = vadd.f32 %v3605, %v3971
        %v3973 = vpop.f32.mrb[0].mxu0
        %v3974 = vadd.f32 %v3609, %v3973
        %v3975 = vpop.f32.mrb[0].mxu0
        %v3976 = vadd.f32 %v3605, %v3975
        %v3977 = vpop.f32.mrb[0].mxu0
        %v3978 = vadd.f32 %v3609, %v3977
        %3979 = vmatprep.mubr.bf16.mxu0 0
        %3980 = vmatmul.mubr.bf16.gmra.mrb[0].mxu0 %v3558
        %v3981 = vpop.f32.mrb[0].mxu0
        %v3982 = vadd.f32 %v3605, %v3981
        %v3983 = vpop.f32.mrb[0].mxu0
        %v3984 = vadd.f32 %v3609, %v3983
        %v3985 = vpop.f32.mrb[0].mxu0
        %v3986 = vadd.f32 %v3605, %v3985
        %v3987 = vpop.f32.mrb[0].mxu0
        %v3988 = vadd.f32 %v3609, %v3987
        %3989 = vmatprep.mubr.bf16.mxu0 0
        %3990 = vmatmul.mubr.bf16.gmra.mrb[0].mxu0 %v3559
        %v3991 = vpop.f32.mrb[0].mxu0
        %v3992 = vadd.f32 %v3605, %v3991
        %v3993 = vpop.f32.mrb[0].mxu0
        %v3994 = vadd.f32 %v3609, %v3993
        %v3995 = vpop.f32.mrb[0].mxu0
        %v3996 = vadd.f32 %v3605, %v3995
        %v3997 = vpop.f32.mrb[0].mxu0
        %v3998 = vadd.f32 %v3609, %v3997
        %3999 = vdwg.mxu0
        %v4000 = vmul.f32 %v3809, 0.5
        %v4001 = vmul.f32 %v3811, 0.5
        %v4002 = vmul.f32 %v3922, 0.5
        %v4003 = vmul.f32 %v3924, 0.5
        %v4004 = vmul.f32 %v3813, 0.5
        %v4005 = vmul.f32 %v3815, 0.5
        %v4006 = vmul.f32 %v3926, 0.5
        %v4007 = vmul.f32 %v3928, 0.5
        %v4008 = vmul.f32 %v3819, 0.5
        %v4009 = vmul.f32 %v3821, 0.5
        %v4010 = vmul.f32 %v3932, 0.5
        %v4011 = vmul.f32 %v3934, 0.5
        %v4012 = vmul.f32 %v3823, 0.5
        %v4013 = vmul.f32 %v3825, 0.5
        %v4014 = vmul.f32 %v3936, 0.5
        %v4015 = vmul.f32 %v3938, 0.5
        %v4016 = vmul.f32 %v3829, 0.5
        %v4017 = vmul.f32 %v3831, 0.5
        %v4018 = vmul.f32 %v3942, 0.5
        %v4019 = vmul.f32 %v3944, 0.5
        %v4020 = vmul.f32 %v3833, 0.5
        %v4021 = vmul.f32 %v3835, 0.5
        %v4022 = vmul.f32 %v3946, 0.5
        %v4023 = vmul.f32 %v3948, 0.5
        %v4024 = vmul.f32 %v3839, 0.5
        %v4025 = vmul.f32 %v3841, 0.5
        %v4026 = vmul.f32 %v3952, 0.5
        %v4027 = vmul.f32 %v3954, 0.5
        %v4028 = vmul.f32 %v3843, 0.5
        %v4029 = vmul.f32 %v3845, 0.5
        %v4030 = vmul.f32 %v3956, 0.5
        %v4031 = vmul.f32 %v3958, 0.5
        %v4032 = vmul.f32 %v3849, 0.5
        %v4033 = vmul.f32 %v3851, 0.5
        %v4034 = vmul.f32 %v3962, 0.5
        %v4035 = vmul.f32 %v3964, 0.5
        %v4036 = vmul.f32 %v3853, 0.5
        %v4037 = vmul.f32 %v3855, 0.5
        %v4038 = vmul.f32 %v3966, 0.5
        %v4039 = vmul.f32 %v3968, 0.5
        %v4040 = vmul.f32 %v3859, 0.5
        %v4041 = vmul.f32 %v3861, 0.5
        %v4042 = vmul.f32 %v3972, 0.5
        %v4043 = vmul.f32 %v3974, 0.5
        %v4044 = vmul.f32 %v3863, 0.5
        %v4045 = vmul.f32 %v3865, 0.5
        %v4046 = vmul.f32 %v3976, 0.5
        %v4047 = vmul.f32 %v3978, 0.5
        %v4048 = vmul.f32 %v3869, 0.5
        %v4049 = vmul.f32 %v3871, 0.5
        %v4050 = vmul.f32 %v3982, 0.5
        %v4051 = vmul.f32 %v3984, 0.5
        %v4052 = vmul.f32 %v3873, 0.5
        %v4053 = vmul.f32 %v3875, 0.5
        %v4054 = vmul.f32 %v3986, 0.5
        %v4055 = vmul.f32 %v3988, 0.5
        %v4056 = vmul.f32 %v3879, 0.5
        %v4057 = vmul.f32 %v3881, 0.5
        %v4058 = vmul.f32 %v3992, 0.5
        %v4059 = vmul.f32 %v3994, 0.5
        %v4060 = vmul.f32 %v3883, 0.5
        %v4061 = vmul.f32 %v3885, 0.5
        %v4062 = vmul.f32 %v3996, 0.5
        %v4063 = vmul.f32 %v3998, 0.5
        %v4064 = vmul.f32 %v3809, 0.044715
        %v4065 = vmul.f32 %v3811, 0.044715
        %v4066 = vmul.f32 %v3922, 0.044715
        %v4067 = vmul.f32 %v3924, 0.044715
        %v4068 = vmul.f32 %v3813, 0.044715
        %v4069 = vmul.f32 %v3815, 0.044715
        %v4070 = vmul.f32 %v3926, 0.044715
        %v4071 = vmul.f32 %v3928, 0.044715
        %v4072 = vmul.f32 %v3819, 0.044715
        %v4073 = vmul.f32 %v3821, 0.044715
        %v4074 = vmul.f32 %v3932, 0.044715
        %v4075 = vmul.f32 %v3934, 0.044715
        %v4076 = vmul.f32 %v3823, 0.044715
        %v4077 = vmul.f32 %v3825, 0.044715
        %v4078 = vmul.f32 %v3936, 0.044715
        %v4079 = vmul.f32 %v3938, 0.044715
        %v4080 = vmul.f32 %v3829, 0.044715
        %v4081 = vmul.f32 %v3831, 0.044715
        %v4082 = vmul.f32 %v3942, 0.044715
        %v4083 = vmul.f32 %v3944, 0.044715
        %v4084 = vmul.f32 %v3833, 0.044715
        %v4085 = vmul.f32 %v3835, 0.044715
        %v4086 = vmul.f32 %v3946, 0.044715
        %v4087 = vmul.f32 %v3948, 0.044715
        %v4088 = vmul.f32 %v3839, 0.044715
        %v4089 = vmul.f32 %v3841, 0.044715
        %v4090 = vmul.f32 %v3952, 0.044715
        %v4091 = vmul.f32 %v3954, 0.044715
        %v4092 = vmul.f32 %v3843, 0.044715
        %v4093 = vmul.f32 %v3845, 0.044715
        %v4094 = vmul.f32 %v3956, 0.044715
        %v4095 = vmul.f32 %v3958, 0.044715
        %v4096 = vmul.f32 %v3849, 0.044715
        %v4097 = vmul.f32 %v3851, 0.044715
        %v4098 = vmul.f32 %v3962, 0.044715
        %v4099 = vmul.f32 %v3964, 0.044715
        %v4100 = vmul.f32 %v3853, 0.044715
        %v4101 = vmul.f32 %v3855, 0.044715
        %v4102 = vmul.f32 %v3966, 0.044715
        %v4103 = vmul.f32 %v3968, 0.044715
        %v4104 = vmul.f32 %v3859, 0.044715
        %v4105 = vmul.f32 %v3861, 0.044715
        %v4106 = vmul.f32 %v3972, 0.044715
        %v4107 = vmul.f32 %v3974, 0.044715
        %v4108 = vmul.f32 %v3863, 0.044715
        %v4109 = vmul.f32 %v3865, 0.044715
        %v4110 = vmul.f32 %v3976, 0.044715
        %v4111 = vmul.f32 %v3978, 0.044715
        %v4112 = vmul.f32 %v3869, 0.044715
        %v4113 = vmul.f32 %v3871, 0.044715
        %v4114 = vmul.f32 %v3982, 0.044715
        %v4115 = vmul.f32 %v3984, 0.044715
        %v4116 = vmul.f32 %v3873, 0.044715
        %v4117 = vmul.f32 %v3875, 0.044715
        %v4118 = vmul.f32 %v3986, 0.044715
        %v4119 = vmul.f32 %v3988, 0.044715
        %v4120 = vmul.f32 %v3879, 0.044715
        %v4121 = vmul.f32 %v3881, 0.044715
        %v4122 = vmul.f32 %v3992, 0.044715
        %v4123 = vmul.f32 %v3994, 0.044715
        %v4124 = vmul.f32 %v3883, 0.044715
        %v4125 = vmul.f32 %v3885, 0.044715
        %v4126 = vmul.f32 %v3996, 0.044715
        %v4127 = vmul.f32 %v3998, 0.044715
        %v4128 = vmul.f32 %v4064, %v3809
        %v4129 = vmul.f32 %v4065, %v3811
        %v4130 = vmul.f32 %v4066, %v3922
        %v4131 = vmul.f32 %v4067, %v3924
        %v4132 = vmul.f32 %v4068, %v3813
        %v4133 = vmul.f32 %v4069, %v3815
        %v4134 = vmul.f32 %v4070, %v3926
        %v4135 = vmul.f32 %v4071, %v3928
        %v4136 = vmul.f32 %v4072, %v3819
        %v4137 = vmul.f32 %v4073, %v3821
        %v4138 = vmul.f32 %v4074, %v3932
        %v4139 = vmul.f32 %v4075, %v3934
        %v4140 = vmul.f32 %v4076, %v3823
        %v4141 = vmul.f32 %v4077, %v3825
        %v4142 = vmul.f32 %v4078, %v3936
        %v4143 = vmul.f32 %v4079, %v3938
        %v4144 = vmul.f32 %v4080, %v3829
        %v4145 = vmul.f32 %v4081, %v3831
        %v4146 = vmul.f32 %v4082, %v3942
        %v4147 = vmul.f32 %v4083, %v3944
        %v4148 = vmul.f32 %v4084, %v3833
        %v4149 = vmul.f32 %v4085, %v3835
        %v4150 = vmul.f32 %v4086, %v3946
        %v4151 = vmul.f32 %v4087, %v3948
        %v4152 = vmul.f32 %v4088, %v3839
        %v4153 = vmul.f32 %v4089, %v3841
        %v4154 = vmul.f32 %v4090, %v3952
        %v4155 = vmul.f32 %v4091, %v3954
        %v4156 = vmul.f32 %v4092, %v3843
        %v4157 = vmul.f32 %v4093, %v3845
        %v4158 = vmul.f32 %v4094, %v3956
        %v4159 = vmul.f32 %v4095, %v3958
        %v4160 = vmul.f32 %v4096, %v3849
        %v4161 = vmul.f32 %v4097, %v3851
        %v4162 = vmul.f32 %v4098, %v3962
        %v4163 = vmul.f32 %v4099, %v3964
        %v4164 = vmul.f32 %v4100, %v3853
        %v4165 = vmul.f32 %v4101, %v3855
        %v4166 = vmul.f32 %v4102, %v3966
        %v4167 = vmul.f32 %v4103, %v3968
        %v4168 = vmul.f32 %v4104, %v3859
        %v4169 = vmul.f32 %v4105, %v3861
        %v4170 = vmul.f32 %v4106, %v3972
        %v4171 = vmul.f32 %v4107, %v3974
        %v4172 = vmul.f32 %v4108, %v3863
        %v4173 = vmul.f32 %v4109, %v3865
        %v4174 = vmul.f32 %v4110, %v3976
        %v4175 = vmul.f32 %v4111, %v3978
        %v4176 = vmul.f32 %v4112, %v3869
        %v4177 = vmul.f32 %v4113, %v3871
        %v4178 = vmul.f32 %v4114, %v3982
        %v4179 = vmul.f32 %v4115, %v3984
        %v4180 = vmul.f32 %v4116, %v3873
        %v4181 = vmul.f32 %v4117, %v3875
        %v4182 = vmul.f32 %v4118, %v3986
        %v4183 = vmul.f32 %v4119, %v3988
        %v4184 = vmul.f32 %v4120, %v3879
        %v4185 = vmul.f32 %v4121, %v3881
        %v4186 = vmul.f32 %v4122, %v3992
        %v4187 = vmul.f32 %v4123, %v3994
        %v4188 = vmul.f32 %v4124, %v3883
        %v4189 = vmul.f32 %v4125, %v3885
        %v4190 = vmul.f32 %v4126, %v3996
        %v4191 = vmul.f32 %v4127, %v3998
        %v4192 = vmul.f32 %v4128, %v3809
        %v4193 = vmul.f32 %v4129, %v3811
        %v4194 = vmul.f32 %v4130, %v3922
        %v4195 = vmul.f32 %v4131, %v3924
        %v4196 = vmul.f32 %v4132, %v3813
        %v4197 = vmul.f32 %v4133, %v3815
        %v4198 = vmul.f32 %v4134, %v3926
        %v4199 = vmul.f32 %v4135, %v3928
        %v4200 = vmul.f32 %v4136, %v3819
        %v4201 = vmul.f32 %v4137, %v3821
        %v4202 = vmul.f32 %v4138, %v3932
        %v4203 = vmul.f32 %v4139, %v3934
        %v4204 = vmul.f32 %v4140, %v3823
        %v4205 = vmul.f32 %v4141, %v3825
        %v4206 = vmul.f32 %v4142, %v3936
        %v4207 = vmul.f32 %v4143, %v3938
        %v4208 = vmul.f32 %v4144, %v3829
        %v4209 = vmul.f32 %v4145, %v3831
        %v4210 = vmul.f32 %v4146, %v3942
        %v4211 = vmul.f32 %v4147, %v3944
        %v4212 = vmul.f32 %v4148, %v3833
        %v4213 = vmul.f32 %v4149, %v3835
        %v4214 = vmul.f32 %v4150, %v3946
        %v4215 = vmul.f32 %v4151, %v3948
        %v4216 = vmul.f32 %v4152, %v3839
        %v4217 = vmul.f32 %v4153, %v3841
        %v4218 = vmul.f32 %v4154, %v3952
        %v4219 = vmul.f32 %v4155, %v3954
        %v4220 = vmul.f32 %v4156, %v3843
        %v4221 = vmul.f32 %v4157, %v3845
        %v4222 = vmul.f32 %v4158, %v3956
        %v4223 = vmul.f32 %v4159, %v3958
        %v4224 = vmul.f32 %v4160, %v3849
        %v4225 = vmul.f32 %v4161, %v3851
        %v4226 = vmul.f32 %v4162, %v3962
        %v4227 = vmul.f32 %v4163, %v3964
        %v4228 = vmul.f32 %v4164, %v3853
        %v4229 = vmul.f32 %v4165, %v3855
        %v4230 = vmul.f32 %v4166, %v3966
        %v4231 = vmul.f32 %v4167, %v3968
        %v4232 = vmul.f32 %v4168, %v3859
        %v4233 = vmul.f32 %v4169, %v3861
        %v4234 = vmul.f32 %v4170, %v3972
        %v4235 = vmul.f32 %v4171, %v3974
        %v4236 = vmul.f32 %v4172, %v3863
        %v4237 = vmul.f32 %v4173, %v3865
        %v4238 = vmul.f32 %v4174, %v3976
        %v4239 = vmul.f32 %v4175, %v3978
        %v4240 = vmul.f32 %v4176, %v3869
        %v4241 = vmul.f32 %v4177, %v3871
        %v4242 = vmul.f32 %v4178, %v3982
        %v4243 = vmul.f32 %v4179, %v3984
        %v4244 = vmul.f32 %v4180, %v3873
        %v4245 = vmul.f32 %v4181, %v3875
        %v4246 = vmul.f32 %v4182, %v3986
        %v4247 = vmul.f32 %v4183, %v3988
        %v4248 = vmul.f32 %v4184, %v3879
        %v4249 = vmul.f32 %v4185, %v3881
        %v4250 = vmul.f32 %v4186, %v3992
        %v4251 = vmul.f32 %v4187, %v3994
        %v4252 = vmul.f32 %v4188, %v3883
        %v4253 = vmul.f32 %v4189, %v3885
        %v4254 = vmul.f32 %v4190, %v3996
        %v4255 = vmul.f32 %v4191, %v3998
        %v4256 = vadd.f32 %v3809, %v4192
        %v4257 = vadd.f32 %v3811, %v4193
        %v4258 = vadd.f32 %v3922, %v4194
        %v4259 = vadd.f32 %v3924, %v4195
        %v4260 = vadd.f32 %v3813, %v4196
        %v4261 = vadd.f32 %v3815, %v4197
        %v4262 = vadd.f32 %v3926, %v4198
        %v4263 = vadd.f32 %v3928, %v4199
        %v4264 = vadd.f32 %v3819, %v4200
        %v4265 = vadd.f32 %v3821, %v4201
        %v4266 = vadd.f32 %v3932, %v4202
        %v4267 = vadd.f32 %v3934, %v4203
        %v4268 = vadd.f32 %v3823, %v4204
        %v4269 = vadd.f32 %v3825, %v4205
        %v4270 = vadd.f32 %v3936, %v4206
        %v4271 = vadd.f32 %v3938, %v4207
        %v4272 = vadd.f32 %v3829, %v4208
        %v4273 = vadd.f32 %v3831, %v4209
        %v4274 = vadd.f32 %v3942, %v4210
        %v4275 = vadd.f32 %v3944, %v4211
        %v4276 = vadd.f32 %v3833, %v4212
        %v4277 = vadd.f32 %v3835, %v4213
        %v4278 = vadd.f32 %v3946, %v4214
        %v4279 = vadd.f32 %v3948, %v4215
        %v4280 = vadd.f32 %v3839, %v4216
        %v4281 = vadd.f32 %v3841, %v4217
        %v4282 = vadd.f32 %v3952, %v4218
        %v4283 = vadd.f32 %v3954, %v4219
        %v4284 = vadd.f32 %v3843, %v4220
        %v4285 = vadd.f32 %v3845, %v4221
        %v4286 = vadd.f32 %v3956, %v4222
        %v4287 = vadd.f32 %v3958, %v4223
        %v4288 = vadd.f32 %v3849, %v4224
        %v4289 = vadd.f32 %v3851, %v4225
        %v4290 = vadd.f32 %v3962, %v4226
        %v4291 = vadd.f32 %v3964, %v4227
        %v4292 = vadd.f32 %v3853, %v4228
        %v4293 = vadd.f32 %v3855, %v4229
        %v4294 = vadd.f32 %v3966, %v4230
        %v4295 = vadd.f32 %v3968, %v4231
        %v4296 = vadd.f32 %v3859, %v4232
        %v4297 = vadd.f32 %v3861, %v4233
        %v4298 = vadd.f32 %v3972, %v4234
        %v4299 = vadd.f32 %v3974, %v4235
        %v4300 = vadd.f32 %v3863, %v4236
        %v4301 = vadd.f32 %v3865, %v4237
        %v4302 = vadd.f32 %v3976, %v4238
        %v4303 = vadd.f32 %v3978, %v4239
        %v4304 = vadd.f32 %v3869, %v4240
        %v4305 = vadd.f32 %v3871, %v4241
        %v4306 = vadd.f32 %v3982, %v4242
        %v4307 = vadd.f32 %v3984, %v4243
        %v4308 = vadd.f32 %v3873, %v4244
        %v4309 = vadd.f32 %v3875, %v4245
        %v4310 = vadd.f32 %v3986, %v4246
        %v4311 = vadd.f32 %v3988, %v4247
        %v4312 = vadd.f32 %v3879, %v4248
        %v4313 = vadd.f32 %v3881, %v4249
        %v4314 = vadd.f32 %v3992, %v4250
        %v4315 = vadd.f32 %v3994, %v4251
        %v4316 = vadd.f32 %v3883, %v4252
        %v4317 = vadd.f32 %v3885, %v4253
        %v4318 = vadd.f32 %v3996, %v4254
        %v4319 = vadd.f32 %v3998, %v4255
        %v4320 = vmul.f32 %v4256, 0.7978846
        %v4321 = vmul.f32 %v4257, 0.7978846
        %v4322 = vmul.f32 %v4258, 0.7978846
        %v4323 = vmul.f32 %v4259, 0.7978846
        %v4324 = vmul.f32 %v4260, 0.7978846
        %v4325 = vmul.f32 %v4261, 0.7978846
        %v4326 = vmul.f32 %v4262, 0.7978846
        %v4327 = vmul.f32 %v4263, 0.7978846
        %v4328 = vmul.f32 %v4264, 0.7978846
        %v4329 = vmul.f32 %v4265, 0.7978846
        %v4330 = vmul.f32 %v4266, 0.7978846
        %v4331 = vmul.f32 %v4267, 0.7978846
        %v4332 = vmul.f32 %v4268, 0.7978846
        %v4333 = vmul.f32 %v4269, 0.7978846
        %v4334 = vmul.f32 %v4270, 0.7978846
        %v4335 = vmul.f32 %v4271, 0.7978846
        %v4336 = vmul.f32 %v4272, 0.7978846
        %v4337 = vmul.f32 %v4273, 0.7978846
        %v4338 = vmul.f32 %v4274, 0.7978846
        %v4339 = vmul.f32 %v4275, 0.7978846
        %v4340 = vmul.f32 %v4276, 0.7978846
        %v4341 = vmul.f32 %v4277, 0.7978846
        %v4342 = vmul.f32 %v4278, 0.7978846
        %v4343 = vmul.f32 %v4279, 0.7978846
        %v4344 = vmul.f32 %v4280, 0.7978846
        %v4345 = vmul.f32 %v4281, 0.7978846
        %v4346 = vmul.f32 %v4282, 0.7978846
        %v4347 = vmul.f32 %v4283, 0.7978846
        %v4348 = vmul.f32 %v4284, 0.7978846
        %v4349 = vmul.f32 %v4285, 0.7978846
        %v4350 = vmul.f32 %v4286, 0.7978846
        %v4351 = vmul.f32 %v4287, 0.7978846
        %v4352 = vmul.f32 %v4288, 0.7978846
        %v4353 = vmul.f32 %v4289, 0.7978846
        %v4354 = vmul.f32 %v4290, 0.7978846
        %v4355 = vmul.f32 %v4291, 0.7978846
        %v4356 = vmul.f32 %v4292, 0.7978846
        %v4357 = vmul.f32 %v4293, 0.7978846
        %v4358 = vmul.f32 %v4294, 0.7978846
        %v4359 = vmul.f32 %v4295, 0.7978846
        %v4360 = vmul.f32 %v4296, 0.7978846
        %v4361 = vmul.f32 %v4297, 0.7978846
        %v4362 = vmul.f32 %v4298, 0.7978846
        %v4363 = vmul.f32 %v4299, 0.7978846
        %v4364 = vmul.f32 %v4300, 0.7978846
        %v4365 = vmul.f32 %v4301, 0.7978846
        %v4366 = vmul.f32 %v4302, 0.7978846
        %v4367 = vmul.f32 %v4303, 0.7978846
        %v4368 = vmul.f32 %v4304, 0.7978846
        %v4369 = vmul.f32 %v4305, 0.7978846
        %v4370 = vmul.f32 %v4306, 0.7978846
        %v4371 = vmul.f32 %v4307, 0.7978846
        %v4372 = vmul.f32 %v4308, 0.7978846
        %v4373 = vmul.f32 %v4309, 0.7978846
        %v4374 = vmul.f32 %v4310, 0.7978846
        %v4375 = vmul.f32 %v4311, 0.7978846
        %v4376 = vmul.f32 %v4312, 0.7978846
        %v4377 = vmul.f32 %v4313, 0.7978846
        %v4378 = vmul.f32 %v4314, 0.7978846
        %v4379 = vmul.f32 %v4315, 0.7978846
        %v4380 = vmul.f32 %v4316, 0.7978846
        %v4381 = vmul.f32 %v4317, 0.7978846
        %v4382 = vmul.f32 %v4318, 0.7978846
        %v4383 = vmul.f32 %v4319, 0.7978846
        %v4384 = vtanh.pop %v4320
        %v4385 = vtanh.pop %v4321
        %v4386 = vtanh.pop %v4322
        %v4387 = vtanh.pop %v4323
        %v4388 = vtanh.pop %v4324
        %v4389 = vtanh.pop %v4325
        %v4390 = vtanh.pop %v4326
        %v4391 = vtanh.pop %v4327
        %v4392 = vtanh.pop %v4328
        %v4393 = vtanh.pop %v4329
        %v4394 = vtanh.pop %v4330
        %v4395 = vtanh.pop %v4331
        %v4396 = vtanh.pop %v4332
        %v4397 = vtanh.pop %v4333
        %v4398 = vtanh.pop %v4334
        %v4399 = vtanh.pop %v4335
        %v4400 = vtanh.pop %v4336
        %v4401 = vtanh.pop %v4337
        %v4402 = vtanh.pop %v4338
        %v4403 = vtanh.pop %v4339
        %v4404 = vtanh.pop %v4340
        %v4405 = vtanh.pop %v4341
        %v4406 = vtanh.pop %v4342
        %v4407 = vtanh.pop %v4343
        %v4408 = vtanh.pop %v4344
        %v4409 = vtanh.pop %v4345
        %v4410 = vtanh.pop %v4346
        %v4411 = vtanh.pop %v4347
        %v4412 = vtanh.pop %v4348
        %v4413 = vtanh.pop %v4349
        %v4414 = vtanh.pop %v4350
        %v4415 = vtanh.pop %v4351
        %v4416 = vtanh.pop %v4352
        %v4417 = vtanh.pop %v4353
        %v4418 = vtanh.pop %v4354
        %v4419 = vtanh.pop %v4355
        %v4420 = vtanh.pop %v4356
        %v4421 = vtanh.pop %v4357
        %v4422 = vtanh.pop %v4358
        %v4423 = vtanh.pop %v4359
        %v4424 = vtanh.pop %v4360
        %v4425 = vtanh.pop %v4361
        %v4426 = vtanh.pop %v4362
        %v4427 = vtanh.pop %v4363
        %v4428 = vtanh.pop %v4364
        %v4429 = vtanh.pop %v4365
        %v4430 = vtanh.pop %v4366
        %v4431 = vtanh.pop %v4367
        %v4432 = vtanh.pop %v4368
        %v4433 = vtanh.pop %v4369
        %v4434 = vtanh.pop %v4370
        %v4435 = vtanh.pop %v4371
        %v4436 = vtanh.pop %v4372
        %v4437 = vtanh.pop %v4373
        %v4438 = vtanh.pop %v4374
        %v4439 = vtanh.pop %v4375
        %v4440 = vtanh.pop %v4376
        %v4441 = vtanh.pop %v4377
        %v4442 = vtanh.pop %v4378
        %v4443 = vtanh.pop %v4379
        %v4444 = vtanh.pop %v4380
        %v4445 = vtanh.pop %v4381
        %v4446 = vtanh.pop %v4382
        %v4447 = vtanh.pop %v4383
        %v4448 = vadd.f32 %v4384, 1.0
        %v4449 = vadd.f32 %v4385, 1.0
        %v4450 = vadd.f32 %v4386, 1.0
        %v4451 = vadd.f32 %v4387, 1.0
        %v4452 = vadd.f32 %v4388, 1.0
        %v4453 = vadd.f32 %v4389, 1.0
        %v4454 = vadd.f32 %v4390, 1.0
        %v4455 = vadd.f32 %v4391, 1.0
        %v4456 = vadd.f32 %v4392, 1.0
        %v4457 = vadd.f32 %v4393, 1.0
        %v4458 = vadd.f32 %v4394, 1.0
        %v4459 = vadd.f32 %v4395, 1.0
        %v4460 = vadd.f32 %v4396, 1.0
        %v4461 = vadd.f32 %v4397, 1.0
        %v4462 = vadd.f32 %v4398, 1.0
        %v4463 = vadd.f32 %v4399, 1.0
        %v4464 = vadd.f32 %v4400, 1.0
        %v4465 = vadd.f32 %v4401, 1.0
        %v4466 = vadd.f32 %v4402, 1.0
        %v4467 = vadd.f32 %v4403, 1.0
        %v4468 = vadd.f32 %v4404, 1.0
        %v4469 = vadd.f32 %v4405, 1.0
        %v4470 = vadd.f32 %v4406, 1.0
        %v4471 = vadd.f32 %v4407, 1.0
        %v4472 = vadd.f32 %v4408, 1.0
        %v4473 = vadd.f32 %v4409, 1.0
        %v4474 = vadd.f32 %v4410, 1.0
        %v4475 = vadd.f32 %v4411, 1.0
        %v4476 = vadd.f32 %v4412, 1.0
        %v4477 = vadd.f32 %v4413, 1.0
        %v4478 = vadd.f32 %v4414, 1.0
        %v4479 = vadd.f32 %v4415, 1.0
        %v4480 = vadd.f32 %v4416, 1.0
        %v4481 = vadd.f32 %v4417, 1.0
        %v4482 = vadd.f32 %v4418, 1.0
        %v4483 = vadd.f32 %v4419, 1.0
        %v4484 = vadd.f32 %v4420, 1.0
        %v4485 = vadd.f32 %v4421, 1.0
        %v4486 = vadd.f32 %v4422, 1.0
        %v4487 = vadd.f32 %v4423, 1.0
        %v4488 = vadd.f32 %v4424, 1.0
        %v4489 = vadd.f32 %v4425, 1.0
        %v4490 = vadd.f32 %v4426, 1.0
        %v4491 = vadd.f32 %v4427, 1.0
        %v4492 = vadd.f32 %v4428, 1.0
        %v4493 = vadd.f32 %v4429, 1.0
        %v4494 = vadd.f32 %v4430, 1.0
        %v4495 = vadd.f32 %v4431, 1.0
        %v4496 = vadd.f32 %v4432, 1.0
        %v4497 = vadd.f32 %v4433, 1.0
        %v4498 = vadd.f32 %v4434, 1.0
        %v4499 = vadd.f32 %v4435, 1.0
        %v4500 = vadd.f32 %v4436, 1.0
        %v4501 = vadd.f32 %v4437, 1.0
        %v4502 = vadd.f32 %v4438, 1.0
        %v4503 = vadd.f32 %v4439, 1.0
        %v4504 = vadd.f32 %v4440, 1.0
        %v4505 = vadd.f32 %v4441, 1.0
        %v4506 = vadd.f32 %v4442, 1.0
        %v4507 = vadd.f32 %v4443, 1.0
        %v4508 = vadd.f32 %v4444, 1.0
        %v4509 = vadd.f32 %v4445, 1.0
        %v4510 = vadd.f32 %v4446, 1.0
        %v4511 = vadd.f32 %v4447, 1.0
        %v4512 = vmul.f32 %v4000, %v4448
        %v4513 = vmul.f32 %v4001, %v4449
        %v4514 = vmul.f32 %v4002, %v4450
        %v4515 = vmul.f32 %v4003, %v4451
        %v4516 = vmul.f32 %v4004, %v4452
        %v4517 = vmul.f32 %v4005, %v4453
        %v4518 = vmul.f32 %v4006, %v4454
        %v4519 = vmul.f32 %v4007, %v4455
        %v4520 = vmul.f32 %v4008, %v4456
        %v4521 = vmul.f32 %v4009, %v4457
        %v4522 = vmul.f32 %v4010, %v4458
        %v4523 = vmul.f32 %v4011, %v4459
        %v4524 = vmul.f32 %v4012, %v4460
        %v4525 = vmul.f32 %v4013, %v4461
        %v4526 = vmul.f32 %v4014, %v4462
        %v4527 = vmul.f32 %v4015, %v4463
        %v4528 = vmul.f32 %v4016, %v4464
        %v4529 = vmul.f32 %v4017, %v4465
        %v4530 = vmul.f32 %v4018, %v4466
        %v4531 = vmul.f32 %v4019, %v4467
        %v4532 = vmul.f32 %v4020, %v4468
        %v4533 = vmul.f32 %v4021, %v4469
        %v4534 = vmul.f32 %v4022, %v4470
        %v4535 = vmul.f32 %v4023, %v4471
        %v4536 = vmul.f32 %v4024, %v4472
        %v4537 = vmul.f32 %v4025, %v4473
        %v4538 = vmul.f32 %v4026, %v4474
        %v4539 = vmul.f32 %v4027, %v4475
        %v4540 = vmul.f32 %v4028, %v4476
        %v4541 = vmul.f32 %v4029, %v4477
        %v4542 = vmul.f32 %v4030, %v4478
        %v4543 = vmul.f32 %v4031, %v4479
        %v4544 = vmul.f32 %v4032, %v4480
        %v4545 = vmul.f32 %v4033, %v4481
        %v4546 = vmul.f32 %v4034, %v4482
        %v4547 = vmul.f32 %v4035, %v4483
        %v4548 = vmul.f32 %v4036, %v4484
        %v4549 = vmul.f32 %v4037, %v4485
        %v4550 = vmul.f32 %v4038, %v4486
        %v4551 = vmul.f32 %v4039, %v4487
        %v4552 = vmul.f32 %v4040, %v4488
        %v4553 = vmul.f32 %v4041, %v4489
        %v4554 = vmul.f32 %v4042, %v4490
        %v4555 = vmul.f32 %v4043, %v4491
        %v4556 = vmul.f32 %v4044, %v4492
        %v4557 = vmul.f32 %v4045, %v4493
        %v4558 = vmul.f32 %v4046, %v4494
        %v4559 = vmul.f32 %v4047, %v4495
        %v4560 = vmul.f32 %v4048, %v4496
        %v4561 = vmul.f32 %v4049, %v4497
        %v4562 = vmul.f32 %v4050, %v4498
        %v4563 = vmul.f32 %v4051, %v4499
        %v4564 = vmul.f32 %v4052, %v4500
        %v4565 = vmul.f32 %v4053, %v4501
        %v4566 = vmul.f32 %v4054, %v4502
        %v4567 = vmul.f32 %v4055, %v4503
        %v4568 = vmul.f32 %v4056, %v4504
        %v4569 = vmul.f32 %v4057, %v4505
        %v4570 = vmul.f32 %v4058, %v4506
        %v4571 = vmul.f32 %v4059, %v4507
        %v4572 = vmul.f32 %v4060, %v4508
        %v4573 = vmul.f32 %v4061, %v4509
        %v4574 = vmul.f32 %v4062, %v4510
        %v4575 = vmul.f32 %v4063, %v4511
        %v4576 = vpack.c.bf16 %v4516, %v4512
        %v4577 = vpack.c.bf16 %v4517, %v4513
        %v4578 = vpack.c.bf16 %v4518, %v4514
        %v4579 = vpack.c.bf16 %v4519, %v4515
        %v4580 = vpack.c.bf16 %v4524, %v4520
        %v4581 = vpack.c.bf16 %v4525, %v4521
        %v4582 = vpack.c.bf16 %v4526, %v4522
        %v4583 = vpack.c.bf16 %v4527, %v4523
        %v4584 = vpack.c.bf16 %v4532, %v4528
        %v4585 = vpack.c.bf16 %v4533, %v4529
        %v4586 = vpack.c.bf16 %v4534, %v4530
        %v4587 = vpack.c.bf16 %v4535, %v4531
        %v4588 = vpack.c.bf16 %v4540, %v4536
        %v4589 = vpack.c.bf16 %v4541, %v4537
        %v4590 = vpack.c.bf16 %v4542, %v4538
        %v4591 = vpack.c.bf16 %v4543, %v4539
        %v4592 = vpack.c.bf16 %v4548, %v4544
        %v4593 = vpack.c.bf16 %v4549, %v4545
        %v4594 = vpack.c.bf16 %v4550, %v4546
        %v4595 = vpack.c.bf16 %v4551, %v4547
        %v4596 = vpack.c.bf16 %v4556, %v4552
        %v4597 = vpack.c.bf16 %v4557, %v4553
        %v4598 = vpack.c.bf16 %v4558, %v4554
        %v4599 = vpack.c.bf16 %v4559, %v4555
        %v4600 = vpack.c.bf16 %v4564, %v4560
        %v4601 = vpack.c.bf16 %v4565, %v4561
        %v4602 = vpack.c.bf16 %v4566, %v4562
        %v4603 = vpack.c.bf16 %v4567, %v4563
        %v4604 = vpack.c.bf16 %v4572, %v4568
        %v4605 = vpack.c.bf16 %v4573, %v4569
        %v4606 = vpack.c.bf16 %v4574, %v4570
        %v4607 = vpack.c.bf16 %v4575, %v4571
        %v4608 = vld [vmem:[#allocation13] sm:$0xf]
        %v4609 = vld [vmem:[#allocation13 + $0x4] sm:$0xf]
        %v4610 = vld [vmem:[#allocation13 + $0x8] sm:$0xf]
        %v4611 = vld [vmem:[#allocation13 + $0xc] sm:$0xf]
        %v4612 = vld [vmem:[#allocation13 + $0x10] sm:$0xf]
        %v4613 = vld [vmem:[#allocation13 + $0x14] sm:$0xf]
        %v4614 = vld [vmem:[#allocation13 + $0x18] sm:$0xf]
        %v4615 = vld [vmem:[#allocation13 + $0x1c] sm:$0xf]
        %v4616 = vld [vmem:[#allocation13 + $0x20] sm:$0xf]
        %v4617 = vld [vmem:[#allocation13 + $0x24] sm:$0xf]
        %v4618 = vld [vmem:[#allocation13 + $0x28] sm:$0xf]
        %v4619 = vld [vmem:[#allocation13 + $0x2c] sm:$0xf]
        %v4620 = vld [vmem:[#allocation13 + $0x30] sm:$0xf]
        %v4621 = vld [vmem:[#allocation13 + $0x34] sm:$0xf]
        %v4622 = vld [vmem:[#allocation13 + $0x38] sm:$0xf]
        %v4623 = vld [vmem:[#allocation13 + $0x3c] sm:$0xf]
        %v4624 = vld [vmem:[#allocation13 + $0x40] sm:$0xf]
        %v4625 = vld [vmem:[#allocation13 + $0x44] sm:$0xf]
        %v4626 = vld [vmem:[#allocation13 + $0x48] sm:$0xf]
        %v4627 = vld [vmem:[#allocation13 + $0x4c] sm:$0xf]
        %v4628 = vld [vmem:[#allocation13 + $0x50] sm:$0xf]
        %v4629 = vld [vmem:[#allocation13 + $0x54] sm:$0xf]
        %v4630 = vld [vmem:[#allocation13 + $0x58] sm:$0xf]
        %v4631 = vld [vmem:[#allocation13 + $0x5c] sm:$0xf]
        %v4632 = vld [vmem:[#allocation13 + $0x60] sm:$0xf]
        %v4633 = vld [vmem:[#allocation13 + $0x64] sm:$0xf]
        %v4634 = vld [vmem:[#allocation13 + $0x68] sm:$0xf]
        %v4635 = vld [vmem:[#allocation13 + $0x6c] sm:$0xf]
        %v4636 = vld [vmem:[#allocation13 + $0x70] sm:$0xf]
        %v4637 = vld [vmem:[#allocation13 + $0x74] sm:$0xf]
        %v4638 = vld [vmem:[#allocation13 + $0x78] sm:$0xf]
        %v4639 = vld [vmem:[#allocation13 + $0x7c] sm:$0xf]
        %v4640 = vld [vmem:[#allocation13 + $0x80] sm:$0xf]
        %v4641 = vld [vmem:[#allocation13 + $0x84] sm:$0xf]
        %v4642 = vld [vmem:[#allocation13 + $0x88] sm:$0xf]
        %v4643 = vld [vmem:[#allocation13 + $0x8c] sm:$0xf]
        %v4644 = vld [vmem:[#allocation13 + $0x90] sm:$0xf]
        %v4645 = vld [vmem:[#allocation13 + $0x94] sm:$0xf]
        %v4646 = vld [vmem:[#allocation13 + $0x98] sm:$0xf]
        %v4647 = vld [vmem:[#allocation13 + $0x9c] sm:$0xf]
        %v4648 = vld [vmem:[#allocation13 + $0xa0] sm:$0xf]
        %v4649 = vld [vmem:[#allocation13 + $0xa4] sm:$0xf]
        %v4650 = vld [vmem:[#allocation13 + $0xa8] sm:$0xf]
        %v4651 = vld [vmem:[#allocation13 + $0xac] sm:$0xf]
        %v4652 = vld [vmem:[#allocation13 + $0xb0] sm:$0xf]
        %v4653 = vld [vmem:[#allocation13 + $0xb4] sm:$0xf]
        %v4654 = vld [vmem:[#allocation13 + $0xb8] sm:$0xf]
        %v4655 = vld [vmem:[#allocation13 + $0xbc] sm:$0xf]
        %v4656 = vld [vmem:[#allocation13 + $0xc0] sm:$0xf]
        %v4657 = vld [vmem:[#allocation13 + $0xc4] sm:$0xf]
        %v4658 = vld [vmem:[#allocation13 + $0xc8] sm:$0xf]
        %v4659 = vld [vmem:[#allocation13 + $0xcc] sm:$0xf]
        %v4660 = vld [vmem:[#allocation13 + $0xd0] sm:$0xf]
        %v4661 = vld [vmem:[#allocation13 + $0xd4] sm:$0xf]
        %v4662 = vld [vmem:[#allocation13 + $0xd8] sm:$0xf]
        %v4663 = vld [vmem:[#allocation13 + $0xdc] sm:$0xf]
        %v4664 = vld [vmem:[#allocation13 + $0xe0] sm:$0xf]
        %v4665 = vld [vmem:[#allocation13 + $0xe4] sm:$0xf]
        %v4666 = vld [vmem:[#allocation13 + $0xe8] sm:$0xf]
        %v4667 = vld [vmem:[#allocation13 + $0xec] sm:$0xf]
        %v4668 = vld [vmem:[#allocation13 + $0xf0] sm:$0xf]
        %v4669 = vld [vmem:[#allocation13 + $0xf4] sm:$0xf]
        %v4670 = vld [vmem:[#allocation13 + $0xf8] sm:$0xf]
        %v4671 = vld [vmem:[#allocation13 + $0xfc] sm:$0xf]
        %v4672 = vld [vmem:[%s11] sm:$0x1]
        %v4674 = vlaneseq
        %v4675 = vshrl.u32 %v4674, 7
        %v4676 = vsub.s32 0, %v4675
        %v4677 = vrot.slane %v4672, %v4676
        %v4743 = vunpack.c.l.b16 %v4608
        %v4744 = vunpack.c.l.b16 %v4609
        %v4745 = vunpack.c.l.b16 %v4610
        %v4746 = vunpack.c.l.b16 %v4611
        %v4747 = vunpack.c.l.b16 %v4612
        %v4748 = vunpack.c.l.b16 %v4613
        %v4749 = vunpack.c.l.b16 %v4614
        %v4750 = vunpack.c.l.b16 %v4615
        %v4751 = vunpack.c.l.b16 %v4616
        %v4752 = vunpack.c.l.b16 %v4617
        %v4753 = vunpack.c.l.b16 %v4618
        %v4754 = vunpack.c.l.b16 %v4619
        %v4755 = vunpack.c.l.b16 %v4620
        %v4756 = vunpack.c.l.b16 %v4621
        %v4757 = vunpack.c.l.b16 %v4622
        %v4758 = vunpack.c.l.b16 %v4623
        %v4759 = vunpack.c.l.b16 %v4624
        %v4760 = vunpack.c.l.b16 %v4625
        %v4761 = vunpack.c.l.b16 %v4626
        %v4762 = vunpack.c.l.b16 %v4627
        %v4763 = vunpack.c.l.b16 %v4628
        %v4764 = vunpack.c.l.b16 %v4629
        %v4765 = vunpack.c.l.b16 %v4630
        %v4766 = vunpack.c.l.b16 %v4631
        %v4767 = vunpack.c.l.b16 %v4632
        %v4768 = vunpack.c.l.b16 %v4633
        %v4769 = vunpack.c.l.b16 %v4634
        %v4770 = vunpack.c.l.b16 %v4635
        %v4771 = vunpack.c.l.b16 %v4636
        %v4772 = vunpack.c.l.b16 %v4637
        %v4773 = vunpack.c.l.b16 %v4638
        %v4774 = vunpack.c.l.b16 %v4639
        %v4775 = vunpack.c.l.b16 %v4640
        %v4776 = vunpack.c.l.b16 %v4641
        %v4777 = vunpack.c.l.b16 %v4642
        %v4778 = vunpack.c.l.b16 %v4643
        %v4779 = vunpack.c.l.b16 %v4644
        %v4780 = vunpack.c.l.b16 %v4645
        %v4781 = vunpack.c.l.b16 %v4646
        %v4782 = vunpack.c.l.b16 %v4647
        %v4783 = vunpack.c.l.b16 %v4648
        %v4784 = vunpack.c.l.b16 %v4649
        %v4785 = vunpack.c.l.b16 %v4650
        %v4786 = vunpack.c.l.b16 %v4651
        %v4787 = vunpack.c.l.b16 %v4652
        %v4788 = vunpack.c.l.b16 %v4653
        %v4789 = vunpack.c.l.b16 %v4654
        %v4790 = vunpack.c.l.b16 %v4655
        %v4791 = vunpack.c.l.b16 %v4656
        %v4792 = vunpack.c.l.b16 %v4657
        %v4793 = vunpack.c.l.b16 %v4658
        %v4794 = vunpack.c.l.b16 %v4659
        %v4795 = vunpack.c.l.b16 %v4660
        %v4796 = vunpack.c.l.b16 %v4661
        %v4797 = vunpack.c.l.b16 %v4662
        %v4798 = vunpack.c.l.b16 %v4663
        %v4799 = vunpack.c.l.b16 %v4664
        %v4800 = vunpack.c.l.b16 %v4665
        %v4801 = vunpack.c.l.b16 %v4666
        %v4802 = vunpack.c.l.b16 %v4667
        %v4803 = vunpack.c.l.b16 %v4668
        %v4804 = vunpack.c.l.b16 %v4669
        %v4805 = vunpack.c.l.b16 %v4670
        %v4806 = vunpack.c.l.b16 %v4671
        %v4807 = vpack.c.b16 %v4744, %v4743
        %v4808 = vpack.c.b16 %v4746, %v4745
        %v4809 = vpack.c.b16 %v4748, %v4747
        %v4810 = vpack.c.b16 %v4750, %v4749
        %v4811 = vpack.c.b16 %v4752, %v4751
        %v4812 = vpack.c.b16 %v4754, %v4753
        %v4813 = vpack.c.b16 %v4756, %v4755
        %v4814 = vpack.c.b16 %v4758, %v4757
        %v4815 = vpack.c.b16 %v4760, %v4759
        %v4816 = vpack.c.b16 %v4762, %v4761
        %v4817 = vpack.c.b16 %v4764, %v4763
        %v4818 = vpack.c.b16 %v4766, %v4765
        %v4819 = vpack.c.b16 %v4768, %v4767
        %v4820 = vpack.c.b16 %v4770, %v4769
        %v4821 = vpack.c.b16 %v4772, %v4771
        %v4822 = vpack.c.b16 %v4774, %v4773
        %v4823 = vpack.c.b16 %v4776, %v4775
        %v4824 = vpack.c.b16 %v4778, %v4777
        %v4825 = vpack.c.b16 %v4780, %v4779
        %v4826 = vpack.c.b16 %v4782, %v4781
        %v4827 = vpack.c.b16 %v4784, %v4783
        %v4828 = vpack.c.b16 %v4786, %v4785
        %v4829 = vpack.c.b16 %v4788, %v4787
        %v4830 = vpack.c.b16 %v4790, %v4789
        %v4831 = vpack.c.b16 %v4792, %v4791
        %v4832 = vpack.c.b16 %v4794, %v4793
        %v4833 = vpack.c.b16 %v4796, %v4795
        %v4834 = vpack.c.b16 %v4798, %v4797
        %v4835 = vpack.c.b16 %v4800, %v4799
        %v4836 = vpack.c.b16 %v4802, %v4801
        %v4837 = vpack.c.b16 %v4804, %v4803
        %v4838 = vpack.c.b16 %v4806, %v4805
        %4871 = vmatprep.subr.bf16.mxu0 0
        %4872 = vmatpush1.bf16.msra.mxu0 %v4807
        %4873 = vmatprep.subr.bf16.mxu0 0
        %4874 = vmatpush1.bf16.msra.mxu0 %v4808
        %4875 = vmatprep.subr.bf16.mxu0 0
        %4876 = vmatpush1.bf16.msra.mxu0 %v4809
        %4877 = vmatprep.subr.bf16.mxu0 0
        %4878 = vmatpush1.bf16.msra.mxu0 %v4810
        %4879 = vmatprep.subr.bf16.mxu0 0
        %4880 = vmatpush1.bf16.msra.mxu0 %v4811
        %4881 = vmatprep.subr.bf16.mxu0 0
        %4882 = vmatpush1.bf16.msra.mxu0 %v4812
        %4883 = vmatprep.subr.bf16.mxu0 0
        %4884 = vmatpush1.bf16.msra.mxu0 %v4813
        %4885 = vmatprep.subr.bf16.mxu0 0
        %4886 = vmatpush1.bf16.msra.mxu0 %v4814
        %4887 = vmatprep.subr.bf16.mxu0 0
        %4888 = vmatpush1.bf16.msra.mxu0 %v4815
        %4889 = vmatprep.subr.bf16.mxu0 0
        %4890 = vmatpush1.bf16.msra.mxu0 %v4816
        %4891 = vmatprep.subr.bf16.mxu0 0
        %4892 = vmatpush1.bf16.msra.mxu0 %v4817
        %4893 = vmatprep.subr.bf16.mxu0 0
        %4894 = vmatpush1.bf16.msra.mxu0 %v4818
        %4895 = vmatprep.subr.bf16.mxu0 0
        %4896 = vmatpush1.bf16.msra.mxu0 %v4819
        %4897 = vmatprep.subr.bf16.mxu0 0
        %4898 = vmatpush1.bf16.msra.mxu0 %v4820
        %4899 = vmatprep.subr.bf16.mxu0 0
        %4900 = vmatpush1.bf16.msra.mxu0 %v4821
        %4901 = vmatprep.subr.bf16.mxu0 0
        %4902 = vmatpush1.bf16.msra.mxu0 %v4822
        %4903 = vmatprep.mubr.bf16.mxu0 %v4577
        %4904 = vmatmul.mubr.bf16.gmra.mrb[0].mxu0 %v4576
        %v4905 = vpop.f32.mrb[0].mxu0
        %v4906 = vadd.f32 %v4677, %v4905
        %v4907 = vpop.f32.mrb[0].mxu0
        %v4908 = vpop.f32.mrb[0].mxu0
        %v4909 = vadd.f32 %v4677, %v4908
        %v4910 = vpop.f32.mrb[0].mxu0
        %4911 = vmatprep.mubr.bf16.mxu0 %v4581
        %4912 = vmatmul.mubr.bf16.gmra.mrb[0].mxu0 %v4580
        %v4913 = vpop.f32.mrb[0].mxu0
        %v4914 = vadd.f32 %v4677, %v4913
        %v4915 = vpop.f32.mrb[0].mxu0
        %v4916 = vpop.f32.mrb[0].mxu0
        %v4917 = vadd.f32 %v4677, %v4916
        %v4918 = vpop.f32.mrb[0].mxu0
        %4919 = vmatprep.mubr.bf16.mxu0 %v4585
        %4920 = vmatmul.mubr.bf16.gmra.mrb[0].mxu0 %v4584
        %v4921 = vpop.f32.mrb[0].mxu0
        %v4922 = vadd.f32 %v4677, %v4921
        %v4923 = vpop.f32.mrb[0].mxu0
        %v4924 = vpop.f32.mrb[0].mxu0
        %v4925 = vadd.f32 %v4677, %v4924
        %v4926 = vpop.f32.mrb[0].mxu0
        %4927 = vmatprep.mubr.bf16.mxu0 %v4589
        %4928 = vmatmul.mubr.bf16.gmra.mrb[0].mxu0 %v4588
        %v4929 = vpop.f32.mrb[0].mxu0
        %v4930 = vadd.f32 %v4677, %v4929
        %v4931 = vpop.f32.mrb[0].mxu0
        %v4932 = vpop.f32.mrb[0].mxu0
        %v4933 = vadd.f32 %v4677, %v4932
        %v4934 = vpop.f32.mrb[0].mxu0
        %4935 = vmatprep.mubr.bf16.mxu0 %v4593
        %4936 = vmatmul.mubr.bf16.gmra.mrb[0].mxu0 %v4592
        %v4937 = vpop.f32.mrb[0].mxu0
        %v4938 = vadd.f32 %v4677, %v4937
        %v4939 = vpop.f32.mrb[0].mxu0
        %v4940 = vpop.f32.mrb[0].mxu0
        %v4941 = vadd.f32 %v4677, %v4940
        %v4942 = vpop.f32.mrb[0].mxu0
        %4943 = vmatprep.mubr.bf16.mxu0 %v4597
        %4944 = vmatmul.mubr.bf16.gmra.mrb[0].mxu0 %v4596
        %v4945 = vpop.f32.mrb[0].mxu0
        %v4946 = vadd.f32 %v4677, %v4945
        %v4947 = vpop.f32.mrb[0].mxu0
        %v4948 = vpop.f32.mrb[0].mxu0
        %v4949 = vadd.f32 %v4677, %v4948
        %v4950 = vpop.f32.mrb[0].mxu0
        %4951 = vmatprep.mubr.bf16.mxu0 %v4601
        %4952 = vmatmul.mubr.bf16.gmra.mrb[0].mxu0 %v4600
        %v4953 = vpop.f32.mrb[0].mxu0
        %v4954 = vadd.f32 %v4677, %v4953
        %v4955 = vpop.f32.mrb[0].mxu0
        %v4956 = vpop.f32.mrb[0].mxu0
        %v4957 = vadd.f32 %v4677, %v4956
        %v4958 = vpop.f32.mrb[0].mxu0
        %4959 = vmatprep.mubr.bf16.mxu0 %v4605
        %4960 = vmatmul.mubr.bf16.gmra.mrb[0].mxu0 %v4604
        %v4961 = vpop.f32.mrb[0].mxu0
        %v4962 = vadd.f32 %v4677, %v4961
        %v4963 = vpop.f32.mrb[0].mxu0
        %v4964 = vpop.f32.mrb[0].mxu0
        %v4965 = vadd.f32 %v4677, %v4964
        %v4966 = vpop.f32.mrb[0].mxu0
        %4967 = vdwg.mxu0
        %4968 = vmatprep.subr.bf16.mxu0 0
        %4969 = vmatpush1.bf16.msra.mxu0 %v4823
        %4970 = vmatprep.subr.bf16.mxu0 0
        %4971 = vmatpush1.bf16.msra.mxu0 %v4824
        %4972 = vmatprep.subr.bf16.mxu0 0
        %4973 = vmatpush1.bf16.msra.mxu0 %v4825
        %4974 = vmatprep.subr.bf16.mxu0 0
        %4975 = vmatpush1.bf16.msra.mxu0 %v4826
        %4976 = vmatprep.subr.bf16.mxu0 0
        %4977 = vmatpush1.bf16.msra.mxu0 %v4827
        %4978 = vmatprep.subr.bf16.mxu0 0
        %4979 = vmatpush1.bf16.msra.mxu0 %v4828
        %4980 = vmatprep.subr.bf16.mxu0 0
        %4981 = vmatpush1.bf16.msra.mxu0 %v4829
        %4982 = vmatprep.subr.bf16.mxu0 0
        %4983 = vmatpush1.bf16.msra.mxu0 %v4830
        %4984 = vmatprep.subr.bf16.mxu0 0
        %4985 = vmatpush1.bf16.msra.mxu0 %v4831
        %4986 = vmatprep.subr.bf16.mxu0 0
        %4987 = vmatpush1.bf16.msra.mxu0 %v4832
        %4988 = vmatprep.subr.bf16.mxu0 0
        %4989 = vmatpush1.bf16.msra.mxu0 %v4833
        %4990 = vmatprep.subr.bf16.mxu0 0
        %4991 = vmatpush1.bf16.msra.mxu0 %v4834
        %4992 = vmatprep.subr.bf16.mxu0 0
        %4993 = vmatpush1.bf16.msra.mxu0 %v4835
        %4994 = vmatprep.subr.bf16.mxu0 0
        %4995 = vmatpush1.bf16.msra.mxu0 %v4836
        %4996 = vmatprep.subr.bf16.mxu0 0
        %4997 = vmatpush1.bf16.msra.mxu0 %v4837
        %4998 = vmatprep.subr.bf16.mxu0 0
        %4999 = vmatpush1.bf16.msra.mxu0 %v4838
        %5000 = vmatprep.mubr.bf16.mxu0 %v4579
        %5001 = vmatmul.mubr.bf16.gmra.mrb[0].mxu0 %v4578
        %v5002 = vpop.f32.mrb[0].mxu0
        %v5003 = vadd.f32 %v4906, %v5002
        %v5004 = vpop.f32.mrb[0].mxu0
        %v5005 = vpop.f32.mrb[0].mxu0
        %v5006 = vadd.f32 %v4909, %v5005
        %v5007 = vpop.f32.mrb[0].mxu0
        %5008 = vmatprep.mubr.bf16.mxu0 %v4583
        %5009 = vmatmul.mubr.bf16.gmra.mrb[0].mxu0 %v4582
        %v5010 = vpop.f32.mrb[0].mxu0
        %v5011 = vadd.f32 %v4914, %v5010
        %v5012 = vpop.f32.mrb[0].mxu0
        %v5013 = vpop.f32.mrb[0].mxu0
        %v5014 = vadd.f32 %v4917, %v5013
        %v5015 = vpop.f32.mrb[0].mxu0
        %5016 = vmatprep.mubr.bf16.mxu0 %v4587
        %5017 = vmatmul.mubr.bf16.gmra.mrb[0].mxu0 %v4586
        %v5018 = vpop.f32.mrb[0].mxu0
        %v5019 = vadd.f32 %v4922, %v5018
        %v5020 = vpop.f32.mrb[0].mxu0
        %v5021 = vpop.f32.mrb[0].mxu0
        %v5022 = vadd.f32 %v4925, %v5021
        %v5023 = vpop.f32.mrb[0].mxu0
        %5024 = vmatprep.mubr.bf16.mxu0 %v4591
        %5025 = vmatmul.mubr.bf16.gmra.mrb[0].mxu0 %v4590
        %v5026 = vpop.f32.mrb[0].mxu0
        %v5027 = vadd.f32 %v4930, %v5026
        %v5028 = vpop.f32.mrb[0].mxu0
        %v5029 = vpop.f32.mrb[0].mxu0
        %v5030 = vadd.f32 %v4933, %v5029
        %v5031 = vpop.f32.mrb[0].mxu0
        %5032 = vmatprep.mubr.bf16.mxu0 %v4595
        %5033 = vmatmul.mubr.bf16.gmra.mrb[0].mxu0 %v4594
        %v5034 = vpop.f32.mrb[0].mxu0
        %v5035 = vadd.f32 %v4938, %v5034
        %v5036 = vpop.f32.mrb[0].mxu0
        %v5037 = vpop.f32.mrb[0].mxu0
        %v5038 = vadd.f32 %v4941, %v5037
        %v5039 = vpop.f32.mrb[0].mxu0
        %5040 = vmatprep.mubr.bf16.mxu0 %v4599
        %5041 = vmatmul.mubr.bf16.gmra.mrb[0].mxu0 %v4598
        %v5042 = vpop.f32.mrb[0].mxu0
        %v5043 = vadd.f32 %v4946, %v5042
        %v5044 = vpop.f32.mrb[0].mxu0
        %v5045 = vpop.f32.mrb[0].mxu0
        %v5046 = vadd.f32 %v4949, %v5045
        %v5047 = vpop.f32.mrb[0].mxu0
        %5048 = vmatprep.mubr.bf16.mxu0 %v4603
        %5049 = vmatmul.mubr.bf16.gmra.mrb[0].mxu0 %v4602
        %v5050 = vpop.f32.mrb[0].mxu0
        %v5051 = vadd.f32 %v4954, %v5050
        %v5052 = vpop.f32.mrb[0].mxu0
        %v5053 = vpop.f32.mrb[0].mxu0
        %v5054 = vadd.f32 %v4957, %v5053
        %v5055 = vpop.f32.mrb[0].mxu0
        %5056 = vmatprep.mubr.bf16.mxu0 %v4607
        %5057 = vmatmul.mubr.bf16.gmra.mrb[0].mxu0 %v4606
        %v5058 = vpop.f32.mrb[0].mxu0
        %v5059 = vadd.f32 %v4962, %v5058
        %v5060 = vpop.f32.mrb[0].mxu0
        %v5061 = vpop.f32.mrb[0].mxu0
        %v5062 = vadd.f32 %v4965, %v5061
        %v5063 = vpop.f32.mrb[0].mxu0
        %5064 = vdwg.mxu0
        %v5065 = vadd.f32 %v5003, %v3536
        %v5066 = vadd.f32 %v5006, %v3537
        %v5067 = vadd.f32 %v5011, %v3538
        %v5068 = vadd.f32 %v5014, %v3539
        %v5069 = vadd.f32 %v5019, %v3540
        %v5070 = vadd.f32 %v5022, %v3541
        %v5071 = vadd.f32 %v5027, %v3542
        %v5072 = vadd.f32 %v5030, %v3543
        %v5073 = vadd.f32 %v5035, %v3544
        %v5074 = vadd.f32 %v5038, %v3545
        %v5075 = vadd.f32 %v5043, %v3546
        %v5076 = vadd.f32 %v5046, %v3547
        %v5077 = vadd.f32 %v5051, %v3548
        %v5078 = vadd.f32 %v5054, %v3549
        %v5079 = vadd.f32 %v5059, %v3550
        %v5080 = vadd.f32 %v5062, %v3551
        %v5081 = vld [vmem:[%s12] sm:$0x1]
        %v5082 = vld [vmem:[%s13] sm:$0x1]
        %5083 = vadd.xlane.f32.xlu0 %v5065
        %v5084 = vpop.xlane.xlu0 %5083
        %5085 = vadd.xlane.f32.xlu0 %v5066
        %v5086 = vpop.xlane.xlu0 %5085
        %5087 = vadd.xlane.f32.xlu0 %v5067
        %v5088 = vpop.xlane.xlu0 %5087
        %5089 = vadd.xlane.f32.xlu0 %v5068
        %v5090 = vpop.xlane.xlu0 %5089
        %5091 = vadd.xlane.f32.xlu0 %v5069
        %v5092 = vpop.xlane.xlu0 %5091
        %5093 = vadd.xlane.f32.xlu0 %v5070
        %v5094 = vpop.xlane.xlu0 %5093
        %5095 = vadd.xlane.f32.xlu0 %v5071
        %v5096 = vpop.xlane.xlu0 %5095
        %5097 = vadd.xlane.f32.xlu0 %v5072
        %v5098 = vpop.xlane.xlu0 %5097
        %5099 = vadd.xlane.f32.xlu0 %v5073
        %v5100 = vpop.xlane.xlu0 %5099
        %5101 = vadd.xlane.f32.xlu0 %v5074
        %v5102 = vpop.xlane.xlu0 %5101
        %5103 = vadd.xlane.f32.xlu0 %v5075
        %v5104 = vpop.xlane.xlu0 %5103
        %5105 = vadd.xlane.f32.xlu0 %v5076
        %v5106 = vpop.xlane.xlu0 %5105
        %5107 = vadd.xlane.f32.xlu0 %v5077
        %v5108 = vpop.xlane.xlu0 %5107
        %5109 = vadd.xlane.f32.xlu0 %v5078
        %v5110 = vpop.xlane.xlu0 %5109
        %5111 = vadd.xlane.f32.xlu0 %v5079
        %v5112 = vpop.xlane.xlu0 %5111
        %5113 = vadd.xlane.f32.xlu0 %v5080
        %v5114 = vpop.xlane.xlu0 %5113
        %v5115 = vmul.f32 %v5084, %v3363
        %v5116 = vmul.f32 %v5086, %v3363
        %v5117 = vmul.f32 %v5088, %v3363
        %v5118 = vmul.f32 %v5090, %v3363
        %v5119 = vmul.f32 %v5092, %v3363
        %v5120 = vmul.f32 %v5094, %v3363
        %v5121 = vmul.f32 %v5096, %v3363
        %v5122 = vmul.f32 %v5098, %v3363
        %v5123 = vmul.f32 %v5100, %v3363
        %v5124 = vmul.f32 %v5102, %v3363
        %v5125 = vmul.f32 %v5104, %v3363
        %v5126 = vmul.f32 %v5106, %v3363
        %v5127 = vmul.f32 %v5108, %v3363
        %v5128 = vmul.f32 %v5110, %v3363
        %v5129 = vmul.f32 %v5112, %v3363
        %v5130 = vmul.f32 %v5114, %v3363
        %v5131 = vsub.f32 %v5065, %v5115
        %v5132 = vsub.f32 %v5066, %v5116
        %v5133 = vsub.f32 %v5067, %v5117
        %v5134 = vsub.f32 %v5068, %v5118
        %v5135 = vsub.f32 %v5069, %v5119
        %v5136 = vsub.f32 %v5070, %v5120
        %v5137 = vsub.f32 %v5071, %v5121
        %v5138 = vsub.f32 %v5072, %v5122
        %v5139 = vsub.f32 %v5073, %v5123
        %v5140 = vsub.f32 %v5074, %v5124
        %v5141 = vsub.f32 %v5075, %v5125
        %v5142 = vsub.f32 %v5076, %v5126
        %v5143 = vsub.f32 %v5077, %v5127
        %v5144 = vsub.f32 %v5078, %v5128
        %v5145 = vsub.f32 %v5079, %v5129
        %v5146 = vsub.f32 %v5080, %v5130
        %v5147 = vmul.f32 %v5131, %v5131
        %v5148 = vmul.f32 %v5132, %v5132
        %v5149 = vmul.f32 %v5133, %v5133
        %v5150 = vmul.f32 %v5134, %v5134
        %v5151 = vmul.f32 %v5135, %v5135
        %v5152 = vmul.f32 %v5136, %v5136
        %v5153 = vmul.f32 %v5137, %v5137
        %v5154 = vmul.f32 %v5138, %v5138
        %v5155 = vmul.f32 %v5139, %v5139
        %v5156 = vmul.f32 %v5140, %v5140
        %v5157 = vmul.f32 %v5141, %v5141
        %v5158 = vmul.f32 %v5142, %v5142
        %v5159 = vmul.f32 %v5143, %v5143
        %v5160 = vmul.f32 %v5144, %v5144
        %v5161 = vmul.f32 %v5145, %v5145
        %v5162 = vmul.f32 %v5146, %v5146
        %5163 = vadd.xlane.f32.xlu0 %v5147
        %v5164 = vpop.xlane.xlu0 %5163
        %5165 = vadd.xlane.f32.xlu0 %v5148
        %v5166 = vpop.xlane.xlu0 %5165
        %5167 = vadd.xlane.f32.xlu0 %v5149
        %v5168 = vpop.xlane.xlu0 %5167
        %5169 = vadd.xlane.f32.xlu0 %v5150
        %v5170 = vpop.xlane.xlu0 %5169
        %5171 = vadd.xlane.f32.xlu0 %v5151
        %v5172 = vpop.xlane.xlu0 %5171
        %5173 = vadd.xlane.f32.xlu0 %v5152
        %v5174 = vpop.xlane.xlu0 %5173
        %5175 = vadd.xlane.f32.xlu0 %v5153
        %v5176 = vpop.xlane.xlu0 %5175
        %5177 = vadd.xlane.f32.xlu0 %v5154
        %v5178 = vpop.xlane.xlu0 %5177
        %5179 = vadd.xlane.f32.xlu0 %v5155
        %v5180 = vpop.xlane.xlu0 %5179
        %5181 = vadd.xlane.f32.xlu0 %v5156
        %v5182 = vpop.xlane.xlu0 %5181
        %5183 = vadd.xlane.f32.xlu0 %v5157
        %v5184 = vpop.xlane.xlu0 %5183
        %5185 = vadd.xlane.f32.xlu0 %v5158
        %v5186 = vpop.xlane.xlu0 %5185
        %5187 = vadd.xlane.f32.xlu0 %v5159
        %v5188 = vpop.xlane.xlu0 %5187
        %5189 = vadd.xlane.f32.xlu0 %v5160
        %v5190 = vpop.xlane.xlu0 %5189
        %5191 = vadd.xlane.f32.xlu0 %v5161
        %v5192 = vpop.xlane.xlu0 %5191
        %5193 = vadd.xlane.f32.xlu0 %v5162
        %v5194 = vpop.xlane.xlu0 %5193
        %v5195 = vmul.f32 %v5164, %v3363
        %v5196 = vmul.f32 %v5166, %v3363
        %v5197 = vmul.f32 %v5168, %v3363
        %v5198 = vmul.f32 %v5170, %v3363
        %v5199 = vmul.f32 %v5172, %v3363
        %v5200 = vmul.f32 %v5174, %v3363
        %v5201 = vmul.f32 %v5176, %v3363
        %v5202 = vmul.f32 %v5178, %v3363
        %v5203 = vmul.f32 %v5180, %v3363
        %v5204 = vmul.f32 %v5182, %v3363
        %v5205 = vmul.f32 %v5184, %v3363
        %v5206 = vmul.f32 %v5186, %v3363
        %v5207 = vmul.f32 %v5188, %v3363
        %v5208 = vmul.f32 %v5190, %v3363
        %v5209 = vmul.f32 %v5192, %v3363
        %v5210 = vmul.f32 %v5194, %v3363
        %v5211 = vadd.f32 %v5195, 1e-12
        %v5212 = vadd.f32 %v5196, 1e-12
        %v5213 = vadd.f32 %v5197, 1e-12
        %v5214 = vadd.f32 %v5198, 1e-12
        %v5215 = vadd.f32 %v5199, 1e-12
        %v5216 = vadd.f32 %v5200, 1e-12
        %v5217 = vadd.f32 %v5201, 1e-12
        %v5218 = vadd.f32 %v5202, 1e-12
        %v5219 = vadd.f32 %v5203, 1e-12
        %v5220 = vadd.f32 %v5204, 1e-12
        %v5221 = vadd.f32 %v5205, 1e-12
        %v5222 = vadd.f32 %v5206, 1e-12
        %v5223 = vadd.f32 %v5207, 1e-12
        %v5224 = vadd.f32 %v5208, 1e-12
        %v5225 = vadd.f32 %v5209, 1e-12
        %v5226 = vadd.f32 %v5210, 1e-12
        %v5227 = vrsqrt.pop %v5211
        %v5228 = vrsqrt.pop %v5212
        %v5229 = vrsqrt.pop %v5213
        %v5230 = vrsqrt.pop %v5214
        %v5231 = vrsqrt.pop %v5215
        %v5232 = vrsqrt.pop %v5216
        %v5233 = vrsqrt.pop %v5217
        %v5234 = vrsqrt.pop %v5218
        %v5235 = vrsqrt.pop %v5219
        %v5236 = vrsqrt.pop %v5220
        %v5237 = vrsqrt.pop %v5221
        %v5238 = vrsqrt.pop %v5222
        %v5239 = vrsqrt.pop %v5223
        %v5240 = vrsqrt.pop %v5224
        %v5241 = vrsqrt.pop %v5225
        %v5242 = vrsqrt.pop %v5226
        %v5243 = vmul.f32 %v5131, %v5227
        %v5244 = vmul.f32 %v5132, %v5228
        %v5245 = vmul.f32 %v5133, %v5229
        %v5246 = vmul.f32 %v5134, %v5230
        %v5247 = vmul.f32 %v5135, %v5231
        %v5248 = vmul.f32 %v5136, %v5232
        %v5249 = vmul.f32 %v5137, %v5233
        %v5250 = vmul.f32 %v5138, %v5234
        %v5251 = vmul.f32 %v5139, %v5235
        %v5252 = vmul.f32 %v5140, %v5236
        %v5253 = vmul.f32 %v5141, %v5237
        %v5254 = vmul.f32 %v5142, %v5238
        %v5255 = vmul.f32 %v5143, %v5239
        %v5256 = vmul.f32 %v5144, %v5240
        %v5257 = vmul.f32 %v5145, %v5241
        %v5258 = vmul.f32 %v5146, %v5242
        %v5260 = vlaneseq
        %v5261 = vshrl.u32 %v5260, 7
        %v5262 = vsub.s32 0, %v5261
        %v5263 = vrot.slane %v5081, %v5262
        %v5265 = vmul.f32 %v5243, %v5263
        %v5266 = vmul.f32 %v5244, %v5263
        %v5267 = vmul.f32 %v5245, %v5263
        %v5268 = vmul.f32 %v5246, %v5263
        %v5269 = vmul.f32 %v5247, %v5263
        %v5270 = vmul.f32 %v5248, %v5263
        %v5271 = vmul.f32 %v5249, %v5263
        %v5272 = vmul.f32 %v5250, %v5263
        %v5273 = vmul.f32 %v5251, %v5263
        %v5274 = vmul.f32 %v5252, %v5263
        %v5275 = vmul.f32 %v5253, %v5263
        %v5276 = vmul.f32 %v5254, %v5263
        %v5277 = vmul.f32 %v5255, %v5263
        %v5278 = vmul.f32 %v5256, %v5263
        %v5279 = vmul.f32 %v5257, %v5263
        %v5280 = vmul.f32 %v5258, %v5263
        %v5282 = vlaneseq
        %v5283 = vshrl.u32 %v5282, 7
        %v5284 = vsub.s32 0, %v5283
        %v5285 = vrot.slane %v5082, %v5284
        %v5287 = vadd.f32 %v5265, %v5285
        %v5288 = vadd.f32 %v5266, %v5285
        %v5289 = vadd.f32 %v5267, %v5285
        %v5290 = vadd.f32 %v5268, %v5285
        %v5291 = vadd.f32 %v5269, %v5285
        %v5292 = vadd.f32 %v5270, %v5285
        %v5293 = vadd.f32 %v5271, %v5285
        %v5294 = vadd.f32 %v5272, %v5285
        %v5295 = vadd.f32 %v5273, %v5285
        %v5296 = vadd.f32 %v5274, %v5285
        %v5297 = vadd.f32 %v5275, %v5285
        %v5298 = vadd.f32 %v5276, %v5285
        %v5299 = vadd.f32 %v5277, %v5285
        %v5300 = vadd.f32 %v5278, %v5285
        %v5301 = vadd.f32 %v5279, %v5285
        %v5302 = vadd.f32 %v5280, %v5285
        %5303 = vst [vmem:[%s577] sm:$0xff] %v5287
        %5304 = vst [vmem:[%s577 + $0x8] sm:$0xff] %v5288
        %5305 = vst [vmem:[%s577 + $0x10] sm:$0xff] %v5289
        %5306 = vst [vmem:[%s577 + $0x18] sm:$0xff] %v5290
        %5307 = vst [vmem:[%s577 + $0x20] sm:$0xff] %v5291
        %5308 = vst [vmem:[%s577 + $0x28] sm:$0xff] %v5292
        %5309 = vst [vmem:[%s577 + $0x30] sm:$0xff] %v5293
        %5310 = vst [vmem:[%s577 + $0x38] sm:$0xff] %v5294
        %5311 = vst [vmem:[%s577 + $0x40] sm:$0xff] %v5295
        %5312 = vst [vmem:[%s577 + $0x48] sm:$0xff] %v5296
        %5313 = vst [vmem:[%s577 + $0x50] sm:$0xff] %v5297
        %5314 = vst [vmem:[%s577 + $0x58] sm:$0xff] %v5298
        %5315 = vst [vmem:[%s577 + $0x60] sm:$0xff] %v5299
        %5316 = vst [vmem:[%s577 + $0x68] sm:$0xff] %v5300
        %5317 = vst [vmem:[%s577 + $0x70] sm:$0xff] %v5301
        %5318 = vst [vmem:[%s577 + $0x78] sm:$0xff] %v5302
        %s5319 = sand.u32 %s348, 1
        %s5320 = scalar_lea.sflag [#allocation6], %s5319
        %s5321 = sand.u32 %s348, 1
        %s5322 = smul.addr %s5321, 128
        %s5323 = scalar_lea.vmem [#allocation15], %s5322
        // Predicated region
        $region101: #{tpu_custom_call.1} parent=75 // pred_check
          %p5324 = pneg %p358
        $region102: #{tpu_custom_call.1} parent=75 // pred_check_branch
          %5326 = sbr.rel (%p5324) target = $region104
        $region103: #{tpu_custom_call.1} parent=75 // pred_region
          %s5328 = ssub.s32 2048, 2048
          %5329 = vsyncadd %s5320, %s5328
          %s5330 = smul.addr %s36, 16
          %s5331 = smul.addr %s5330, 128
          %s5332 = scalar_lea.hbm %s14, %s5331
          %s5333 = sshll.u32 %s5323, 4
          %s5334 = int_to_ptr.vmem [resolvable:$true] %s5333
          %5339 = dma.vmem_to_hbm [thread:$0]  %s5334, 2048, %s5332, %s5320, 128, 128, 8
        $region104: #{tpu_custom_call.1} parent=75 // pred_fallthru
          _
      $region76: #{tpu_custom_call.1} parent=5 // pred_fallthru
        _
      %p5340 = scmp.le.s32.totalorder 2, %s31
      // Predicated region
      $region105: #{tpu_custom_call.1} parent=5 // pred_check
        %p5341 = pneg %p5340
      $region106: #{tpu_custom_call.1} parent=5 // pred_check_branch
        %5343 = sbr.rel (%p5341) target = $region108
      $region107: #{tpu_custom_call.1} parent=5 // pred_region
        %s5344 = ssub.s32 %s31, 2
        // Predicated region
        $region109: #{tpu_custom_call.1} parent=107 // pred_check
          %p5345 = pneg %p364
        $region110: #{tpu_custom_call.1} parent=107 // pred_check_branch
          %5347 = sbr.rel (%p5345) target = $region112
        $region111: #{tpu_custom_call.1} parent=107 // pred_region
          %s5348 = sand.u32 %s349, 1
          %s5349 = scalar_lea.sflag [#allocation6], %s5348
          %s5350 = sand.u32 %s349, 1
          %s5351 = smul.addr %s5350, 128
          %s5352 = scalar_lea.vmem [#allocation15], %s5351
          %5353 = dma.done %s5349, 2048
        $region112: #{tpu_custom_call.1} parent=107 // pred_fallthru
          _
      $region108: #{tpu_custom_call.1} parent=5 // pred_fallthru
        _
    $region6: #{tpu_custom_call.1} parent=1 // loop_footer
      %s35 = sadd.s32 1, %s31
    $region7: #{tpu_custom_call.1} parent=1 // loop_footer_branch
      %30 = sbr.rel target = $region3
    $region8: #{tpu_custom_call.1} parent=1 // loop_exit
      _
    %5354 = vsyncpa [#allocation5], 1
    %s5355 = scalar_lea.sflag [#allocation5], 1
    %5356 = vsyncpa %s5355, 1
    %5357 = vsyncpa [#allocation8], 1
    %s5358 = scalar_lea.sflag [#allocation8], 1
    %5359 = vsyncpa %s5358, 1
    %5360 = vsyncpa [#allocation11], 1
    %5361 = vsyncpa [#allocation14], 1
    %5362 = vsyncpa [#allocation6], 1
    %s5363 = scalar_lea.sflag [#allocation6], 1
    %5364 = vsyncpa %s5363, 1

</llo_original>
